<compile_context>
chip_gen: v6e
topology: v6e:2x2x1
jax: 0.10.0
libtpu: 0.0.40
codegen_flags: <defaults>
</compile_context>

<pallas_src>
import functools
import math

import jax
import jax.numpy as jnp
from jax.experimental import pallas as pl
from jax.experimental.pallas import tpu as pltpu

LANE = 128


def _round_up(n: int, m: int) -> int:
    return ((n + m - 1) // m) * m


def _mlp_kernel(*refs, num_layers: int, in_features: int, noise_coeff: float):
    """refs = (x, W1, b1, ..., WL, bL, eps, out, xpad_scratch). All float32.

    x:    (TB, in_features)   natural (unpadded) input tile
    Wi:   (ki_pad, ni_pad)    zero-padded, stored (in, out) so each layer is h @ W
    bi:   (1, ni_pad)
    eps:  (TB, out_pad)       lane-dense standard-normal draw
    out:  (TB, out_pad)       lane-dense output tile (caller slices the real lanes)
    xpad: (TB, in_pad)        VMEM scratch presenting a 128-aligned first matmul operand
    """
    x_ref = refs[0]
    eps_ref = refs[1 + 2 * num_layers]
    out_ref = refs[2 + 2 * num_layers]
    xpad_ref = refs[3 + 2 * num_layers]

    in_pad = xpad_ref.shape[1]
    if in_pad == in_features:
        h = x_ref[...]
    else:
        # Zero pad lanes every step (cheap VMEM-only work; safe under megacore grid
        # sharding), then overwrite the real lanes with this tile's rows.
        xpad_ref[...] = jnp.zeros_like(xpad_ref)
        xpad_ref[:, :in_features] = x_ref[...]
        h = xpad_ref[...]

    for i in range(num_layers):                      # unrolled at trace time (L = 4)
        w_ref = refs[1 + 2 * i]                      # (k_pad, n_pad), VMEM-resident
        b_ref = refs[2 + 2 * i]                      # (1, n_pad) -> broadcasts over rows
        h = jnp.dot(h, w_ref[...], preferred_element_type=jnp.float32) + b_ref[...]
        h = jax.nn.softplus(h)                       # numerically stable, f32

    # GaussianNoise(sigma)(y, noise_scale) == y + sigma * noise_scale * eps (additive).
    # Full lane-dense store; pad lanes hold softplus(0)+noise garbage and are sliced off
    # by the wrapper.
    out_ref[...] = h + noise_coeff * eps_ref[...]


def init_mlp_params(key, *, layer_sizes=(25, 15, 10), input_size=150, output_size=10):
    """Mirror the PyTorch init: Linear(prev, size) with weight ~ N(0, sqrt(1/out_features))
    and bias = 0. Weights stored transposed as (in, out) so the kernel computes x @ W."""
    sizes = tuple(layer_sizes) + (output_size,)
    params = []
    prev = input_size
    for size in sizes:
        key, wk = jax.random.split(key)
        w = jax.random.normal(wk, (prev, size), jnp.float32) * math.sqrt(1.0 / size)
        b = jnp.zeros((1, size), jnp.float32)
        params.append((w, b))
        prev = size
    return params


def pad_mlp_params(params, input_size):
    """Zero-pad every layer's (in, out) dims up to multiples of 128. Done ONCE at init —
    the per-call path pays no weight-side padding. Exactness invariant: padded rows/cols
    of every W and b are exactly zero (any non-zero pad would corrupt real outputs)."""
    padded = []
    prev_pad = _round_up(input_size, LANE)
    for (w, b) in params:
        k_real, n_real = w.shape
        n_pad = _round_up(n_real, LANE)
        w_p = jnp.zeros((prev_pad, n_pad), jnp.float32).at[:k_real, :n_real].set(w)
        b_p = jnp.zeros((1, n_pad), jnp.float32).at[:, :n_real].set(b)
        padded.append((w_p, b_p))
        prev_pad = n_pad
    return padded


def _pick_batch_tile(batch: int) -> int:
    for tile in (256, 128):        # 256 = native v6e/v7x MXU M; 128 fine for v5e
        if batch % tile == 0:
            return tile
    return batch                    # single grid step over the whole (small/odd) batch


def mlp_forward(x, padded_params, eps, *, output_size, sigma=0.25, noise_scale=0.05,
                batch_tile=None):
    """Fused MLP forward. x: (B, input_size) f32, eps: (B, out_pad) f32 (lane-dense)."""
    batch, in_features = x.shape
    in_pad = padded_params[0][0].shape[0]
    out_pad = padded_params[-1][0].shape[1]
    num_layers = len(padded_params)
    noise_coeff = float(sigma) * float(noise_scale)      # pure trace-time constant

    assert eps.shape == (batch, out_pad), "draw eps lane-dense: (batch, out_pad)"

    tb = batch_tile if batch_tile is not None else _pick_batch_tile(batch)
    assert batch % tb == 0, "batch must be divisible by the batch tile"
    grid = (batch // tb,)

    flat_params, param_specs = [], []
    for (w, b) in padded_params:
        flat_params.extend((w, b))
        # Constant index_map -> weights/biases stay VMEM-resident across grid steps.
        param_specs.append(pl.BlockSpec(w.shape, lambda i: (0, 0)))
        param_specs.append(pl.BlockSpec(b.shape, lambda i: (0, 0)))

    kernel = functools.partial(
        _mlp_kernel, num_layers=num_layers, in_features=in_features,
        noise_coeff=noise_coeff)

    out_padded = pl.pallas_call(
        kernel,
        out_shape=jax.ShapeDtypeStruct((batch, out_pad), jnp.float32),
        grid=grid,
        in_specs=[pl.BlockSpec((tb, in_features), lambda i: (i, 0))]
                 + param_specs
                 + [pl.BlockSpec((tb, out_pad), lambda i: (i, 0))],
        out_specs=pl.BlockSpec((tb, out_pad), lambda i: (i, 0)),
        scratch_shapes=[pltpu.VMEM((tb, in_pad), jnp.float32)],
        compiler_params=pltpu.CompilerParams(
            dimension_semantics=("parallel",)),          # both TCs on v7x
    )(x, *flat_params, eps)

    # Lane-dense store in-kernel; trim to the module's real output width here.
    return out_padded[:, :output_size]


if __name__ == "__main__":
    key = jax.random.PRNGKey(0)
    k_params, k_x, k_eps = jax.random.split(key, 3)

    # Module defaults: input_size=150, layer_sizes=(25, 15, 10), output_size=10.
    input_size, layer_sizes, output_size = 150, (25, 15, 10), 10
    sigma, noise_scale = 0.25, 0.05
    batch = 512                                          # 2 grid steps of 256 rows
    out_pad = _round_up(output_size, LANE)

    params = init_mlp_params(k_params, layer_sizes=layer_sizes,
                             input_size=input_size, output_size=output_size)
    padded = pad_mlp_params(params, input_size)          # hoisted: once at "model init"

    x = jax.random.normal(k_x, (batch, input_size), jnp.float32)
    eps = jax.random.normal(k_eps, (batch, out_pad), jnp.float32)   # lane-dense draw

    y = mlp_forward(x, padded, eps, output_size=output_size,
                    sigma=sigma, noise_scale=noise_scale)
    jax.block_until_ready(y)

    # Pure-JAX reference (unpadded parameters, real eps lanes only).
    h = x
    for (w, b) in params:
        h = jax.nn.softplus(h @ w + b)
    y_ref = h + sigma * noise_scale * eps[:, :output_size]

    assert y.shape == (batch, output_size)
    assert jnp.allclose(y, y_ref, atol=3e-5, rtol=1e-4), \
        float(jnp.max(jnp.abs(y - y_ref)))

    print("KERNEL_OK")
</pallas_src>

<mosaic_0001>
module attributes {stable_mosaic.version = 11 : i64} {
  func.func @_mlp_kernel(%arg0: i32, %arg1: memref<256x150xf32, #tpu.memory_space<vmem>>, %arg2: memref<256x128xf32, #tpu.memory_space<vmem>>, %arg3: memref<1x128xf32, #tpu.memory_space<vmem>>, %arg4: memref<128x128xf32, #tpu.memory_space<vmem>>, %arg5: memref<1x128xf32, #tpu.memory_space<vmem>>, %arg6: memref<128x128xf32, #tpu.memory_space<vmem>>, %arg7: memref<1x128xf32, #tpu.memory_space<vmem>>, %arg8: memref<128x128xf32, #tpu.memory_space<vmem>>, %arg9: memref<1x128xf32, #tpu.memory_space<vmem>>, %arg10: memref<256x128xf32, #tpu.memory_space<vmem>>, %arg11: memref<256x128xf32, #tpu.memory_space<vmem>>, %arg12: memref<256x256xf32, #tpu.memory_space<vmem>>) attributes {dimension_semantics = [#tpu.dimension_semantics<parallel>], iteration_bounds = array<i64: 2>, scalar_prefetch = 0 : i64, scratch_operands = 1 : i64, tpu.core_type = #tpu.core_type<tc>, window_params = [{transform_indices = @transform_0, window_bounds = array<i64: 256, 150>}, {pipeline_mode = #tpu.pipeline_mode<synchronous>, transform_indices = @transform_1, window_bounds = array<i64: 256, 128>}, {pipeline_mode = #tpu.pipeline_mode<synchronous>, transform_indices = @transform_2, window_bounds = array<i64: 1, 128>}, {pipeline_mode = #tpu.pipeline_mode<synchronous>, transform_indices = @transform_3, window_bounds = array<i64: 128, 128>}, {pipeline_mode = #tpu.pipeline_mode<synchronous>, transform_indices = @transform_4, window_bounds = array<i64: 1, 128>}, {pipeline_mode = #tpu.pipeline_mode<synchronous>, transform_indices = @transform_5, window_bounds = array<i64: 128, 128>}, {pipeline_mode = #tpu.pipeline_mode<synchronous>, transform_indices = @transform_6, window_bounds = array<i64: 1, 128>}, {pipeline_mode = #tpu.pipeline_mode<synchronous>, transform_indices = @transform_7, window_bounds = array<i64: 128, 128>}, {pipeline_mode = #tpu.pipeline_mode<synchronous>, transform_indices = @transform_8, window_bounds = array<i64: 1, 128>}, {transform_indices = @transform_9, window_bounds = array<i64: 256, 128>}, {transform_indices = @transform_10, window_bounds = array<i64: 256, 128>}]} {
    %cst = arith.constant 0.000000e+00 : f32
    %0 = vector.broadcast %cst : f32 to vector<256x256xf32>
    %c0 = arith.constant 0 : index
    %c0_0 = arith.constant 0 : index
    %1 = vector.load %arg12[%c0, %c0_0] : memref<256x256xf32, #tpu.memory_space<vmem>>, vector<256x256xf32>
    tpu.vector_store %arg12[%c0, %c0_0], %0 {strides = array<i32>} : memref<256x256xf32, #tpu.memory_space<vmem>>, vector<256x256xf32>,
    %c0_1 = arith.constant 0 : index
    %c0_2 = arith.constant 0 : index
    %2 = vector.load %arg1[%c0_1, %c0_2] : memref<256x150xf32, #tpu.memory_space<vmem>>, vector<256x150xf32>
    %c0_3 = arith.constant 0 : index
    %c0_4 = arith.constant 0 : index
    %3 = vector.load %arg12[%c0_3, %c0_4] : memref<256x256xf32, #tpu.memory_space<vmem>>, vector<256x150xf32>
    tpu.vector_store %arg12[%c0_3, %c0_4], %2 {strides = array<i32>} : memref<256x256xf32, #tpu.memory_space<vmem>>, vector<256x150xf32>,
    %c0_5 = arith.constant 0 : index
    %c0_6 = arith.constant 0 : index
    %4 = vector.load %arg12[%c0_5, %c0_6] : memref<256x256xf32, #tpu.memory_space<vmem>>, vector<256x256xf32>
    %c0_7 = arith.constant 0 : index
    %c0_8 = arith.constant 0 : index
    %5 = vector.load %arg2[%c0_7, %c0_8] : memref<256x128xf32, #tpu.memory_space<vmem>>, vector<256x128xf32>
    %cst_9 = arith.constant dense<0.000000e+00> : vector<256x128xf32>
    %6 = tpu.matmul %4, %5, %cst_9 {dimension_numbers = #tpu.dot_dimension_numbers<[1], [0], [0], [1], [0, 0, 1, 1], [], []>} : vector<256x256xf32>, vector<256x128xf32>, vector<256x128xf32> -> vector<256x128xf32>
    %c0_10 = arith.constant 0 : index
    %c0_11 = arith.constant 0 : index
    %7 = vector.load %arg3[%c0_10, %c0_11] : memref<1x128xf32, #tpu.memory_space<vmem>>, vector<1x128xf32>
    %8 = vector.broadcast %7 : vector<1x128xf32> to vector<256x128xf32>
    %9 = arith.addf %6, %8 : vector<256x128xf32>
    %cst_12 = arith.constant 0.000000e+00 : f32
    %10 = vector.broadcast %cst_12 : f32 to vector<256x128xf32>
    %11 = arith.maximumf %9, %10 : vector<256x128xf32>
    %12 = vector.broadcast %cst_12 : f32 to vector<256x128xf32>
    %13 = arith.subf %9, %12 : vector<256x128xf32>
    %14 = arith.cmpf one, %13, %13 : vector<256x128xf32>
    %15 = vector.broadcast %cst_12 : f32 to vector<256x128xf32>
    %16 = arith.addf %9, %15 : vector<256x128xf32>
    %17 = math.absf %13 : vector<256x128xf32>
    %cst_13 = arith.constant 0.000000e+00 : f32
    %18 = vector.broadcast %cst_13 : f32 to vector<256x128xf32>
    %19 = arith.subf %18, %17 : vector<256x128xf32>
    %20 = math.exp %19 : vector<256x128xf32>
    %21 = math.log1p %20 : vector<256x128xf32>
    %22 = arith.addf %11, %21 : vector<256x128xf32>
    %23 = arith.select %14, %16, %22 : vector<256x128xi1>, vector<256x128xf32>
    %c0_14 = arith.constant 0 : index
    %c0_15 = arith.constant 0 : index
    %24 = vector.load %arg4[%c0_14, %c0_15] : memref<128x128xf32, #tpu.memory_space<vmem>>, vector<128x128xf32>
    %cst_16 = arith.constant dense<0.000000e+00> : vector<256x128xf32>
    %25 = tpu.matmul %23, %24, %cst_16 {dimension_numbers = #tpu.dot_dimension_numbers<[1], [0], [0], [1], [0, 0, 1, 1], [], []>} : vector<256x128xf32>, vector<128x128xf32>, vector<256x128xf32> -> vector<256x128xf32>
    %c0_17 = arith.constant 0 : index
    %c0_18 = arith.constant 0 : index
    %26 = vector.load %arg5[%c0_17, %c0_18] : memref<1x128xf32, #tpu.memory_space<vmem>>, vector<1x128xf32>
    %27 = vector.broadcast %26 : vector<1x128xf32> to vector<256x128xf32>
    %28 = arith.addf %25, %27 : vector<256x128xf32>
    %cst_19 = arith.constant 0.000000e+00 : f32
    %29 = vector.broadcast %cst_19 : f32 to vector<256x128xf32>
    %30 = arith.maximumf %28, %29 : vector<256x128xf32>
    %31 = vector.broadcast %cst_19 : f32 to vector<256x128xf32>
    %32 = arith.subf %28, %31 : vector<256x128xf32>
    %33 = arith.cmpf one, %32, %32 : vector<256x128xf32>
    %34 = vector.broadcast %cst_19 : f32 to vector<256x128xf32>
    %35 = arith.addf %28, %34 : vector<256x128xf32>
    %36 = math.absf %32 : vector<256x128xf32>
    %cst_20 = arith.constant 0.000000e+00 : f32
    %37 = vector.broadcast %cst_20 : f32 to vector<256x128xf32>
    %38 = arith.subf %37, %36 : vector<256x128xf32>
    %39 = math.exp %38 : vector<256x128xf32>
    %40 = math.log1p %39 : vector<256x128xf32>
    %41 = arith.addf %30, %40 : vector<256x128xf32>
    %42 = arith.select %33, %35, %41 : vector<256x128xi1>, vector<256x128xf32>
    %c0_21 = arith.constant 0 : index
    %c0_22 = arith.constant 0 : index
    %43 = vector.load %arg6[%c0_21, %c0_22] : memref<128x128xf32, #tpu.memory_space<vmem>>, vector<128x128xf32>
    %cst_23 = arith.constant dense<0.000000e+00> : vector<256x128xf32>
    %44 = tpu.matmul %42, %43, %cst_23 {dimension_numbers = #tpu.dot_dimension_numbers<[1], [0], [0], [1], [0, 0, 1, 1], [], []>} : vector<256x128xf32>, vector<128x128xf32>, vector<256x128xf32> -> vector<256x128xf32>
    %c0_24 = arith.constant 0 : index
    %c0_25 = arith.constant 0 : index
    %45 = vector.load %arg7[%c0_24, %c0_25] : memref<1x128xf32, #tpu.memory_space<vmem>>, vector<1x128xf32>
    %46 = vector.broadcast %45 : vector<1x128xf32> to vector<256x128xf32>
    %47 = arith.addf %44, %46 : vector<256x128xf32>
    %cst_26 = arith.constant 0.000000e+00 : f32
    %48 = vector.broadcast %cst_26 : f32 to vector<256x128xf32>
    %49 = arith.maximumf %47, %48 : vector<256x128xf32>
    %50 = vector.broadcast %cst_26 : f32 to vector<256x128xf32>
    %51 = arith.subf %47, %50 : vector<256x128xf32>
    %52 = arith.cmpf one, %51, %51 : vector<256x128xf32>
    %53 = vector.broadcast %cst_26 : f32 to vector<256x128xf32>
    %54 = arith.addf %47, %53 : vector<256x128xf32>
    %55 = math.absf %51 : vector<256x128xf32>
    %cst_27 = arith.constant 0.000000e+00 : f32
    %56 = vector.broadcast %cst_27 : f32 to vector<256x128xf32>
    %57 = arith.subf %56, %55 : vector<256x128xf32>
    %58 = math.exp %57 : vector<256x128xf32>
    %59 = math.log1p %58 : vector<256x128xf32>
    %60 = arith.addf %49, %59 : vector<256x128xf32>
    %61 = arith.select %52, %54, %60 : vector<256x128xi1>, vector<256x128xf32>
    %c0_28 = arith.constant 0 : index
    %c0_29 = arith.constant 0 : index
    %62 = vector.load %arg8[%c0_28, %c0_29] : memref<128x128xf32, #tpu.memory_space<vmem>>, vector<128x128xf32>
    %cst_30 = arith.constant dense<0.000000e+00> : vector<256x128xf32>
    %63 = tpu.matmul %61, %62, %cst_30 {dimension_numbers = #tpu.dot_dimension_numbers<[1], [0], [0], [1], [0, 0, 1, 1], [], []>} : vector<256x128xf32>, vector<128x128xf32>, vector<256x128xf32> -> vector<256x128xf32>
    %c0_31 = arith.constant 0 : index
    %c0_32 = arith.constant 0 : index
    %64 = vector.load %arg9[%c0_31, %c0_32] : memref<1x128xf32, #tpu.memory_space<vmem>>, vector<1x128xf32>
    %65 = vector.broadcast %64 : vector<1x128xf32> to vector<256x128xf32>
    %66 = arith.addf %63, %65 : vector<256x128xf32>
    %cst_33 = arith.constant 0.000000e+00 : f32
    %67 = vector.broadcast %cst_33 : f32 to vector<256x128xf32>
    %68 = arith.maximumf %66, %67 : vector<256x128xf32>
    %69 = vector.broadcast %cst_33 : f32 to vector<256x128xf32>
    %70 = arith.subf %66, %69 : vector<256x128xf32>
    %71 = arith.cmpf one, %70, %70 : vector<256x128xf32>
    %72 = vector.broadcast %cst_33 : f32 to vector<256x128xf32>
    %73 = arith.addf %66, %72 : vector<256x128xf32>
    %74 = math.absf %70 : vector<256x128xf32>
    %cst_34 = arith.constant 0.000000e+00 : f32
    %75 = vector.broadcast %cst_34 : f32 to vector<256x128xf32>
    %76 = arith.subf %75, %74 : vector<256x128xf32>
    %77 = math.exp %76 : vector<256x128xf32>
    %78 = math.log1p %77 : vector<256x128xf32>
    %79 = arith.addf %68, %78 : vector<256x128xf32>
    %80 = arith.select %71, %73, %79 : vector<256x128xi1>, vector<256x128xf32>
    %c0_35 = arith.constant 0 : index
    %c0_36 = arith.constant 0 : index
    %81 = vector.load %arg10[%c0_35, %c0_36] : memref<256x128xf32, #tpu.memory_space<vmem>>, vector<256x128xf32>
    %cst_37 = arith.constant 1.250000e-02 : f32
    %82 = vector.broadcast %cst_37 : f32 to vector<256x128xf32>
    %83 = arith.mulf %82, %81 : vector<256x128xf32>
    %84 = arith.addf %80, %83 : vector<256x128xf32>
    %c0_38 = arith.constant 0 : index
    %c0_39 = arith.constant 0 : index
    %85 = vector.load %arg11[%c0_38, %c0_39] : memref<256x128xf32, #tpu.memory_space<vmem>>, vector<256x128xf32>
    tpu.vector_store %arg11[%c0_38, %c0_39], %84 {strides = array<i32>} : memref<256x128xf32, #tpu.memory_space<vmem>>, vector<256x128xf32>,
    return
  }
  func.func @transform_0(%arg0: i32) -> (i32, i32) {
    %c0_i32 = arith.constant 0 : i32
    %c0_i32_0 = arith.constant 0 : i32
    return %arg0, %c0_i32 : i32, i32
  }
  func.func @transform_1(%arg0: i32) -> (i32, i32) {
    %c0_i32 = arith.constant 0 : i32
    %c0_i32_0 = arith.constant 0 : i32
    %c0_i32_1 = arith.constant 0 : i32
    return %c0_i32, %c0_i32_0 : i32, i32
  }
  func.func @transform_2(%arg0: i32) -> (i32, i32) {
    %c0_i32 = arith.constant 0 : i32
    %c0_i32_0 = arith.constant 0 : i32
    %c0_i32_1 = arith.constant 0 : i32
    return %c0_i32, %c0_i32_0 : i32, i32
  }
  func.func @transform_3(%arg0: i32) -> (i32, i32) {
    %c0_i32 = arith.constant 0 : i32
    %c0_i32_0 = arith.constant 0 : i32
    %c0_i32_1 = arith.constant 0 : i32
    return %c0_i32, %c0_i32_0 : i32, i32
  }
  func.func @transform_4(%arg0: i32) -> (i32, i32) {
    %c0_i32 = arith.constant 0 : i32
    %c0_i32_0 = arith.constant 0 : i32
    %c0_i32_1 = arith.constant 0 : i32
    return %c0_i32, %c0_i32_0 : i32, i32
  }
  func.func @transform_5(%arg0: i32) -> (i32, i32) {
    %c0_i32 = arith.constant 0 : i32
    %c0_i32_0 = arith.constant 0 : i32
    %c0_i32_1 = arith.constant 0 : i32
    return %c0_i32, %c0_i32_0 : i32, i32
  }
  func.func @transform_6(%arg0: i32) -> (i32, i32) {
    %c0_i32 = arith.constant 0 : i32
    %c0_i32_0 = arith.constant 0 : i32
    %c0_i32_1 = arith.constant 0 : i32
    return %c0_i32, %c0_i32_0 : i32, i32
  }
  func.func @transform_7(%arg0: i32) -> (i32, i32) {
    %c0_i32 = arith.constant 0 : i32
    %c0_i32_0 = arith.constant 0 : i32
    %c0_i32_1 = arith.constant 0 : i32
    return %c0_i32, %c0_i32_0 : i32, i32
  }
  func.func @transform_8(%arg0: i32) -> (i32, i32) {
    %c0_i32 = arith.constant 0 : i32
    %c0_i32_0 = arith.constant 0 : i32
    %c0_i32_1 = arith.constant 0 : i32
    return %c0_i32, %c0_i32_0 : i32, i32
  }
  func.func @transform_9(%arg0: i32) -> (i32, i32) {
    %c0_i32 = arith.constant 0 : i32
    %c0_i32_0 = arith.constant 0 : i32
    return %arg0, %c0_i32 : i32, i32
  }
  func.func @transform_10(%arg0: i32) -> (i32, i32) {
    %c0_i32 = arith.constant 0 : i32
    %c0_i32_0 = arith.constant 0 : i32
    return %arg0, %c0_i32 : i32, i32
  }
}

</mosaic_0001>

<llo_original>
// kernel: tpu_custom_call.1
$region0: #{tpu_custom_call.1}
  #allocation0 [shape = 'u32[]', space=smem, size = 0x4, offset = 0x4, fixed_abs, tag = 'smem constant byte address 0x4 - core index']
  #allocation1 [shape = 'u32[144,128]{1,0:T(1,128)}', space=vmem, size = 0x12000, scoped, tag = 'internal scratch']
  #allocation2 [shape = 'f32[256,256]{1,0:T(8,128)}', space=vmem, size = 0x40000, scoped, tag = 'scratch operand']
  %s0 = inlined_call_operand.vmem [shape: f32[512,150], index: 0, kind: input, shape index: {}]
  %s1 = inlined_call_operand.vmem [shape: f32[256,128], index: 1, kind: input, shape index: {}]
  %s2 = inlined_call_operand.vmem [shape: f32[1,128], index: 2, kind: input, shape index: {}]
  %s3 = inlined_call_operand.vmem [shape: f32[128,128], index: 3, kind: input, shape index: {}]
  %s4 = inlined_call_operand.vmem [shape: f32[1,128], index: 4, kind: input, shape index: {}]
  %s5 = inlined_call_operand.vmem [shape: f32[128,128], index: 5, kind: input, shape index: {}]
  %s6 = inlined_call_operand.vmem [shape: f32[1,128], index: 6, kind: input, shape index: {}]
  %s7 = inlined_call_operand.vmem [shape: f32[128,128], index: 7, kind: input, shape index: {}]
  %s8 = inlined_call_operand.vmem [shape: f32[1,128], index: 8, kind: input, shape index: {}]
  %s9 = inlined_call_operand.vmem [shape: f32[512,128], index: 9, kind: input, shape index: {}]
  %s10 = inlined_call_operand.hbm [shape: f32[512,128], index: 10, kind: output, shape index: {}]
  %s11 = sld [smem:[#allocation0]]
  $region73: #{tpu_custom_call.1} parent=0
    _
  %s13 = ssub.s32 1, %s11
  %s14 = scalar_select 0, %s13, %s11
  $region1: #{tpu_custom_call.1} parent=0
    #allocation3 [shape = 'u8[262144]{0}', space=vmem, size = 0x40000, scoped, tag = 'output window, operand 0']
    #allocation4 [shape = 's32[2]{0}', space=sflag, size = 0x8, scoped, tag = 'scoped memory for tpu_custom_call.1']
    %15 = vsyncpa [#allocation4], 0
    %s16 = scalar_lea.sflag [#allocation4], 1
    %17 = vsyncpa %s16, 0
    loop: start=0, step=1, limit=4
    $region2: #{tpu_custom_call.1} parent=1 // loop_pre_header
      _
    $region3: #{tpu_custom_call.1} parent=1 // loop_header
      %s19 = sphi 0, %s23
      %p20 = scmp.ge.s32.totalorder %s19, 4
      %s29 = sphi 0, %s31
      %s32 = sphi 0, %s29
      %s33 = sphi 0, %s32
      %s49 = sphi 0, %s33
      %s53 = sphi 0, %s53
      %s55 = sphi 0, %s53
      %s56 = sphi 0, %s55
      %s70 = sphi 0, %s56
      %s74 = sphi 0, %s74
      %s76 = sphi 0, %s74
      %s77 = sphi 0, %s76
      %s91 = sphi 0, %s77
      %s95 = sphi 0, %s95
      %s97 = sphi 0, %s95
      %s98 = sphi 0, %s97
      %s112 = sphi 0, %s98
      %s116 = sphi 0, %s116
      %s118 = sphi 0, %s116
      %s119 = sphi 0, %s118
      %s133 = sphi 0, %s119
      %s137 = sphi 0, %s137
      %s139 = sphi 0, %s137
      %s140 = sphi 0, %s139
      %s154 = sphi 0, %s140
      %s158 = sphi 0, %s158
      %s160 = sphi 0, %s158
      %s161 = sphi 0, %s160
      %s175 = sphi 0, %s161
      %s179 = sphi 0, %s179
      %s181 = sphi 0, %s179
      %s182 = sphi 0, %s181
      %s196 = sphi 0, %s182
      %s200 = sphi 0, %s200
      %s202 = sphi 0, %s200
      %s203 = sphi 0, %s202
      %s217 = sphi 0, %s203
      %s223 = sphi 0, %s225
      %s226 = sphi 0, %s223
      %s227 = sphi 0, %s226
      %s243 = sphi 0, %s227
      %s249 = sphi 0, %s251
      %s252 = sphi 0, %s249
      %s253 = sphi 0, %s252
      %s269 = sphi 0, %s253
    $region4: #{tpu_custom_call.1} parent=1 // loop_header_branch
      %22 = sbr.rel (%p20) target = $region8
    $region5: #{tpu_custom_call.1} parent=1 // loop_body
      %s24 = ssub.s32 %s19, 1
      %s25 = ssub.s32 %s19, 2
      %s26 = sadd.s32 %s19, 1
      %s27 = ssub.s32 %s19, %s26
      %p28 = scmp.eq.s32.totalorder %s27, 0
      %s30 = sadd.s32 %s29, 1
      %s31 = scalar_select %p28, %s29, %s30
      %p34 = pneg %p28
      %p35 = scmp.eq.s32.totalorder %s19, 1
      %p36 = por %p34, %p35
      %p37 = scmp.ne.s32.totalorder %s29, %s32
      %p38 = scmp.eq.s32.totalorder %s19, 0
      %p39 = por %p37, %p38
      %p40 = scmp.ne.s32.totalorder %s29, %s32
      %p41 = scmp.eq.s32.totalorder %s24, 1
      %p42 = por %p40, %p41
      %p43 = scmp.ne.s32.totalorder %s32, %s33
      %p44 = scmp.eq.s32.totalorder %s24, 0
      %p45 = por %p43, %p44
      %p46 = scmp.ne.s32.totalorder %s32, %s33
      %p47 = scmp.eq.s32.totalorder %s25, 1
      %p48 = por %p46, %p47
      %p50 = scmp.ne.s32.totalorder %s33, %s49
      %p51 = scmp.eq.s32.totalorder %s25, 0
      %p52 = por %p50, %p51
      %s54 = sadd.s32 %s53, 1
      %p57 = scmp.eq.s32.totalorder %s19, 1
      %p58 = scmp.ne.s32.totalorder %s53, %s55
      %p59 = scmp.eq.s32.totalorder %s19, 0
      %p60 = por %p58, %p59
      %p61 = scmp.ne.s32.totalorder %s53, %s55
      %p62 = scmp.eq.s32.totalorder %s24, 1
      %p63 = por %p61, %p62
      %p64 = scmp.ne.s32.totalorder %s55, %s56
      %p65 = scmp.eq.s32.totalorder %s24, 0
      %p66 = por %p64, %p65
      %p67 = scmp.ne.s32.totalorder %s55, %s56
      %p68 = scmp.eq.s32.totalorder %s25, 1
      %p69 = por %p67, %p68
      %p71 = scmp.ne.s32.totalorder %s56, %s70
      %p72 = scmp.eq.s32.totalorder %s25, 0
      %p73 = por %p71, %p72
      %s75 = sadd.s32 %s74, 1
      %p78 = scmp.eq.s32.totalorder %s19, 1
      %p79 = scmp.ne.s32.totalorder %s74, %s76
      %p80 = scmp.eq.s32.totalorder %s19, 0
      %p81 = por %p79, %p80
      %p82 = scmp.ne.s32.totalorder %s74, %s76
      %p83 = scmp.eq.s32.totalorder %s24, 1
      %p84 = por %p82, %p83
      %p85 = scmp.ne.s32.totalorder %s76, %s77
      %p86 = scmp.eq.s32.totalorder %s24, 0
      %p87 = por %p85, %p86
      %p88 = scmp.ne.s32.totalorder %s76, %s77
      %p89 = scmp.eq.s32.totalorder %s25, 1
      %p90 = por %p88, %p89
      %p92 = scmp.ne.s32.totalorder %s77, %s91
      %p93 = scmp.eq.s32.totalorder %s25, 0
      %p94 = por %p92, %p93
      %s96 = sadd.s32 %s95, 1
      %p99 = scmp.eq.s32.totalorder %s19, 1
      %p100 = scmp.ne.s32.totalorder %s95, %s97
      %p101 = scmp.eq.s32.totalorder %s19, 0
      %p102 = por %p100, %p101
      %p103 = scmp.ne.s32.totalorder %s95, %s97
      %p104 = scmp.eq.s32.totalorder %s24, 1
      %p105 = por %p103, %p104
      %p106 = scmp.ne.s32.totalorder %s97, %s98
      %p107 = scmp.eq.s32.totalorder %s24, 0
      %p108 = por %p106, %p107
      %p109 = scmp.ne.s32.totalorder %s97, %s98
      %p110 = scmp.eq.s32.totalorder %s25, 1
      %p111 = por %p109, %p110
      %p113 = scmp.ne.s32.totalorder %s98, %s112
      %p114 = scmp.eq.s32.totalorder %s25, 0
      %p115 = por %p113, %p114
      %s117 = sadd.s32 %s116, 1
      %p120 = scmp.eq.s32.totalorder %s19, 1
      %p121 = scmp.ne.s32.totalorder %s116, %s118
      %p122 = scmp.eq.s32.totalorder %s19, 0
      %p123 = por %p121, %p122
      %p124 = scmp.ne.s32.totalorder %s116, %s118
      %p125 = scmp.eq.s32.totalorder %s24, 1
      %p126 = por %p124, %p125
      %p127 = scmp.ne.s32.totalorder %s118, %s119
      %p128 = scmp.eq.s32.totalorder %s24, 0
      %p129 = por %p127, %p128
      %p130 = scmp.ne.s32.totalorder %s118, %s119
      %p131 = scmp.eq.s32.totalorder %s25, 1
      %p132 = por %p130, %p131
      %p134 = scmp.ne.s32.totalorder %s119, %s133
      %p135 = scmp.eq.s32.totalorder %s25, 0
      %p136 = por %p134, %p135
      %s138 = sadd.s32 %s137, 1
      %p141 = scmp.eq.s32.totalorder %s19, 1
      %p142 = scmp.ne.s32.totalorder %s137, %s139
      %p143 = scmp.eq.s32.totalorder %s19, 0
      %p144 = por %p142, %p143
      %p145 = scmp.ne.s32.totalorder %s137, %s139
      %p146 = scmp.eq.s32.totalorder %s24, 1
      %p147 = por %p145, %p146
      %p148 = scmp.ne.s32.totalorder %s139, %s140
      %p149 = scmp.eq.s32.totalorder %s24, 0
      %p150 = por %p148, %p149
      %p151 = scmp.ne.s32.totalorder %s139, %s140
      %p152 = scmp.eq.s32.totalorder %s25, 1
      %p153 = por %p151, %p152
      %p155 = scmp.ne.s32.totalorder %s140, %s154
      %p156 = scmp.eq.s32.totalorder %s25, 0
      %p157 = por %p155, %p156
      %s159 = sadd.s32 %s158, 1
      %p162 = scmp.eq.s32.totalorder %s19, 1
      %p163 = scmp.ne.s32.totalorder %s158, %s160
      %p164 = scmp.eq.s32.totalorder %s19, 0
      %p165 = por %p163, %p164
      %p166 = scmp.ne.s32.totalorder %s158, %s160
      %p167 = scmp.eq.s32.totalorder %s24, 1
      %p168 = por %p166, %p167
      %p169 = scmp.ne.s32.totalorder %s160, %s161
      %p170 = scmp.eq.s32.totalorder %s24, 0
      %p171 = por %p169, %p170
      %p172 = scmp.ne.s32.totalorder %s160, %s161
      %p173 = scmp.eq.s32.totalorder %s25, 1
      %p174 = por %p172, %p173
      %p176 = scmp.ne.s32.totalorder %s161, %s175
      %p177 = scmp.eq.s32.totalorder %s25, 0
      %p178 = por %p176, %p177
      %s180 = sadd.s32 %s179, 1
      %p183 = scmp.eq.s32.totalorder %s19, 1
      %p184 = scmp.ne.s32.totalorder %s179, %s181
      %p185 = scmp.eq.s32.totalorder %s19, 0
      %p186 = por %p184, %p185
      %p187 = scmp.ne.s32.totalorder %s179, %s181
      %p188 = scmp.eq.s32.totalorder %s24, 1
      %p189 = por %p187, %p188
      %p190 = scmp.ne.s32.totalorder %s181, %s182
      %p191 = scmp.eq.s32.totalorder %s24, 0
      %p192 = por %p190, %p191
      %p193 = scmp.ne.s32.totalorder %s181, %s182
      %p194 = scmp.eq.s32.totalorder %s25, 1
      %p195 = por %p193, %p194
      %p197 = scmp.ne.s32.totalorder %s182, %s196
      %p198 = scmp.eq.s32.totalorder %s25, 0
      %p199 = por %p197, %p198
      %s201 = sadd.s32 %s200, 1
      %p204 = scmp.eq.s32.totalorder %s19, 1
      %p205 = scmp.ne.s32.totalorder %s200, %s202
      %p206 = scmp.eq.s32.totalorder %s19, 0
      %p207 = por %p205, %p206
      %p208 = scmp.ne.s32.totalorder %s200, %s202
      %p209 = scmp.eq.s32.totalorder %s24, 1
      %p210 = por %p208, %p209
      %p211 = scmp.ne.s32.totalorder %s202, %s203
      %p212 = scmp.eq.s32.totalorder %s24, 0
      %p213 = por %p211, %p212
      %p214 = scmp.ne.s32.totalorder %s202, %s203
      %p215 = scmp.eq.s32.totalorder %s25, 1
      %p216 = por %p214, %p215
      %p218 = scmp.ne.s32.totalorder %s203, %s217
      %p219 = scmp.eq.s32.totalorder %s25, 0
      %p220 = por %p218, %p219
      %s221 = ssub.s32 %s19, %s26
      %p222 = scmp.eq.s32.totalorder %s221, 0
      %s224 = sadd.s32 %s223, 1
      %s225 = scalar_select %p222, %s223, %s224
      %p228 = pneg %p222
      %p229 = scmp.eq.s32.totalorder %s19, 1
      %p230 = por %p228, %p229
      %p231 = scmp.ne.s32.totalorder %s223, %s226
      %p232 = scmp.eq.s32.totalorder %s19, 0
      %p233 = por %p231, %p232
      %p234 = scmp.ne.s32.totalorder %s223, %s226
      %p235 = scmp.eq.s32.totalorder %s24, 1
      %p236 = por %p234, %p235
      %p237 = scmp.ne.s32.totalorder %s226, %s227
      %p238 = scmp.eq.s32.totalorder %s24, 0
      %p239 = por %p237, %p238
      %p240 = scmp.ne.s32.totalorder %s226, %s227
      %p241 = scmp.eq.s32.totalorder %s25, 1
      %p242 = por %p240, %p241
      %p244 = scmp.ne.s32.totalorder %s227, %s243
      %p245 = scmp.eq.s32.totalorder %s25, 0
      %p246 = por %p244, %p245
      %s247 = ssub.s32 %s19, %s26
      %p248 = scmp.eq.s32.totalorder %s247, 0
      %s250 = sadd.s32 %s249, 1
      %s251 = scalar_select %p248, %s249, %s250
      %p254 = pneg %p248
      %p255 = scmp.eq.s32.totalorder %s19, 1
      %p256 = por %p254, %p255
      %p257 = scmp.ne.s32.totalorder %s249, %s252
      %p258 = scmp.eq.s32.totalorder %s19, 0
      %p259 = por %p257, %p258
      %p260 = scmp.ne.s32.totalorder %s249, %s252
      %p261 = scmp.eq.s32.totalorder %s24, 1
      %p262 = por %p260, %p261
      %p263 = scmp.ne.s32.totalorder %s252, %s253
      %p264 = scmp.eq.s32.totalorder %s24, 0
      %p265 = por %p263, %p264
      %p266 = scmp.ne.s32.totalorder %s252, %s253
      %p267 = scmp.eq.s32.totalorder %s25, 1
      %p268 = por %p266, %p267
      %p270 = scmp.ne.s32.totalorder %s253, %s269
      %p271 = scmp.eq.s32.totalorder %s25, 0
      %p272 = por %p270, %p271
      %p273 = scmp.le.s32.totalorder 1, %s19
      %p274 = scmp.lt.s32.totalorder %s19, 3
      %p275 = pnand %p273, %p274
      %p276 = pneg %p275
      // Predicated region
      $region9: #{tpu_custom_call.1} parent=5 // pred_check
        _
      $region10: #{tpu_custom_call.1} parent=5 // pred_check_branch
        %278 = sbr.rel (%p275) target = $region12
      $region11: #{tpu_custom_call.1} parent=5 // pred_region
        %s279 = ssub.s32 %s19, 1
        // Predicated region
        $region13: #{tpu_custom_call.1} parent=11 // pred_check
          %p280 = pneg %p66
        $region14: #{tpu_custom_call.1} parent=11 // pred_check_branch
          %282 = sbr.rel (%p280) target = $region16
        $region15: #{tpu_custom_call.1} parent=11 // pred_region
          _
        $region16: #{tpu_custom_call.1} parent=11 // pred_fallthru
          _
        // Predicated region
        $region17: #{tpu_custom_call.1} parent=11 // pred_check
          %p283 = pneg %p87
        $region18: #{tpu_custom_call.1} parent=11 // pred_check_branch
          %285 = sbr.rel (%p283) target = $region20
        $region19: #{tpu_custom_call.1} parent=11 // pred_region
          _
        $region20: #{tpu_custom_call.1} parent=11 // pred_fallthru
          _
        // Predicated region
        $region21: #{tpu_custom_call.1} parent=11 // pred_check
          %p286 = pneg %p108
        $region22: #{tpu_custom_call.1} parent=11 // pred_check_branch
          %288 = sbr.rel (%p286) target = $region24
        $region23: #{tpu_custom_call.1} parent=11 // pred_region
          _
        $region24: #{tpu_custom_call.1} parent=11 // pred_fallthru
          _
        // Predicated region
        $region25: #{tpu_custom_call.1} parent=11 // pred_check
          %p289 = pneg %p129
        $region26: #{tpu_custom_call.1} parent=11 // pred_check_branch
          %291 = sbr.rel (%p289) target = $region28
        $region27: #{tpu_custom_call.1} parent=11 // pred_region
          _
        $region28: #{tpu_custom_call.1} parent=11 // pred_fallthru
          _
        // Predicated region
        $region29: #{tpu_custom_call.1} parent=11 // pred_check
          %p292 = pneg %p150
        $region30: #{tpu_custom_call.1} parent=11 // pred_check_branch
          %294 = sbr.rel (%p292) target = $region32
        $region31: #{tpu_custom_call.1} parent=11 // pred_region
          _
        $region32: #{tpu_custom_call.1} parent=11 // pred_fallthru
          _
        // Predicated region
        $region33: #{tpu_custom_call.1} parent=11 // pred_check
          %p295 = pneg %p171
        $region34: #{tpu_custom_call.1} parent=11 // pred_check_branch
          %297 = sbr.rel (%p295) target = $region36
        $region35: #{tpu_custom_call.1} parent=11 // pred_region
          _
        $region36: #{tpu_custom_call.1} parent=11 // pred_fallthru
          _
        // Predicated region
        $region37: #{tpu_custom_call.1} parent=11 // pred_check
          %p298 = pneg %p192
        $region38: #{tpu_custom_call.1} parent=11 // pred_check_branch
          %300 = sbr.rel (%p298) target = $region40
        $region39: #{tpu_custom_call.1} parent=11 // pred_region
          _
        $region40: #{tpu_custom_call.1} parent=11 // pred_fallthru
          _
        // Predicated region
        $region41: #{tpu_custom_call.1} parent=11 // pred_check
          %p301 = pneg %p213
        $region42: #{tpu_custom_call.1} parent=11 // pred_check_branch
          %303 = sbr.rel (%p301) target = $region44
        $region43: #{tpu_custom_call.1} parent=11 // pred_region
          _
        $region44: #{tpu_custom_call.1} parent=11 // pred_fallthru
          _
      $region12: #{tpu_custom_call.1} parent=5 // pred_fallthru
        _
      %p304 = scmp.lt.s32.totalorder %s19, 2
      // Predicated region
      $region45: #{tpu_custom_call.1} parent=5 // pred_check
        %p305 = pneg %p304
      $region46: #{tpu_custom_call.1} parent=5 // pred_check_branch
        %307 = sbr.rel (%p305) target = $region48
      $region47: #{tpu_custom_call.1} parent=5 // pred_region
        // Predicated region
        $region49: #{tpu_custom_call.1} parent=47 // pred_check
          %p308 = pneg %p39
        $region50: #{tpu_custom_call.1} parent=47 // pred_check_branch
          %310 = sbr.rel (%p308) target = $region52
        $region51: #{tpu_custom_call.1} parent=47 // pred_region
          %s311 = smul.u32 32, %s19
          %p312 = scmp.lt.s32.totalorder %s311, 63
          %s313 = scalar_select %p312, %s311, 63
          %s314 = smul.addr %s313, 2
          %s315 = smul.addr %s314, 8
          %s316 = scalar_lea.vmem %s0, %s315
          %s317 = smul.u32 32, %s19
        $region52: #{tpu_custom_call.1} parent=47 // pred_fallthru
          _
        // Predicated region
        $region53: #{tpu_custom_call.1} parent=47 // pred_check
          %p318 = pneg %p233
        $region54: #{tpu_custom_call.1} parent=47 // pred_check_branch
          %320 = sbr.rel (%p318) target = $region56
        $region55: #{tpu_custom_call.1} parent=47 // pred_region
          %s321 = smul.u32 32, %s19
          %p322 = scmp.lt.s32.totalorder %s321, 63
          %s323 = scalar_select %p322, %s321, 63
          %s324 = smul.addr %s323, 8
          %s325 = scalar_lea.vmem %s9, %s324
          %s326 = smul.u32 32, %s19
        $region56: #{tpu_custom_call.1} parent=47 // pred_fallthru
          _
      $region48: #{tpu_custom_call.1} parent=5 // pred_fallthru
        _
      %p327 = scmp.le.s32.totalorder 1, %s19
      %p328 = scmp.lt.s32.totalorder %s19, 3
      %p329 = pnand %p327, %p328
      %p330 = pneg %p329
      // Predicated region
      $region57: #{tpu_custom_call.1} parent=5 // pred_check
        _
      $region58: #{tpu_custom_call.1} parent=5 // pred_check_branch
        %332 = sbr.rel (%p329) target = $region60
      $region59: #{tpu_custom_call.1} parent=5 // pred_region
        %s333 = ssub.s32 %s19, 1
        %s334 = smul.u32 32, %s24
        %p335 = scmp.lt.s32.totalorder %s334, 63
        %s336 = scalar_select %p335, %s334, 63
        %s337 = smul.addr %s336, 2
        %s338 = smul.addr %s337, 8
        %s339 = scalar_lea.vmem %s0, %s338
        %p340 = pneg %p45
        %p341 = pneg %p42
        %p342 = pneg %p66
        %p343 = pneg %p63
        %p344 = pneg %p87
        %p345 = pneg %p84
        %p346 = pneg %p108
        %p347 = pneg %p105
        %p348 = pneg %p129
        %p349 = pneg %p126
        %p350 = pneg %p150
        %p351 = pneg %p147
        %p352 = pneg %p171
        %p353 = pneg %p168
        %p354 = pneg %p192
        %p355 = pneg %p189
        %p356 = pneg %p213
        %p357 = pneg %p210
        %s358 = smul.u32 32, %s24
        %p359 = scmp.lt.s32.totalorder %s358, 63
        %s360 = scalar_select %p359, %s358, 63
        %s361 = smul.addr %s360, 8
        %s362 = scalar_lea.vmem %s9, %s361
        %p363 = pneg %p239
        %p364 = pneg %p236
        %p365 = pneg %p265
        %p366 = pneg %p262
        %s367 = sand.u32 %s252, 1
        %s368 = scalar_lea.sflag [#allocation4], %s367
        %s369 = sand.u32 %s252, 1
        %s370 = smul.addr %s369, 256
        %s371 = scalar_lea.vmem [#allocation3], %s370
        %s372 = smul.u32 32, %s24
        %p373 = scmp.lt.s32.totalorder %s372, 63
        %s374 = scalar_select %p373, %s372, 63
        %s375 = smul.addr %s374, 2
        %s376 = smul.addr %s375, 8
        %s377 = scalar_lea.vmem %s0, %s376
        %s378 = smul.u32 32, %s24
        %s379 = smul.u32 32, %s24
        %p380 = scmp.lt.s32.totalorder %s379, 63
        %s381 = scalar_select %p380, %s379, 63
        %s382 = smul.addr %s381, 8
        %s383 = scalar_lea.vmem %s9, %s382
        %s384 = smul.u32 32, %s24
        %s385 = smul.u32 32, %s24
        %386 = vst [vmem:[#allocation2] sm:$0xff] 0.0
        %387 = vst [vmem:[#allocation2 + $0x8] sm:$0xff] 0.0
        %388 = vst [vmem:[#allocation2 + $0x10] sm:$0xff] 0.0
        %389 = vst [vmem:[#allocation2 + $0x18] sm:$0xff] 0.0
        %390 = vst [vmem:[#allocation2 + $0x20] sm:$0xff] 0.0
        %391 = vst [vmem:[#allocation2 + $0x28] sm:$0xff] 0.0
        %392 = vst [vmem:[#allocation2 + $0x30] sm:$0xff] 0.0
        %393 = vst [vmem:[#allocation2 + $0x38] sm:$0xff] 0.0
        %394 = vst [vmem:[#allocation2 + $0x40] sm:$0xff] 0.0
        %395 = vst [vmem:[#allocation2 + $0x48] sm:$0xff] 0.0
        %396 = vst [vmem:[#allocation2 + $0x50] sm:$0xff] 0.0
        %397 = vst [vmem:[#allocation2 + $0x58] sm:$0xff] 0.0
        %398 = vst [vmem:[#allocation2 + $0x60] sm:$0xff] 0.0
        %399 = vst [vmem:[#allocation2 + $0x68] sm:$0xff] 0.0
        %400 = vst [vmem:[#allocation2 + $0x70] sm:$0xff] 0.0
        %401 = vst [vmem:[#allocation2 + $0x78] sm:$0xff] 0.0
        %402 = vst [vmem:[#allocation2 + $0x80] sm:$0xff] 0.0
        %403 = vst [vmem:[#allocation2 + $0x88] sm:$0xff] 0.0
        %404 = vst [vmem:[#allocation2 + $0x90] sm:$0xff] 0.0
        %405 = vst [vmem:[#allocation2 + $0x98] sm:$0xff] 0.0
        %406 = vst [vmem:[#allocation2 + $0xa0] sm:$0xff] 0.0
        %407 = vst [vmem:[#allocation2 + $0xa8] sm:$0xff] 0.0
        %408 = vst [vmem:[#allocation2 + $0xb0] sm:$0xff] 0.0
        %409 = vst [vmem:[#allocation2 + $0xb8] sm:$0xff] 0.0
        %410 = vst [vmem:[#allocation2 + $0xc0] sm:$0xff] 0.0
        %411 = vst [vmem:[#allocation2 + $0xc8] sm:$0xff] 0.0
        %412 = vst [vmem:[#allocation2 + $0xd0] sm:$0xff] 0.0
        %413 = vst [vmem:[#allocation2 + $0xd8] sm:$0xff] 0.0
        %414 = vst [vmem:[#allocation2 + $0xe0] sm:$0xff] 0.0
        %415 = vst [vmem:[#allocation2 + $0xe8] sm:$0xff] 0.0
        %416 = vst [vmem:[#allocation2 + $0xf0] sm:$0xff] 0.0
        %417 = vst [vmem:[#allocation2 + $0xf8] sm:$0xff] 0.0
        %418 = vst [vmem:[#allocation2 + $0x100] sm:$0xff] 0.0
        %419 = vst [vmem:[#allocation2 + $0x108] sm:$0xff] 0.0
        %420 = vst [vmem:[#allocation2 + $0x110] sm:$0xff] 0.0
        %421 = vst [vmem:[#allocation2 + $0x118] sm:$0xff] 0.0
        %422 = vst [vmem:[#allocation2 + $0x120] sm:$0xff] 0.0
        %423 = vst [vmem:[#allocation2 + $0x128] sm:$0xff] 0.0
        %424 = vst [vmem:[#allocation2 + $0x130] sm:$0xff] 0.0
        %425 = vst [vmem:[#allocation2 + $0x138] sm:$0xff] 0.0
        %426 = vst [vmem:[#allocation2 + $0x140] sm:$0xff] 0.0
        %427 = vst [vmem:[#allocation2 + $0x148] sm:$0xff] 0.0
        %428 = vst [vmem:[#allocation2 + $0x150] sm:$0xff] 0.0
        %429 = vst [vmem:[#allocation2 + $0x158] sm:$0xff] 0.0
        %430 = vst [vmem:[#allocation2 + $0x160] sm:$0xff] 0.0
        %431 = vst [vmem:[#allocation2 + $0x168] sm:$0xff] 0.0
        %432 = vst [vmem:[#allocation2 + $0x170] sm:$0xff] 0.0
        %433 = vst [vmem:[#allocation2 + $0x178] sm:$0xff] 0.0
        %434 = vst [vmem:[#allocation2 + $0x180] sm:$0xff] 0.0
        %435 = vst [vmem:[#allocation2 + $0x188] sm:$0xff] 0.0
        %436 = vst [vmem:[#allocation2 + $0x190] sm:$0xff] 0.0
        %437 = vst [vmem:[#allocation2 + $0x198] sm:$0xff] 0.0
        %438 = vst [vmem:[#allocation2 + $0x1a0] sm:$0xff] 0.0
        %439 = vst [vmem:[#allocation2 + $0x1a8] sm:$0xff] 0.0
        %440 = vst [vmem:[#allocation2 + $0x1b0] sm:$0xff] 0.0
        %441 = vst [vmem:[#allocation2 + $0x1b8] sm:$0xff] 0.0
        %442 = vst [vmem:[#allocation2 + $0x1c0] sm:$0xff] 0.0
        %443 = vst [vmem:[#allocation2 + $0x1c8] sm:$0xff] 0.0
        %444 = vst [vmem:[#allocation2 + $0x1d0] sm:$0xff] 0.0
        %445 = vst [vmem:[#allocation2 + $0x1d8] sm:$0xff] 0.0
        %446 = vst [vmem:[#allocation2 + $0x1e0] sm:$0xff] 0.0
        %447 = vst [vmem:[#allocation2 + $0x1e8] sm:$0xff] 0.0
        %448 = vst [vmem:[#allocation2 + $0x1f0] sm:$0xff] 0.0
        %449 = vst [vmem:[#allocation2 + $0x1f8] sm:$0xff] 0.0
        %v450 = vld [vmem:[%s377] sm:$0xff]
        %v451 = vld [vmem:[%s377 + $0x8] sm:$0xff]
        %v452 = vld [vmem:[%s377 + $0x10] sm:$0xff]
        %v453 = vld [vmem:[%s377 + $0x18] sm:$0xff]
        %v454 = vld [vmem:[%s377 + $0x20] sm:$0xff]
        %v455 = vld [vmem:[%s377 + $0x28] sm:$0xff]
        %v456 = vld [vmem:[%s377 + $0x30] sm:$0xff]
        %v457 = vld [vmem:[%s377 + $0x38] sm:$0xff]
        %v458 = vld [vmem:[%s377 + $0x40] sm:$0xff]
        %v459 = vld [vmem:[%s377 + $0x48] sm:$0xff]
        %v460 = vld [vmem:[%s377 + $0x50] sm:$0xff]
        %v461 = vld [vmem:[%s377 + $0x58] sm:$0xff]
        %v462 = vld [vmem:[%s377 + $0x60] sm:$0xff]
        %v463 = vld [vmem:[%s377 + $0x68] sm:$0xff]
        %v464 = vld [vmem:[%s377 + $0x70] sm:$0xff]
        %v465 = vld [vmem:[%s377 + $0x78] sm:$0xff]
        %v466 = vld [vmem:[%s377 + $0x80] sm:$0xff]
        %v467 = vld [vmem:[%s377 + $0x88] sm:$0xff]
        %v468 = vld [vmem:[%s377 + $0x90] sm:$0xff]
        %v469 = vld [vmem:[%s377 + $0x98] sm:$0xff]
        %v470 = vld [vmem:[%s377 + $0xa0] sm:$0xff]
        %v471 = vld [vmem:[%s377 + $0xa8] sm:$0xff]
        %v472 = vld [vmem:[%s377 + $0xb0] sm:$0xff]
        %v473 = vld [vmem:[%s377 + $0xb8] sm:$0xff]
        %v474 = vld [vmem:[%s377 + $0xc0] sm:$0xff]
        %v475 = vld [vmem:[%s377 + $0xc8] sm:$0xff]
        %v476 = vld [vmem:[%s377 + $0xd0] sm:$0xff]
        %v477 = vld [vmem:[%s377 + $0xd8] sm:$0xff]
        %v478 = vld [vmem:[%s377 + $0xe0] sm:$0xff]
        %v479 = vld [vmem:[%s377 + $0xe8] sm:$0xff]
        %v480 = vld [vmem:[%s377 + $0xf0] sm:$0xff]
        %v481 = vld [vmem:[%s377 + $0xf8] sm:$0xff]
        %v482 = vld [vmem:[%s377 + $0x100] sm:$0xff]
        %v483 = vld [vmem:[%s377 + $0x108] sm:$0xff]
        %v484 = vld [vmem:[%s377 + $0x110] sm:$0xff]
        %v485 = vld [vmem:[%s377 + $0x118] sm:$0xff]
        %v486 = vld [vmem:[%s377 + $0x120] sm:$0xff]
        %v487 = vld [vmem:[%s377 + $0x128] sm:$0xff]
        %v488 = vld [vmem:[%s377 + $0x130] sm:$0xff]
        %v489 = vld [vmem:[%s377 + $0x138] sm:$0xff]
        %v490 = vld [vmem:[%s377 + $0x140] sm:$0xff]
        %v491 = vld [vmem:[%s377 + $0x148] sm:$0xff]
        %v492 = vld [vmem:[%s377 + $0x150] sm:$0xff]
        %v493 = vld [vmem:[%s377 + $0x158] sm:$0xff]
        %v494 = vld [vmem:[%s377 + $0x160] sm:$0xff]
        %v495 = vld [vmem:[%s377 + $0x168] sm:$0xff]
        %v496 = vld [vmem:[%s377 + $0x170] sm:$0xff]
        %v497 = vld [vmem:[%s377 + $0x178] sm:$0xff]
        %v498 = vld [vmem:[%s377 + $0x180] sm:$0xff]
        %v499 = vld [vmem:[%s377 + $0x188] sm:$0xff]
        %v500 = vld [vmem:[%s377 + $0x190] sm:$0xff]
        %v501 = vld [vmem:[%s377 + $0x198] sm:$0xff]
        %v502 = vld [vmem:[%s377 + $0x1a0] sm:$0xff]
        %v503 = vld [vmem:[%s377 + $0x1a8] sm:$0xff]
        %v504 = vld [vmem:[%s377 + $0x1b0] sm:$0xff]
        %v505 = vld [vmem:[%s377 + $0x1b8] sm:$0xff]
        %v506 = vld [vmem:[%s377 + $0x1c0] sm:$0xff]
        %v507 = vld [vmem:[%s377 + $0x1c8] sm:$0xff]
        %v508 = vld [vmem:[%s377 + $0x1d0] sm:$0xff]
        %v509 = vld [vmem:[%s377 + $0x1d8] sm:$0xff]
        %v510 = vld [vmem:[%s377 + $0x1e0] sm:$0xff]
        %v511 = vld [vmem:[%s377 + $0x1e8] sm:$0xff]
        %v512 = vld [vmem:[%s377 + $0x1f0] sm:$0xff]
        %v513 = vld [vmem:[%s377 + $0x1f8] sm:$0xff]
        %514 = vst [vmem:[#allocation2] sm:$0xff] %v450
        %vm515 = vcmask 179200
        %516 = vst.msk [vmem:[#allocation2 + $0x8] sm:$0xff] %vm515, %v451
        %517 = vst [vmem:[#allocation2 + $0x10] sm:$0xff] %v452
        %518 = vst.msk [vmem:[#allocation2 + $0x18] sm:$0xff] %vm515, %v453
        %519 = vst [vmem:[#allocation2 + $0x20] sm:$0xff] %v454
        %520 = vst.msk [vmem:[#allocation2 + $0x28] sm:$0xff] %vm515, %v455
        %521 = vst [vmem:[#allocation2 + $0x30] sm:$0xff] %v456
        %522 = vst.msk [vmem:[#allocation2 + $0x38] sm:$0xff] %vm515, %v457
        %523 = vst [vmem:[#allocation2 + $0x40] sm:$0xff] %v458
        %524 = vst.msk [vmem:[#allocation2 + $0x48] sm:$0xff] %vm515, %v459
        %525 = vst [vmem:[#allocation2 + $0x50] sm:$0xff] %v460
        %526 = vst.msk [vmem:[#allocation2 + $0x58] sm:$0xff] %vm515, %v461
        %527 = vst [vmem:[#allocation2 + $0x60] sm:$0xff] %v462
        %528 = vst.msk [vmem:[#allocation2 + $0x68] sm:$0xff] %vm515, %v463
        %529 = vst [vmem:[#allocation2 + $0x70] sm:$0xff] %v464
        %530 = vst.msk [vmem:[#allocation2 + $0x78] sm:$0xff] %vm515, %v465
        %531 = vst [vmem:[#allocation2 + $0x80] sm:$0xff] %v466
        %532 = vst.msk [vmem:[#allocation2 + $0x88] sm:$0xff] %vm515, %v467
        %533 = vst [vmem:[#allocation2 + $0x90] sm:$0xff] %v468
        %534 = vst.msk [vmem:[#allocation2 + $0x98] sm:$0xff] %vm515, %v469
        %535 = vst [vmem:[#allocation2 + $0xa0] sm:$0xff] %v470
        %536 = vst.msk [vmem:[#allocation2 + $0xa8] sm:$0xff] %vm515, %v471
        %537 = vst [vmem:[#allocation2 + $0xb0] sm:$0xff] %v472
        %538 = vst.msk [vmem:[#allocation2 + $0xb8] sm:$0xff] %vm515, %v473
        %539 = vst [vmem:[#allocation2 + $0xc0] sm:$0xff] %v474
        %540 = vst.msk [vmem:[#allocation2 + $0xc8] sm:$0xff] %vm515, %v475
        %541 = vst [vmem:[#allocation2 + $0xd0] sm:$0xff] %v476
        %542 = vst.msk [vmem:[#allocation2 + $0xd8] sm:$0xff] %vm515, %v477
        %543 = vst [vmem:[#allocation2 + $0xe0] sm:$0xff] %v478
        %544 = vst.msk [vmem:[#allocation2 + $0xe8] sm:$0xff] %vm515, %v479
        %545 = vst [vmem:[#allocation2 + $0xf0] sm:$0xff] %v480
        %546 = vst.msk [vmem:[#allocation2 + $0xf8] sm:$0xff] %vm515, %v481
        %547 = vst [vmem:[#allocation2 + $0x100] sm:$0xff] %v482
        %548 = vst.msk [vmem:[#allocation2 + $0x108] sm:$0xff] %vm515, %v483
        %549 = vst [vmem:[#allocation2 + $0x110] sm:$0xff] %v484
        %550 = vst.msk [vmem:[#allocation2 + $0x118] sm:$0xff] %vm515, %v485
        %551 = vst [vmem:[#allocation2 + $0x120] sm:$0xff] %v486
        %552 = vst.msk [vmem:[#allocation2 + $0x128] sm:$0xff] %vm515, %v487
        %553 = vst [vmem:[#allocation2 + $0x130] sm:$0xff] %v488
        %554 = vst.msk [vmem:[#allocation2 + $0x138] sm:$0xff] %vm515, %v489
        %555 = vst [vmem:[#allocation2 + $0x140] sm:$0xff] %v490
        %556 = vst.msk [vmem:[#allocation2 + $0x148] sm:$0xff] %vm515, %v491
        %557 = vst [vmem:[#allocation2 + $0x150] sm:$0xff] %v492
        %558 = vst.msk [vmem:[#allocation2 + $0x158] sm:$0xff] %vm515, %v493
        %559 = vst [vmem:[#allocation2 + $0x160] sm:$0xff] %v494
        %560 = vst.msk [vmem:[#allocation2 + $0x168] sm:$0xff] %vm515, %v495
        %561 = vst [vmem:[#allocation2 + $0x170] sm:$0xff] %v496
        %562 = vst.msk [vmem:[#allocation2 + $0x178] sm:$0xff] %vm515, %v497
        %563 = vst [vmem:[#allocation2 + $0x180] sm:$0xff] %v498
        %564 = vst.msk [vmem:[#allocation2 + $0x188] sm:$0xff] %vm515, %v499
        %565 = vst [vmem:[#allocation2 + $0x190] sm:$0xff] %v500
        %566 = vst.msk [vmem:[#allocation2 + $0x198] sm:$0xff] %vm515, %v501
        %567 = vst [vmem:[#allocation2 + $0x1a0] sm:$0xff] %v502
        %568 = vst.msk [vmem:[#allocation2 + $0x1a8] sm:$0xff] %vm515, %v503
        %569 = vst [vmem:[#allocation2 + $0x1b0] sm:$0xff] %v504
        %570 = vst.msk [vmem:[#allocation2 + $0x1b8] sm:$0xff] %vm515, %v505
        %571 = vst [vmem:[#allocation2 + $0x1c0] sm:$0xff] %v506
        %572 = vst.msk [vmem:[#allocation2 + $0x1c8] sm:$0xff] %vm515, %v507
        %573 = vst [vmem:[#allocation2 + $0x1d0] sm:$0xff] %v508
        %574 = vst.msk [vmem:[#allocation2 + $0x1d8] sm:$0xff] %vm515, %v509
        %575 = vst [vmem:[#allocation2 + $0x1e0] sm:$0xff] %v510
        %576 = vst.msk [vmem:[#allocation2 + $0x1e8] sm:$0xff] %vm515, %v511
        %577 = vst [vmem:[#allocation2 + $0x1f0] sm:$0xff] %v512
        %578 = vst.msk [vmem:[#allocation2 + $0x1f8] sm:$0xff] %vm515, %v513
        %v579 = vld [vmem:[#allocation2] sm:$0xff]
        %v580 = vld [vmem:[#allocation2 + $0x8] sm:$0xff]
        %v581 = vld [vmem:[#allocation2 + $0x10] sm:$0xff]
        %v582 = vld [vmem:[#allocation2 + $0x18] sm:$0xff]
        %v583 = vld [vmem:[#allocation2 + $0x20] sm:$0xff]
        %v584 = vld [vmem:[#allocation2 + $0x28] sm:$0xff]
        %v585 = vld [vmem:[#allocation2 + $0x30] sm:$0xff]
        %v586 = vld [vmem:[#allocation2 + $0x38] sm:$0xff]
        %v587 = vld [vmem:[#allocation2 + $0x40] sm:$0xff]
        %v588 = vld [vmem:[#allocation2 + $0x48] sm:$0xff]
        %v589 = vld [vmem:[#allocation2 + $0x50] sm:$0xff]
        %v590 = vld [vmem:[#allocation2 + $0x58] sm:$0xff]
        %v591 = vld [vmem:[#allocation2 + $0x60] sm:$0xff]
        %v592 = vld [vmem:[#allocation2 + $0x68] sm:$0xff]
        %v593 = vld [vmem:[#allocation2 + $0x70] sm:$0xff]
        %v594 = vld [vmem:[#allocation2 + $0x78] sm:$0xff]
        %v595 = vld [vmem:[#allocation2 + $0x80] sm:$0xff]
        %v596 = vld [vmem:[#allocation2 + $0x88] sm:$0xff]
        %v597 = vld [vmem:[#allocation2 + $0x90] sm:$0xff]
        %v598 = vld [vmem:[#allocation2 + $0x98] sm:$0xff]
        %v599 = vld [vmem:[#allocation2 + $0xa0] sm:$0xff]
        %v600 = vld [vmem:[#allocation2 + $0xa8] sm:$0xff]
        %v601 = vld [vmem:[#allocation2 + $0xb0] sm:$0xff]
        %v602 = vld [vmem:[#allocation2 + $0xb8] sm:$0xff]
        %v603 = vld [vmem:[#allocation2 + $0xc0] sm:$0xff]
        %v604 = vld [vmem:[#allocation2 + $0xc8] sm:$0xff]
        %v605 = vld [vmem:[#allocation2 + $0xd0] sm:$0xff]
        %v606 = vld [vmem:[#allocation2 + $0xd8] sm:$0xff]
        %v607 = vld [vmem:[#allocation2 + $0xe0] sm:$0xff]
        %v608 = vld [vmem:[#allocation2 + $0xe8] sm:$0xff]
        %v609 = vld [vmem:[#allocation2 + $0xf0] sm:$0xff]
        %v610 = vld [vmem:[#allocation2 + $0xf8] sm:$0xff]
        %v611 = vld [vmem:[#allocation2 + $0x100] sm:$0xff]
        %v612 = vld [vmem:[#allocation2 + $0x108] sm:$0xff]
        %v613 = vld [vmem:[#allocation2 + $0x110] sm:$0xff]
        %v614 = vld [vmem:[#allocation2 + $0x118] sm:$0xff]
        %v615 = vld [vmem:[#allocation2 + $0x120] sm:$0xff]
        %v616 = vld [vmem:[#allocation2 + $0x128] sm:$0xff]
        %v617 = vld [vmem:[#allocation2 + $0x130] sm:$0xff]
        %v618 = vld [vmem:[#allocation2 + $0x138] sm:$0xff]
        %v619 = vld [vmem:[#allocation2 + $0x140] sm:$0xff]
        %v620 = vld [vmem:[#allocation2 + $0x148] sm:$0xff]
        %v621 = vld [vmem:[#allocation2 + $0x150] sm:$0xff]
        %v622 = vld [vmem:[#allocation2 + $0x158] sm:$0xff]
        %v623 = vld [vmem:[#allocation2 + $0x160] sm:$0xff]
        %v624 = vld [vmem:[#allocation2 + $0x168] sm:$0xff]
        %v625 = vld [vmem:[#allocation2 + $0x170] sm:$0xff]
        %v626 = vld [vmem:[#allocation2 + $0x178] sm:$0xff]
        %v627 = vld [vmem:[#allocation2 + $0x180] sm:$0xff]
        %v628 = vld [vmem:[#allocation2 + $0x188] sm:$0xff]
        %v629 = vld [vmem:[#allocation2 + $0x190] sm:$0xff]
        %v630 = vld [vmem:[#allocation2 + $0x198] sm:$0xff]
        %v631 = vld [vmem:[#allocation2 + $0x1a0] sm:$0xff]
        %v632 = vld [vmem:[#allocation2 + $0x1a8] sm:$0xff]
        %v633 = vld [vmem:[#allocation2 + $0x1b0] sm:$0xff]
        %v634 = vld [vmem:[#allocation2 + $0x1b8] sm:$0xff]
        %v635 = vld [vmem:[#allocation2 + $0x1c0] sm:$0xff]
        %v636 = vld [vmem:[#allocation2 + $0x1c8] sm:$0xff]
        %v637 = vld [vmem:[#allocation2 + $0x1d0] sm:$0xff]
        %v638 = vld [vmem:[#allocation2 + $0x1d8] sm:$0xff]
        %v639 = vld [vmem:[#allocation2 + $0x1e0] sm:$0xff]
        %v640 = vld [vmem:[#allocation2 + $0x1e8] sm:$0xff]
        %v641 = vld [vmem:[#allocation2 + $0x1f0] sm:$0xff]
        %v642 = vld [vmem:[#allocation2 + $0x1f8] sm:$0xff]
        %v643 = vld [vmem:[%s1] sm:$0xff]
        %v644 = vld [vmem:[%s1 + $0x8] sm:$0xff]
        %v645 = vld [vmem:[%s1 + $0x10] sm:$0xff]
        %v646 = vld [vmem:[%s1 + $0x18] sm:$0xff]
        %v647 = vld [vmem:[%s1 + $0x20] sm:$0xff]
        %v648 = vld [vmem:[%s1 + $0x28] sm:$0xff]
        %v649 = vld [vmem:[%s1 + $0x30] sm:$0xff]
        %v650 = vld [vmem:[%s1 + $0x38] sm:$0xff]
        %v651 = vld [vmem:[%s1 + $0x40] sm:$0xff]
        %v652 = vld [vmem:[%s1 + $0x48] sm:$0xff]
        %v653 = vld [vmem:[%s1 + $0x50] sm:$0xff]
        %v654 = vld [vmem:[%s1 + $0x58] sm:$0xff]
        %v655 = vld [vmem:[%s1 + $0x60] sm:$0xff]
        %v656 = vld [vmem:[%s1 + $0x68] sm:$0xff]
        %v657 = vld [vmem:[%s1 + $0x70] sm:$0xff]
        %v658 = vld [vmem:[%s1 + $0x78] sm:$0xff]
        %v659 = vld [vmem:[%s1 + $0x80] sm:$0xff]
        %v660 = vld [vmem:[%s1 + $0x88] sm:$0xff]
        %v661 = vld [vmem:[%s1 + $0x90] sm:$0xff]
        %v662 = vld [vmem:[%s1 + $0x98] sm:$0xff]
        %v663 = vld [vmem:[%s1 + $0xa0] sm:$0xff]
        %v664 = vld [vmem:[%s1 + $0xa8] sm:$0xff]
        %v665 = vld [vmem:[%s1 + $0xb0] sm:$0xff]
        %v666 = vld [vmem:[%s1 + $0xb8] sm:$0xff]
        %v667 = vld [vmem:[%s1 + $0xc0] sm:$0xff]
        %v668 = vld [vmem:[%s1 + $0xc8] sm:$0xff]
        %v669 = vld [vmem:[%s1 + $0xd0] sm:$0xff]
        %v670 = vld [vmem:[%s1 + $0xd8] sm:$0xff]
        %v671 = vld [vmem:[%s1 + $0xe0] sm:$0xff]
        %v672 = vld [vmem:[%s1 + $0xe8] sm:$0xff]
        %v673 = vld [vmem:[%s1 + $0xf0] sm:$0xff]
        %v674 = vld [vmem:[%s1 + $0xf8] sm:$0xff]
        %v675 = vld [vmem:[%s2] sm:$0x1]
        %v677 = vlaneseq
        %v678 = vshrl.u32 %v677, 7
        %v679 = vsub.s32 0, %v678
        %v680 = vrot.slane %v675, %v679
        %682 = vmatprep.subr.mxu0 0.0
        %683 = vmatpush1.msra.mxu0 %v658
        %684 = vmatprep.subr.mxu0 0.0
        %685 = vmatpush1.msra.mxu0 %v657
        %686 = vmatprep.subr.mxu0 0.0
        %687 = vmatpush1.msra.mxu0 %v656
        %688 = vmatprep.subr.mxu0 0.0
        %689 = vmatpush1.msra.mxu0 %v655
        %690 = vmatprep.subr.mxu0 0.0
        %691 = vmatpush1.msra.mxu0 %v654
        %692 = vmatprep.subr.mxu0 0.0
        %693 = vmatpush1.msra.mxu0 %v653
        %694 = vmatprep.subr.mxu0 0.0
        %695 = vmatpush1.msra.mxu0 %v652
        %696 = vmatprep.subr.mxu0 0.0
        %697 = vmatpush1.msra.mxu0 %v651
        %698 = vmatprep.subr.mxu0 0.0
        %699 = vmatpush1.msra.mxu0 %v650
        %700 = vmatprep.subr.mxu0 0.0
        %701 = vmatpush1.msra.mxu0 %v649
        %702 = vmatprep.subr.mxu0 0.0
        %703 = vmatpush1.msra.mxu0 %v648
        %704 = vmatprep.subr.mxu0 0.0
        %705 = vmatpush1.msra.mxu0 %v647
        %706 = vmatprep.subr.mxu0 0.0
        %707 = vmatpush1.msra.mxu0 %v646
        %708 = vmatprep.subr.mxu0 0.0
        %709 = vmatpush1.msra.mxu0 %v645
        %710 = vmatprep.subr.mxu0 0.0
        %711 = vmatpush1.msra.mxu0 %v644
        %712 = vmatprep.subr.mxu0 0.0
        %713 = vmatpush1.msra.mxu0 %v643
        %714 = vmatprep.subr.mxu0 0.0
        %715 = vmatpush2.msra.mxu0 %v674
        %716 = vmatprep.subr.mxu0 0.0
        %717 = vmatpush2.msra.mxu0 %v673
        %718 = vmatprep.subr.mxu0 0.0
        %719 = vmatpush2.msra.mxu0 %v672
        %720 = vmatprep.subr.mxu0 0.0
        %721 = vmatpush2.msra.mxu0 %v671
        %722 = vmatprep.subr.mxu0 0.0
        %723 = vmatpush2.msra.mxu0 %v670
        %724 = vmatprep.subr.mxu0 0.0
        %725 = vmatpush2.msra.mxu0 %v669
        %726 = vmatprep.subr.mxu0 0.0
        %727 = vmatpush2.msra.mxu0 %v668
        %728 = vmatprep.subr.mxu0 0.0
        %729 = vmatpush2.msra.mxu0 %v667
        %730 = vmatprep.subr.mxu0 0.0
        %731 = vmatpush2.msra.mxu0 %v666
        %732 = vmatprep.subr.mxu0 0.0
        %733 = vmatpush2.msra.mxu0 %v665
        %734 = vmatprep.subr.mxu0 0.0
        %735 = vmatpush2.msra.mxu0 %v664
        %736 = vmatprep.subr.mxu0 0.0
        %737 = vmatpush2.msra.mxu0 %v663
        %738 = vmatprep.subr.mxu0 0.0
        %739 = vmatpush2.msra.mxu0 %v662
        %740 = vmatprep.subr.mxu0 0.0
        %741 = vmatpush2.msra.mxu0 %v661
        %742 = vmatprep.subr.mxu0 0.0
        %743 = vmatpush2.msra.mxu0 %v660
        %744 = vmatprep.subr.mxu0 0.0
        %745 = vmatpush2.msra.mxu0 %v659
        %746 = vmatprep.mubr.f32.mxu0 %v580
        %747 = vmatmul.mubr.f32.gmra.mxu0 %v579
        %v748 = vpop.f32.mrf.mxu0
        %v749 = vadd.f32 %v680, %v748
        %v750 = vpop.f32.mrf.mxu0
        %751 = vmatprep.mubr.f32.mxu0 %v582
        %752 = vmatmul.mubr.f32.gmra.mxu0 %v581
        %v753 = vpop.f32.mrf.mxu0
        %v754 = vadd.f32 %v680, %v753
        %v755 = vpop.f32.mrf.mxu0
        %756 = vmatprep.mubr.f32.mxu0 %v584
        %757 = vmatmul.mubr.f32.gmra.mxu0 %v583
        %v758 = vpop.f32.mrf.mxu0
        %v759 = vadd.f32 %v680, %v758
        %v760 = vpop.f32.mrf.mxu0
        %761 = vmatprep.mubr.f32.mxu0 %v586
        %762 = vmatmul.mubr.f32.gmra.mxu0 %v585
        %v763 = vpop.f32.mrf.mxu0
        %v764 = vadd.f32 %v680, %v763
        %v765 = vpop.f32.mrf.mxu0
        %766 = vmatprep.mubr.f32.mxu0 %v588
        %767 = vmatmul.mubr.f32.gmra.mxu0 %v587
        %v768 = vpop.f32.mrf.mxu0
        %v769 = vadd.f32 %v680, %v768
        %v770 = vpop.f32.mrf.mxu0
        %771 = vmatprep.mubr.f32.mxu0 %v590
        %772 = vmatmul.mubr.f32.gmra.mxu0 %v589
        %v773 = vpop.f32.mrf.mxu0
        %v774 = vadd.f32 %v680, %v773
        %v775 = vpop.f32.mrf.mxu0
        %776 = vmatprep.mubr.f32.mxu0 %v592
        %777 = vmatmul.mubr.f32.gmra.mxu0 %v591
        %v778 = vpop.f32.mrf.mxu0
        %v779 = vadd.f32 %v680, %v778
        %v780 = vpop.f32.mrf.mxu0
        %781 = vmatprep.mubr.f32.mxu0 %v594
        %782 = vmatmul.mubr.f32.gmra.mxu0 %v593
        %v783 = vpop.f32.mrf.mxu0
        %v784 = vadd.f32 %v680, %v783
        %v785 = vpop.f32.mrf.mxu0
        %786 = vmatprep.mubr.f32.mxu0 %v596
        %787 = vmatmul.mubr.f32.gmra.mxu0 %v595
        %v788 = vpop.f32.mrf.mxu0
        %v789 = vadd.f32 %v680, %v788
        %v790 = vpop.f32.mrf.mxu0
        %791 = vmatprep.mubr.f32.mxu0 %v598
        %792 = vmatmul.mubr.f32.gmra.mxu0 %v597
        %v793 = vpop.f32.mrf.mxu0
        %v794 = vadd.f32 %v680, %v793
        %v795 = vpop.f32.mrf.mxu0
        %796 = vmatprep.mubr.f32.mxu0 %v600
        %797 = vmatmul.mubr.f32.gmra.mxu0 %v599
        %v798 = vpop.f32.mrf.mxu0
        %v799 = vadd.f32 %v680, %v798
        %v800 = vpop.f32.mrf.mxu0
        %801 = vmatprep.mubr.f32.mxu0 %v602
        %802 = vmatmul.mubr.f32.gmra.mxu0 %v601
        %v803 = vpop.f32.mrf.mxu0
        %v804 = vadd.f32 %v680, %v803
        %v805 = vpop.f32.mrf.mxu0
        %806 = vmatprep.mubr.f32.mxu0 %v604
        %807 = vmatmul.mubr.f32.gmra.mxu0 %v603
        %v808 = vpop.f32.mrf.mxu0
        %v809 = vadd.f32 %v680, %v808
        %v810 = vpop.f32.mrf.mxu0
        %811 = vmatprep.mubr.f32.mxu0 %v606
        %812 = vmatmul.mubr.f32.gmra.mxu0 %v605
        %v813 = vpop.f32.mrf.mxu0
        %v814 = vadd.f32 %v680, %v813
        %v815 = vpop.f32.mrf.mxu0
        %816 = vmatprep.mubr.f32.mxu0 %v608
        %817 = vmatmul.mubr.f32.gmra.mxu0 %v607
        %v818 = vpop.f32.mrf.mxu0
        %v819 = vadd.f32 %v680, %v818
        %v820 = vpop.f32.mrf.mxu0
        %821 = vmatprep.mubr.f32.mxu0 %v610
        %822 = vmatmul.mubr.f32.gmra.mxu0 %v609
        %v823 = vpop.f32.mrf.mxu0
        %v824 = vadd.f32 %v680, %v823
        %v825 = vpop.f32.mrf.mxu0
        %826 = vmatprep.mubr.f32.mxu0 %v612
        %827 = vmatmul.mubr.f32.gmra.mxu0 %v611
        %v828 = vpop.f32.mrf.mxu0
        %v829 = vadd.f32 %v680, %v828
        %v830 = vpop.f32.mrf.mxu0
        %831 = vmatprep.mubr.f32.mxu0 %v614
        %832 = vmatmul.mubr.f32.gmra.mxu0 %v613
        %v833 = vpop.f32.mrf.mxu0
        %v834 = vadd.f32 %v680, %v833
        %v835 = vpop.f32.mrf.mxu0
        %836 = vmatprep.mubr.f32.mxu0 %v616
        %837 = vmatmul.mubr.f32.gmra.mxu0 %v615
        %v838 = vpop.f32.mrf.mxu0
        %v839 = vadd.f32 %v680, %v838
        %v840 = vpop.f32.mrf.mxu0
        %841 = vmatprep.mubr.f32.mxu0 %v618
        %842 = vmatmul.mubr.f32.gmra.mxu0 %v617
        %v843 = vpop.f32.mrf.mxu0
        %v844 = vadd.f32 %v680, %v843
        %v845 = vpop.f32.mrf.mxu0
        %846 = vmatprep.mubr.f32.mxu0 %v620
        %847 = vmatmul.mubr.f32.gmra.mxu0 %v619
        %v848 = vpop.f32.mrf.mxu0
        %v849 = vadd.f32 %v680, %v848
        %v850 = vpop.f32.mrf.mxu0
        %851 = vmatprep.mubr.f32.mxu0 %v622
        %852 = vmatmul.mubr.f32.gmra.mxu0 %v621
        %v853 = vpop.f32.mrf.mxu0
        %v854 = vadd.f32 %v680, %v853
        %v855 = vpop.f32.mrf.mxu0
        %856 = vmatprep.mubr.f32.mxu0 %v624
        %857 = vmatmul.mubr.f32.gmra.mxu0 %v623
        %v858 = vpop.f32.mrf.mxu0
        %v859 = vadd.f32 %v680, %v858
        %v860 = vpop.f32.mrf.mxu0
        %861 = vmatprep.mubr.f32.mxu0 %v626
        %862 = vmatmul.mubr.f32.gmra.mxu0 %v625
        %v863 = vpop.f32.mrf.mxu0
        %v864 = vadd.f32 %v680, %v863
        %v865 = vpop.f32.mrf.mxu0
        %866 = vmatprep.mubr.f32.mxu0 %v628
        %867 = vmatmul.mubr.f32.gmra.mxu0 %v627
        %v868 = vpop.f32.mrf.mxu0
        %v869 = vadd.f32 %v680, %v868
        %v870 = vpop.f32.mrf.mxu0
        %871 = vmatprep.mubr.f32.mxu0 %v630
        %872 = vmatmul.mubr.f32.gmra.mxu0 %v629
        %v873 = vpop.f32.mrf.mxu0
        %v874 = vadd.f32 %v680, %v873
        %v875 = vpop.f32.mrf.mxu0
        %876 = vmatprep.mubr.f32.mxu0 %v632
        %877 = vmatmul.mubr.f32.gmra.mxu0 %v631
        %v878 = vpop.f32.mrf.mxu0
        %v879 = vadd.f32 %v680, %v878
        %v880 = vpop.f32.mrf.mxu0
        %881 = vmatprep.mubr.f32.mxu0 %v634
        %882 = vmatmul.mubr.f32.gmra.mxu0 %v633
        %v883 = vpop.f32.mrf.mxu0
        %v884 = vadd.f32 %v680, %v883
        %v885 = vpop.f32.mrf.mxu0
        %886 = vmatprep.mubr.f32.mxu0 %v636
        %887 = vmatmul.mubr.f32.gmra.mxu0 %v635
        %v888 = vpop.f32.mrf.mxu0
        %v889 = vadd.f32 %v680, %v888
        %v890 = vpop.f32.mrf.mxu0
        %891 = vmatprep.mubr.f32.mxu0 %v638
        %892 = vmatmul.mubr.f32.gmra.mxu0 %v637
        %v893 = vpop.f32.mrf.mxu0
        %v894 = vadd.f32 %v680, %v893
        %v895 = vpop.f32.mrf.mxu0
        %896 = vmatprep.mubr.f32.mxu0 %v640
        %897 = vmatmul.mubr.f32.gmra.mxu0 %v639
        %v898 = vpop.f32.mrf.mxu0
        %v899 = vadd.f32 %v680, %v898
        %v900 = vpop.f32.mrf.mxu0
        %901 = vmatprep.mubr.f32.mxu0 %v642
        %902 = vmatmul.mubr.f32.gmra.mxu0 %v641
        %v903 = vpop.f32.mrf.mxu0
        %v904 = vadd.f32 %v680, %v903
        %v905 = vpop.f32.mrf.mxu0
        %906 = vdwg.mxu0
        %v907 = vmax.f32 %v749, 0.0
        %v908 = vmax.f32 %v754, 0.0
        %v909 = vmax.f32 %v759, 0.0
        %v910 = vmax.f32 %v764, 0.0
        %v911 = vmax.f32 %v769, 0.0
        %v912 = vmax.f32 %v774, 0.0
        %v913 = vmax.f32 %v779, 0.0
        %v914 = vmax.f32 %v784, 0.0
        %v915 = vmax.f32 %v789, 0.0
        %v916 = vmax.f32 %v794, 0.0
        %v917 = vmax.f32 %v799, 0.0
        %v918 = vmax.f32 %v804, 0.0
        %v919 = vmax.f32 %v809, 0.0
        %v920 = vmax.f32 %v814, 0.0
        %v921 = vmax.f32 %v819, 0.0
        %v922 = vmax.f32 %v824, 0.0
        %v923 = vmax.f32 %v829, 0.0
        %v924 = vmax.f32 %v834, 0.0
        %v925 = vmax.f32 %v839, 0.0
        %v926 = vmax.f32 %v844, 0.0
        %v927 = vmax.f32 %v849, 0.0
        %v928 = vmax.f32 %v854, 0.0
        %v929 = vmax.f32 %v859, 0.0
        %v930 = vmax.f32 %v864, 0.0
        %v931 = vmax.f32 %v869, 0.0
        %v932 = vmax.f32 %v874, 0.0
        %v933 = vmax.f32 %v879, 0.0
        %v934 = vmax.f32 %v884, 0.0
        %v935 = vmax.f32 %v889, 0.0
        %v936 = vmax.f32 %v894, 0.0
        %v937 = vmax.f32 %v899, 0.0
        %v938 = vmax.f32 %v904, 0.0
        %vm939 = vcmp.ne.f32.partialorder %v749, %v749
        %vm940 = vcmp.ne.f32.partialorder %v754, %v754
        %vm941 = vcmp.ne.f32.partialorder %v759, %v759
        %vm942 = vcmp.ne.f32.partialorder %v764, %v764
        %vm943 = vcmp.ne.f32.partialorder %v769, %v769
        %vm944 = vcmp.ne.f32.partialorder %v774, %v774
        %vm945 = vcmp.ne.f32.partialorder %v779, %v779
        %vm946 = vcmp.ne.f32.partialorder %v784, %v784
        %vm947 = vcmp.ne.f32.partialorder %v789, %v789
        %vm948 = vcmp.ne.f32.partialorder %v794, %v794
        %vm949 = vcmp.ne.f32.partialorder %v799, %v799
        %vm950 = vcmp.ne.f32.partialorder %v804, %v804
        %vm951 = vcmp.ne.f32.partialorder %v809, %v809
        %vm952 = vcmp.ne.f32.partialorder %v814, %v814
        %vm953 = vcmp.ne.f32.partialorder %v819, %v819
        %vm954 = vcmp.ne.f32.partialorder %v824, %v824
        %vm955 = vcmp.ne.f32.partialorder %v829, %v829
        %vm956 = vcmp.ne.f32.partialorder %v834, %v834
        %vm957 = vcmp.ne.f32.partialorder %v839, %v839
        %vm958 = vcmp.ne.f32.partialorder %v844, %v844
        %vm959 = vcmp.ne.f32.partialorder %v849, %v849
        %vm960 = vcmp.ne.f32.partialorder %v854, %v854
        %vm961 = vcmp.ne.f32.partialorder %v859, %v859
        %vm962 = vcmp.ne.f32.partialorder %v864, %v864
        %vm963 = vcmp.ne.f32.partialorder %v869, %v869
        %vm964 = vcmp.ne.f32.partialorder %v874, %v874
        %vm965 = vcmp.ne.f32.partialorder %v879, %v879
        %vm966 = vcmp.ne.f32.partialorder %v884, %v884
        %vm967 = vcmp.ne.f32.partialorder %v889, %v889
        %vm968 = vcmp.ne.f32.partialorder %v894, %v894
        %vm969 = vcmp.ne.f32.partialorder %v899, %v899
        %vm970 = vcmp.ne.f32.partialorder %v904, %v904
        %v971 = vadd.f32 %v749, 0.0
        %v972 = vadd.f32 %v754, 0.0
        %v973 = vadd.f32 %v759, 0.0
        %v974 = vadd.f32 %v764, 0.0
        %v975 = vadd.f32 %v769, 0.0
        %v976 = vadd.f32 %v774, 0.0
        %v977 = vadd.f32 %v779, 0.0
        %v978 = vadd.f32 %v784, 0.0
        %v979 = vadd.f32 %v789, 0.0
        %v980 = vadd.f32 %v794, 0.0
        %v981 = vadd.f32 %v799, 0.0
        %v982 = vadd.f32 %v804, 0.0
        %v983 = vadd.f32 %v809, 0.0
        %v984 = vadd.f32 %v814, 0.0
        %v985 = vadd.f32 %v819, 0.0
        %v986 = vadd.f32 %v824, 0.0
        %v987 = vadd.f32 %v829, 0.0
        %v988 = vadd.f32 %v834, 0.0
        %v989 = vadd.f32 %v839, 0.0
        %v990 = vadd.f32 %v844, 0.0
        %v991 = vadd.f32 %v849, 0.0
        %v992 = vadd.f32 %v854, 0.0
        %v993 = vadd.f32 %v859, 0.0
        %v994 = vadd.f32 %v864, 0.0
        %v995 = vadd.f32 %v869, 0.0
        %v996 = vadd.f32 %v874, 0.0
        %v997 = vadd.f32 %v879, 0.0
        %v998 = vadd.f32 %v884, 0.0
        %v999 = vadd.f32 %v889, 0.0
        %v1000 = vadd.f32 %v894, 0.0
        %v1001 = vadd.f32 %v899, 0.0
        %v1002 = vadd.f32 %v904, 0.0
        %v1003 = vand.u32 2147483647, %v749
        %v1004 = vand.u32 2147483647, %v754
        %v1005 = vand.u32 2147483647, %v759
        %v1006 = vand.u32 2147483647, %v764
        %v1007 = vand.u32 2147483647, %v769
        %v1008 = vand.u32 2147483647, %v774
        %v1009 = vand.u32 2147483647, %v779
        %v1010 = vand.u32 2147483647, %v784
        %v1011 = vand.u32 2147483647, %v789
        %v1012 = vand.u32 2147483647, %v794
        %v1013 = vand.u32 2147483647, %v799
        %v1014 = vand.u32 2147483647, %v804
        %v1015 = vand.u32 2147483647, %v809
        %v1016 = vand.u32 2147483647, %v814
        %v1017 = vand.u32 2147483647, %v819
        %v1018 = vand.u32 2147483647, %v824
        %v1019 = vand.u32 2147483647, %v829
        %v1020 = vand.u32 2147483647, %v834
        %v1021 = vand.u32 2147483647, %v839
        %v1022 = vand.u32 2147483647, %v844
        %v1023 = vand.u32 2147483647, %v849
        %v1024 = vand.u32 2147483647, %v854
        %v1025 = vand.u32 2147483647, %v859
        %v1026 = vand.u32 2147483647, %v864
        %v1027 = vand.u32 2147483647, %v869
        %v1028 = vand.u32 2147483647, %v874
        %v1029 = vand.u32 2147483647, %v879
        %v1030 = vand.u32 2147483647, %v884
        %v1031 = vand.u32 2147483647, %v889
        %v1032 = vand.u32 2147483647, %v894
        %v1033 = vand.u32 2147483647, %v899
        %v1034 = vand.u32 2147483647, %v904
        %v1035 = vsub.f32 0.0, %v1003
        %v1036 = vsub.f32 0.0, %v1004
        %v1037 = vsub.f32 0.0, %v1005
        %v1038 = vsub.f32 0.0, %v1006
        %v1039 = vsub.f32 0.0, %v1007
        %v1040 = vsub.f32 0.0, %v1008
        %v1041 = vsub.f32 0.0, %v1009
        %v1042 = vsub.f32 0.0, %v1010
        %v1043 = vsub.f32 0.0, %v1011
        %v1044 = vsub.f32 0.0, %v1012
        %v1045 = vsub.f32 0.0, %v1013
        %v1046 = vsub.f32 0.0, %v1014
        %v1047 = vsub.f32 0.0, %v1015
        %v1048 = vsub.f32 0.0, %v1016
        %v1049 = vsub.f32 0.0, %v1017
        %v1050 = vsub.f32 0.0, %v1018
        %v1051 = vsub.f32 0.0, %v1019
        %v1052 = vsub.f32 0.0, %v1020
        %v1053 = vsub.f32 0.0, %v1021
        %v1054 = vsub.f32 0.0, %v1022
        %v1055 = vsub.f32 0.0, %v1023
        %v1056 = vsub.f32 0.0, %v1024
        %v1057 = vsub.f32 0.0, %v1025
        %v1058 = vsub.f32 0.0, %v1026
        %v1059 = vsub.f32 0.0, %v1027
        %v1060 = vsub.f32 0.0, %v1028
        %v1061 = vsub.f32 0.0, %v1029
        %v1062 = vsub.f32 0.0, %v1030
        %v1063 = vsub.f32 0.0, %v1031
        %v1064 = vsub.f32 0.0, %v1032
        %v1065 = vsub.f32 0.0, %v1033
        %v1066 = vsub.f32 0.0, %v1034
        %v1067 = vmul.f32 %v1035, 1.442695
        %v1068 = vpow.pop %v1067
        %v1069 = vmul.f32 %v1036, 1.442695
        %v1070 = vpow.pop %v1069
        %v1071 = vmul.f32 %v1037, 1.442695
        %v1072 = vpow.pop %v1071
        %v1073 = vmul.f32 %v1038, 1.442695
        %v1074 = vpow.pop %v1073
        %v1075 = vmul.f32 %v1039, 1.442695
        %v1076 = vpow.pop %v1075
        %v1077 = vmul.f32 %v1040, 1.442695
        %v1078 = vpow.pop %v1077
        %v1079 = vmul.f32 %v1041, 1.442695
        %v1080 = vpow.pop %v1079
        %v1081 = vmul.f32 %v1042, 1.442695
        %v1082 = vpow.pop %v1081
        %v1083 = vmul.f32 %v1043, 1.442695
        %v1084 = vpow.pop %v1083
        %v1085 = vmul.f32 %v1044, 1.442695
        %v1086 = vpow.pop %v1085
        %v1087 = vmul.f32 %v1045, 1.442695
        %v1088 = vpow.pop %v1087
        %v1089 = vmul.f32 %v1046, 1.442695
        %v1090 = vpow.pop %v1089
        %v1091 = vmul.f32 %v1047, 1.442695
        %v1092 = vpow.pop %v1091
        %v1093 = vmul.f32 %v1048, 1.442695
        %v1094 = vpow.pop %v1093
        %v1095 = vmul.f32 %v1049, 1.442695
        %v1096 = vpow.pop %v1095
        %v1097 = vmul.f32 %v1050, 1.442695
        %v1098 = vpow.pop %v1097
        %v1099 = vmul.f32 %v1051, 1.442695
        %v1100 = vpow.pop %v1099
        %v1101 = vmul.f32 %v1052, 1.442695
        %v1102 = vpow.pop %v1101
        %v1103 = vmul.f32 %v1053, 1.442695
        %v1104 = vpow.pop %v1103
        %v1105 = vmul.f32 %v1054, 1.442695
        %v1106 = vpow.pop %v1105
        %v1107 = vmul.f32 %v1055, 1.442695
        %v1108 = vpow.pop %v1107
        %v1109 = vmul.f32 %v1056, 1.442695
        %v1110 = vpow.pop %v1109
        %v1111 = vmul.f32 %v1057, 1.442695
        %v1112 = vpow.pop %v1111
        %v1113 = vmul.f32 %v1058, 1.442695
        %v1114 = vpow.pop %v1113
        %v1115 = vmul.f32 %v1059, 1.442695
        %v1116 = vpow.pop %v1115
        %v1117 = vmul.f32 %v1060, 1.442695
        %v1118 = vpow.pop %v1117
        %v1119 = vmul.f32 %v1061, 1.442695
        %v1120 = vpow.pop %v1119
        %v1121 = vmul.f32 %v1062, 1.442695
        %v1122 = vpow.pop %v1121
        %v1123 = vmul.f32 %v1063, 1.442695
        %v1124 = vpow.pop %v1123
        %v1125 = vmul.f32 %v1064, 1.442695
        %v1126 = vpow.pop %v1125
        %v1127 = vmul.f32 %v1065, 1.442695
        %v1128 = vpow.pop %v1127
        %v1129 = vmul.f32 %v1066, 1.442695
        %v1130 = vpow.pop %v1129
        %v1131 = vadd.f32 %v1068, 1.0
        %v1132 = vlog2.pop %v1131
        %v1133 = vmul.f32 %v1132, 0.6931472
        %v1134 = vmul.f32 -0.5, %v1068
        %v1135 = vadd.f32 %v1134, 1.0
        %v1136 = vmul.f32 %v1135, %v1068
        %v1137 = vand.u32 2147483647, %v1068
        %vm1138 = vcmp.lt.f32.partialorder %v1137, 0.0004427343
        %v1139 = vsel %vm1138, %v1136, %v1133
        %v1140 = vadd.f32 %v1070, 1.0
        %v1141 = vlog2.pop %v1140
        %v1142 = vmul.f32 %v1141, 0.6931472
        %v1143 = vmul.f32 -0.5, %v1070
        %v1144 = vadd.f32 %v1143, 1.0
        %v1145 = vmul.f32 %v1144, %v1070
        %v1146 = vand.u32 2147483647, %v1070
        %vm1147 = vcmp.lt.f32.partialorder %v1146, 0.0004427343
        %v1148 = vsel %vm1147, %v1145, %v1142
        %v1149 = vadd.f32 %v1072, 1.0
        %v1150 = vlog2.pop %v1149
        %v1151 = vmul.f32 %v1150, 0.6931472
        %v1152 = vmul.f32 -0.5, %v1072
        %v1153 = vadd.f32 %v1152, 1.0
        %v1154 = vmul.f32 %v1153, %v1072
        %v1155 = vand.u32 2147483647, %v1072
        %vm1156 = vcmp.lt.f32.partialorder %v1155, 0.0004427343
        %v1157 = vsel %vm1156, %v1154, %v1151
        %v1158 = vadd.f32 %v1074, 1.0
        %v1159 = vlog2.pop %v1158
        %v1160 = vmul.f32 %v1159, 0.6931472
        %v1161 = vmul.f32 -0.5, %v1074
        %v1162 = vadd.f32 %v1161, 1.0
        %v1163 = vmul.f32 %v1162, %v1074
        %v1164 = vand.u32 2147483647, %v1074
        %vm1165 = vcmp.lt.f32.partialorder %v1164, 0.0004427343
        %v1166 = vsel %vm1165, %v1163, %v1160
        %v1167 = vadd.f32 %v1076, 1.0
        %v1168 = vlog2.pop %v1167
        %v1169 = vmul.f32 %v1168, 0.6931472
        %v1170 = vmul.f32 -0.5, %v1076
        %v1171 = vadd.f32 %v1170, 1.0
        %v1172 = vmul.f32 %v1171, %v1076
        %v1173 = vand.u32 2147483647, %v1076
        %vm1174 = vcmp.lt.f32.partialorder %v1173, 0.0004427343
        %v1175 = vsel %vm1174, %v1172, %v1169
        %v1176 = vadd.f32 %v1078, 1.0
        %v1177 = vlog2.pop %v1176
        %v1178 = vmul.f32 %v1177, 0.6931472
        %v1179 = vmul.f32 -0.5, %v1078
        %v1180 = vadd.f32 %v1179, 1.0
        %v1181 = vmul.f32 %v1180, %v1078
        %v1182 = vand.u32 2147483647, %v1078
        %vm1183 = vcmp.lt.f32.partialorder %v1182, 0.0004427343
        %v1184 = vsel %vm1183, %v1181, %v1178
        %v1185 = vadd.f32 %v1080, 1.0
        %v1186 = vlog2.pop %v1185
        %v1187 = vmul.f32 %v1186, 0.6931472
        %v1188 = vmul.f32 -0.5, %v1080
        %v1189 = vadd.f32 %v1188, 1.0
        %v1190 = vmul.f32 %v1189, %v1080
        %v1191 = vand.u32 2147483647, %v1080
        %vm1192 = vcmp.lt.f32.partialorder %v1191, 0.0004427343
        %v1193 = vsel %vm1192, %v1190, %v1187
        %v1194 = vadd.f32 %v1082, 1.0
        %v1195 = vlog2.pop %v1194
        %v1196 = vmul.f32 %v1195, 0.6931472
        %v1197 = vmul.f32 -0.5, %v1082
        %v1198 = vadd.f32 %v1197, 1.0
        %v1199 = vmul.f32 %v1198, %v1082
        %v1200 = vand.u32 2147483647, %v1082
        %vm1201 = vcmp.lt.f32.partialorder %v1200, 0.0004427343
        %v1202 = vsel %vm1201, %v1199, %v1196
        %v1203 = vadd.f32 %v1084, 1.0
        %v1204 = vlog2.pop %v1203
        %v1205 = vmul.f32 %v1204, 0.6931472
        %v1206 = vmul.f32 -0.5, %v1084
        %v1207 = vadd.f32 %v1206, 1.0
        %v1208 = vmul.f32 %v1207, %v1084
        %v1209 = vand.u32 2147483647, %v1084
        %vm1210 = vcmp.lt.f32.partialorder %v1209, 0.0004427343
        %v1211 = vsel %vm1210, %v1208, %v1205
        %v1212 = vadd.f32 %v1086, 1.0
        %v1213 = vlog2.pop %v1212
        %v1214 = vmul.f32 %v1213, 0.6931472
        %v1215 = vmul.f32 -0.5, %v1086
        %v1216 = vadd.f32 %v1215, 1.0
        %v1217 = vmul.f32 %v1216, %v1086
        %v1218 = vand.u32 2147483647, %v1086
        %vm1219 = vcmp.lt.f32.partialorder %v1218, 0.0004427343
        %v1220 = vsel %vm1219, %v1217, %v1214
        %v1221 = vadd.f32 %v1088, 1.0
        %v1222 = vlog2.pop %v1221
        %v1223 = vmul.f32 %v1222, 0.6931472
        %v1224 = vmul.f32 -0.5, %v1088
        %v1225 = vadd.f32 %v1224, 1.0
        %v1226 = vmul.f32 %v1225, %v1088
        %v1227 = vand.u32 2147483647, %v1088
        %vm1228 = vcmp.lt.f32.partialorder %v1227, 0.0004427343
        %v1229 = vsel %vm1228, %v1226, %v1223
        %v1230 = vadd.f32 %v1090, 1.0
        %v1231 = vlog2.pop %v1230
        %v1232 = vmul.f32 %v1231, 0.6931472
        %v1233 = vmul.f32 -0.5, %v1090
        %v1234 = vadd.f32 %v1233, 1.0
        %v1235 = vmul.f32 %v1234, %v1090
        %v1236 = vand.u32 2147483647, %v1090
        %vm1237 = vcmp.lt.f32.partialorder %v1236, 0.0004427343
        %v1238 = vsel %vm1237, %v1235, %v1232
        %v1239 = vadd.f32 %v1092, 1.0
        %v1240 = vlog2.pop %v1239
        %v1241 = vmul.f32 %v1240, 0.6931472
        %v1242 = vmul.f32 -0.5, %v1092
        %v1243 = vadd.f32 %v1242, 1.0
        %v1244 = vmul.f32 %v1243, %v1092
        %v1245 = vand.u32 2147483647, %v1092
        %vm1246 = vcmp.lt.f32.partialorder %v1245, 0.0004427343
        %v1247 = vsel %vm1246, %v1244, %v1241
        %v1248 = vadd.f32 %v1094, 1.0
        %v1249 = vlog2.pop %v1248
        %v1250 = vmul.f32 %v1249, 0.6931472
        %v1251 = vmul.f32 -0.5, %v1094
        %v1252 = vadd.f32 %v1251, 1.0
        %v1253 = vmul.f32 %v1252, %v1094
        %v1254 = vand.u32 2147483647, %v1094
        %vm1255 = vcmp.lt.f32.partialorder %v1254, 0.0004427343
        %v1256 = vsel %vm1255, %v1253, %v1250
        %v1257 = vadd.f32 %v1096, 1.0
        %v1258 = vlog2.pop %v1257
        %v1259 = vmul.f32 %v1258, 0.6931472
        %v1260 = vmul.f32 -0.5, %v1096
        %v1261 = vadd.f32 %v1260, 1.0
        %v1262 = vmul.f32 %v1261, %v1096
        %v1263 = vand.u32 2147483647, %v1096
        %vm1264 = vcmp.lt.f32.partialorder %v1263, 0.0004427343
        %v1265 = vsel %vm1264, %v1262, %v1259
        %v1266 = vadd.f32 %v1098, 1.0
        %v1267 = vlog2.pop %v1266
        %v1268 = vmul.f32 %v1267, 0.6931472
        %v1269 = vmul.f32 -0.5, %v1098
        %v1270 = vadd.f32 %v1269, 1.0
        %v1271 = vmul.f32 %v1270, %v1098
        %v1272 = vand.u32 2147483647, %v1098
        %vm1273 = vcmp.lt.f32.partialorder %v1272, 0.0004427343
        %v1274 = vsel %vm1273, %v1271, %v1268
        %v1275 = vadd.f32 %v1100, 1.0
        %v1276 = vlog2.pop %v1275
        %v1277 = vmul.f32 %v1276, 0.6931472
        %v1278 = vmul.f32 -0.5, %v1100
        %v1279 = vadd.f32 %v1278, 1.0
        %v1280 = vmul.f32 %v1279, %v1100
        %v1281 = vand.u32 2147483647, %v1100
        %vm1282 = vcmp.lt.f32.partialorder %v1281, 0.0004427343
        %v1283 = vsel %vm1282, %v1280, %v1277
        %v1284 = vadd.f32 %v1102, 1.0
        %v1285 = vlog2.pop %v1284
        %v1286 = vmul.f32 %v1285, 0.6931472
        %v1287 = vmul.f32 -0.5, %v1102
        %v1288 = vadd.f32 %v1287, 1.0
        %v1289 = vmul.f32 %v1288, %v1102
        %v1290 = vand.u32 2147483647, %v1102
        %vm1291 = vcmp.lt.f32.partialorder %v1290, 0.0004427343
        %v1292 = vsel %vm1291, %v1289, %v1286
        %v1293 = vadd.f32 %v1104, 1.0
        %v1294 = vlog2.pop %v1293
        %v1295 = vmul.f32 %v1294, 0.6931472
        %v1296 = vmul.f32 -0.5, %v1104
        %v1297 = vadd.f32 %v1296, 1.0
        %v1298 = vmul.f32 %v1297, %v1104
        %v1299 = vand.u32 2147483647, %v1104
        %vm1300 = vcmp.lt.f32.partialorder %v1299, 0.0004427343
        %v1301 = vsel %vm1300, %v1298, %v1295
        %v1302 = vadd.f32 %v1106, 1.0
        %v1303 = vlog2.pop %v1302
        %v1304 = vmul.f32 %v1303, 0.6931472
        %v1305 = vmul.f32 -0.5, %v1106
        %v1306 = vadd.f32 %v1305, 1.0
        %v1307 = vmul.f32 %v1306, %v1106
        %v1308 = vand.u32 2147483647, %v1106
        %vm1309 = vcmp.lt.f32.partialorder %v1308, 0.0004427343
        %v1310 = vsel %vm1309, %v1307, %v1304
        %v1311 = vadd.f32 %v1108, 1.0
        %v1312 = vlog2.pop %v1311
        %v1313 = vmul.f32 %v1312, 0.6931472
        %v1314 = vmul.f32 -0.5, %v1108
        %v1315 = vadd.f32 %v1314, 1.0
        %v1316 = vmul.f32 %v1315, %v1108
        %v1317 = vand.u32 2147483647, %v1108
        %vm1318 = vcmp.lt.f32.partialorder %v1317, 0.0004427343
        %v1319 = vsel %vm1318, %v1316, %v1313
        %v1320 = vadd.f32 %v1110, 1.0
        %v1321 = vlog2.pop %v1320
        %v1322 = vmul.f32 %v1321, 0.6931472
        %v1323 = vmul.f32 -0.5, %v1110
        %v1324 = vadd.f32 %v1323, 1.0
        %v1325 = vmul.f32 %v1324, %v1110
        %v1326 = vand.u32 2147483647, %v1110
        %vm1327 = vcmp.lt.f32.partialorder %v1326, 0.0004427343
        %v1328 = vsel %vm1327, %v1325, %v1322
        %v1329 = vadd.f32 %v1112, 1.0
        %v1330 = vlog2.pop %v1329
        %v1331 = vmul.f32 %v1330, 0.6931472
        %v1332 = vmul.f32 -0.5, %v1112
        %v1333 = vadd.f32 %v1332, 1.0
        %v1334 = vmul.f32 %v1333, %v1112
        %v1335 = vand.u32 2147483647, %v1112
        %vm1336 = vcmp.lt.f32.partialorder %v1335, 0.0004427343
        %v1337 = vsel %vm1336, %v1334, %v1331
        %v1338 = vadd.f32 %v1114, 1.0
        %v1339 = vlog2.pop %v1338
        %v1340 = vmul.f32 %v1339, 0.6931472
        %v1341 = vmul.f32 -0.5, %v1114
        %v1342 = vadd.f32 %v1341, 1.0
        %v1343 = vmul.f32 %v1342, %v1114
        %v1344 = vand.u32 2147483647, %v1114
        %vm1345 = vcmp.lt.f32.partialorder %v1344, 0.0004427343
        %v1346 = vsel %vm1345, %v1343, %v1340
        %v1347 = vadd.f32 %v1116, 1.0
        %v1348 = vlog2.pop %v1347
        %v1349 = vmul.f32 %v1348, 0.6931472
        %v1350 = vmul.f32 -0.5, %v1116
        %v1351 = vadd.f32 %v1350, 1.0
        %v1352 = vmul.f32 %v1351, %v1116
        %v1353 = vand.u32 2147483647, %v1116
        %vm1354 = vcmp.lt.f32.partialorder %v1353, 0.0004427343
        %v1355 = vsel %vm1354, %v1352, %v1349
        %v1356 = vadd.f32 %v1118, 1.0
        %v1357 = vlog2.pop %v1356
        %v1358 = vmul.f32 %v1357, 0.6931472
        %v1359 = vmul.f32 -0.5, %v1118
        %v1360 = vadd.f32 %v1359, 1.0
        %v1361 = vmul.f32 %v1360, %v1118
        %v1362 = vand.u32 2147483647, %v1118
        %vm1363 = vcmp.lt.f32.partialorder %v1362, 0.0004427343
        %v1364 = vsel %vm1363, %v1361, %v1358
        %v1365 = vadd.f32 %v1120, 1.0
        %v1366 = vlog2.pop %v1365
        %v1367 = vmul.f32 %v1366, 0.6931472
        %v1368 = vmul.f32 -0.5, %v1120
        %v1369 = vadd.f32 %v1368, 1.0
        %v1370 = vmul.f32 %v1369, %v1120
        %v1371 = vand.u32 2147483647, %v1120
        %vm1372 = vcmp.lt.f32.partialorder %v1371, 0.0004427343
        %v1373 = vsel %vm1372, %v1370, %v1367
        %v1374 = vadd.f32 %v1122, 1.0
        %v1375 = vlog2.pop %v1374
        %v1376 = vmul.f32 %v1375, 0.6931472
        %v1377 = vmul.f32 -0.5, %v1122
        %v1378 = vadd.f32 %v1377, 1.0
        %v1379 = vmul.f32 %v1378, %v1122
        %v1380 = vand.u32 2147483647, %v1122
        %vm1381 = vcmp.lt.f32.partialorder %v1380, 0.0004427343
        %v1382 = vsel %vm1381, %v1379, %v1376
        %v1383 = vadd.f32 %v1124, 1.0
        %v1384 = vlog2.pop %v1383
        %v1385 = vmul.f32 %v1384, 0.6931472
        %v1386 = vmul.f32 -0.5, %v1124
        %v1387 = vadd.f32 %v1386, 1.0
        %v1388 = vmul.f32 %v1387, %v1124
        %v1389 = vand.u32 2147483647, %v1124
        %vm1390 = vcmp.lt.f32.partialorder %v1389, 0.0004427343
        %v1391 = vsel %vm1390, %v1388, %v1385
        %v1392 = vadd.f32 %v1126, 1.0
        %v1393 = vlog2.pop %v1392
        %v1394 = vmul.f32 %v1393, 0.6931472
        %v1395 = vmul.f32 -0.5, %v1126
        %v1396 = vadd.f32 %v1395, 1.0
        %v1397 = vmul.f32 %v1396, %v1126
        %v1398 = vand.u32 2147483647, %v1126
        %vm1399 = vcmp.lt.f32.partialorder %v1398, 0.0004427343
        %v1400 = vsel %vm1399, %v1397, %v1394
        %v1401 = vadd.f32 %v1128, 1.0
        %v1402 = vlog2.pop %v1401
        %v1403 = vmul.f32 %v1402, 0.6931472
        %v1404 = vmul.f32 -0.5, %v1128
        %v1405 = vadd.f32 %v1404, 1.0
        %v1406 = vmul.f32 %v1405, %v1128
        %v1407 = vand.u32 2147483647, %v1128
        %vm1408 = vcmp.lt.f32.partialorder %v1407, 0.0004427343
        %v1409 = vsel %vm1408, %v1406, %v1403
        %v1410 = vadd.f32 %v1130, 1.0
        %v1411 = vlog2.pop %v1410
        %v1412 = vmul.f32 %v1411, 0.6931472
        %v1413 = vmul.f32 -0.5, %v1130
        %v1414 = vadd.f32 %v1413, 1.0
        %v1415 = vmul.f32 %v1414, %v1130
        %v1416 = vand.u32 2147483647, %v1130
        %vm1417 = vcmp.lt.f32.partialorder %v1416, 0.0004427343
        %v1418 = vsel %vm1417, %v1415, %v1412
        %v1419 = vadd.f32 %v907, %v1139
        %v1420 = vadd.f32 %v908, %v1148
        %v1421 = vadd.f32 %v909, %v1157
        %v1422 = vadd.f32 %v910, %v1166
        %v1423 = vadd.f32 %v911, %v1175
        %v1424 = vadd.f32 %v912, %v1184
        %v1425 = vadd.f32 %v913, %v1193
        %v1426 = vadd.f32 %v914, %v1202
        %v1427 = vadd.f32 %v915, %v1211
        %v1428 = vadd.f32 %v916, %v1220
        %v1429 = vadd.f32 %v917, %v1229
        %v1430 = vadd.f32 %v918, %v1238
        %v1431 = vadd.f32 %v919, %v1247
        %v1432 = vadd.f32 %v920, %v1256
        %v1433 = vadd.f32 %v921, %v1265
        %v1434 = vadd.f32 %v922, %v1274
        %v1435 = vadd.f32 %v923, %v1283
        %v1436 = vadd.f32 %v924, %v1292
        %v1437 = vadd.f32 %v925, %v1301
        %v1438 = vadd.f32 %v926, %v1310
        %v1439 = vadd.f32 %v927, %v1319
        %v1440 = vadd.f32 %v928, %v1328
        %v1441 = vadd.f32 %v929, %v1337
        %v1442 = vadd.f32 %v930, %v1346
        %v1443 = vadd.f32 %v931, %v1355
        %v1444 = vadd.f32 %v932, %v1364
        %v1445 = vadd.f32 %v933, %v1373
        %v1446 = vadd.f32 %v934, %v1382
        %v1447 = vadd.f32 %v935, %v1391
        %v1448 = vadd.f32 %v936, %v1400
        %v1449 = vadd.f32 %v937, %v1409
        %v1450 = vadd.f32 %v938, %v1418
        %v1451 = vsel %vm939, %v971, %v1419
        %v1452 = vsel %vm940, %v972, %v1420
        %v1453 = vsel %vm941, %v973, %v1421
        %v1454 = vsel %vm942, %v974, %v1422
        %v1455 = vsel %vm943, %v975, %v1423
        %v1456 = vsel %vm944, %v976, %v1424
        %v1457 = vsel %vm945, %v977, %v1425
        %v1458 = vsel %vm946, %v978, %v1426
        %v1459 = vsel %vm947, %v979, %v1427
        %v1460 = vsel %vm948, %v980, %v1428
        %v1461 = vsel %vm949, %v981, %v1429
        %v1462 = vsel %vm950, %v982, %v1430
        %v1463 = vsel %vm951, %v983, %v1431
        %v1464 = vsel %vm952, %v984, %v1432
        %v1465 = vsel %vm953, %v985, %v1433
        %v1466 = vsel %vm954, %v986, %v1434
        %v1467 = vsel %vm955, %v987, %v1435
        %v1468 = vsel %vm956, %v988, %v1436
        %v1469 = vsel %vm957, %v989, %v1437
        %v1470 = vsel %vm958, %v990, %v1438
        %v1471 = vsel %vm959, %v991, %v1439
        %v1472 = vsel %vm960, %v992, %v1440
        %v1473 = vsel %vm961, %v993, %v1441
        %v1474 = vsel %vm962, %v994, %v1442
        %v1475 = vsel %vm963, %v995, %v1443
        %v1476 = vsel %vm964, %v996, %v1444
        %v1477 = vsel %vm965, %v997, %v1445
        %v1478 = vsel %vm966, %v998, %v1446
        %v1479 = vsel %vm967, %v999, %v1447
        %v1480 = vsel %vm968, %v1000, %v1448
        %v1481 = vsel %vm969, %v1001, %v1449
        %v1482 = vsel %vm970, %v1002, %v1450
        %v1483 = vld [vmem:[%s3] sm:$0xff]
        %v1484 = vld [vmem:[%s3 + $0x8] sm:$0xff]
        %v1485 = vld [vmem:[%s3 + $0x10] sm:$0xff]
        %v1486 = vld [vmem:[%s3 + $0x18] sm:$0xff]
        %v1487 = vld [vmem:[%s3 + $0x20] sm:$0xff]
        %v1488 = vld [vmem:[%s3 + $0x28] sm:$0xff]
        %v1489 = vld [vmem:[%s3 + $0x30] sm:$0xff]
        %v1490 = vld [vmem:[%s3 + $0x38] sm:$0xff]
        %v1491 = vld [vmem:[%s3 + $0x40] sm:$0xff]
        %v1492 = vld [vmem:[%s3 + $0x48] sm:$0xff]
        %v1493 = vld [vmem:[%s3 + $0x50] sm:$0xff]
        %v1494 = vld [vmem:[%s3 + $0x58] sm:$0xff]
        %v1495 = vld [vmem:[%s3 + $0x60] sm:$0xff]
        %v1496 = vld [vmem:[%s3 + $0x68] sm:$0xff]
        %v1497 = vld [vmem:[%s3 + $0x70] sm:$0xff]
        %v1498 = vld [vmem:[%s3 + $0x78] sm:$0xff]
        %v1499 = vld [vmem:[%s4] sm:$0x1]
        %v1501 = vlaneseq
        %v1502 = vshrl.u32 %v1501, 7
        %v1503 = vsub.s32 0, %v1502
        %v1504 = vrot.slane %v1499, %v1503
        %1506 = vmatprep.subr.mxu0 0.0
        %1507 = vmatpush1.msra.mxu0 %v1498
        %1508 = vmatprep.subr.mxu0 0.0
        %1509 = vmatpush1.msra.mxu0 %v1497
        %1510 = vmatprep.subr.mxu0 0.0
        %1511 = vmatpush1.msra.mxu0 %v1496
        %1512 = vmatprep.subr.mxu0 0.0
        %1513 = vmatpush1.msra.mxu0 %v1495
        %1514 = vmatprep.subr.mxu0 0.0
        %1515 = vmatpush1.msra.mxu0 %v1494
        %1516 = vmatprep.subr.mxu0 0.0
        %1517 = vmatpush1.msra.mxu0 %v1493
        %1518 = vmatprep.subr.mxu0 0.0
        %1519 = vmatpush1.msra.mxu0 %v1492
        %1520 = vmatprep.subr.mxu0 0.0
        %1521 = vmatpush1.msra.mxu0 %v1491
        %1522 = vmatprep.subr.mxu0 0.0
        %1523 = vmatpush1.msra.mxu0 %v1490
        %1524 = vmatprep.subr.mxu0 0.0
        %1525 = vmatpush1.msra.mxu0 %v1489
        %1526 = vmatprep.subr.mxu0 0.0
        %1527 = vmatpush1.msra.mxu0 %v1488
        %1528 = vmatprep.subr.mxu0 0.0
        %1529 = vmatpush1.msra.mxu0 %v1487
        %1530 = vmatprep.subr.mxu0 0.0
        %1531 = vmatpush1.msra.mxu0 %v1486
        %1532 = vmatprep.subr.mxu0 0.0
        %1533 = vmatpush1.msra.mxu0 %v1485
        %1534 = vmatprep.subr.mxu0 0.0
        %1535 = vmatpush1.msra.mxu0 %v1484
        %1536 = vmatprep.subr.mxu0 0.0
        %1537 = vmatpush1.msra.mxu0 %v1483
        %1538 = vmatprep.subr.mxu0 0.0
        %1539 = vmatpush2.msra.mxu0 0.0
        %1540 = vmatprep.subr.mxu0 0.0
        %1541 = vmatpush2.msra.mxu0 0.0
        %1542 = vmatprep.subr.mxu0 0.0
        %1543 = vmatpush2.msra.mxu0 0.0
        %1544 = vmatprep.subr.mxu0 0.0
        %1545 = vmatpush2.msra.mxu0 0.0
        %1546 = vmatprep.subr.mxu0 0.0
        %1547 = vmatpush2.msra.mxu0 0.0
        %1548 = vmatprep.subr.mxu0 0.0
        %1549 = vmatpush2.msra.mxu0 0.0
        %1550 = vmatprep.subr.mxu0 0.0
        %1551 = vmatpush2.msra.mxu0 0.0
        %1552 = vmatprep.subr.mxu0 0.0
        %1553 = vmatpush2.msra.mxu0 0.0
        %1554 = vmatprep.subr.mxu0 0.0
        %1555 = vmatpush2.msra.mxu0 0.0
        %1556 = vmatprep.subr.mxu0 0.0
        %1557 = vmatpush2.msra.mxu0 0.0
        %1558 = vmatprep.subr.mxu0 0.0
        %1559 = vmatpush2.msra.mxu0 0.0
        %1560 = vmatprep.subr.mxu0 0.0
        %1561 = vmatpush2.msra.mxu0 0.0
        %1562 = vmatprep.subr.mxu0 0.0
        %1563 = vmatpush2.msra.mxu0 0.0
        %1564 = vmatprep.subr.mxu0 0.0
        %1565 = vmatpush2.msra.mxu0 0.0
        %1566 = vmatprep.subr.mxu0 0.0
        %1567 = vmatpush2.msra.mxu0 0.0
        %1568 = vmatprep.subr.mxu0 0.0
        %1569 = vmatpush2.msra.mxu0 0.0
        %1570 = vmatprep.mubr.f32.mxu0 0.0
        %1571 = vmatmul.mubr.f32.gmra.mxu0 %v1451
        %v1572 = vpop.f32.mrf.mxu0
        %v1573 = vadd.f32 %v1504, %v1572
        %v1574 = vpop.f32.mrf.mxu0
        %1575 = vmatprep.mubr.f32.mxu0 0.0
        %1576 = vmatmul.mubr.f32.gmra.mxu0 %v1452
        %v1577 = vpop.f32.mrf.mxu0
        %v1578 = vadd.f32 %v1504, %v1577
        %v1579 = vpop.f32.mrf.mxu0
        %1580 = vmatprep.mubr.f32.mxu0 0.0
        %1581 = vmatmul.mubr.f32.gmra.mxu0 %v1453
        %v1582 = vpop.f32.mrf.mxu0
        %v1583 = vadd.f32 %v1504, %v1582
        %v1584 = vpop.f32.mrf.mxu0
        %1585 = vmatprep.mubr.f32.mxu0 0.0
        %1586 = vmatmul.mubr.f32.gmra.mxu0 %v1454
        %v1587 = vpop.f32.mrf.mxu0
        %v1588 = vadd.f32 %v1504, %v1587
        %v1589 = vpop.f32.mrf.mxu0
        %1590 = vmatprep.mubr.f32.mxu0 0.0
        %1591 = vmatmul.mubr.f32.gmra.mxu0 %v1455
        %v1592 = vpop.f32.mrf.mxu0
        %v1593 = vadd.f32 %v1504, %v1592
        %v1594 = vpop.f32.mrf.mxu0
        %1595 = vmatprep.mubr.f32.mxu0 0.0
        %1596 = vmatmul.mubr.f32.gmra.mxu0 %v1456
        %v1597 = vpop.f32.mrf.mxu0
        %v1598 = vadd.f32 %v1504, %v1597
        %v1599 = vpop.f32.mrf.mxu0
        %1600 = vmatprep.mubr.f32.mxu0 0.0
        %1601 = vmatmul.mubr.f32.gmra.mxu0 %v1457
        %v1602 = vpop.f32.mrf.mxu0
        %v1603 = vadd.f32 %v1504, %v1602
        %v1604 = vpop.f32.mrf.mxu0
        %1605 = vmatprep.mubr.f32.mxu0 0.0
        %1606 = vmatmul.mubr.f32.gmra.mxu0 %v1458
        %v1607 = vpop.f32.mrf.mxu0
        %v1608 = vadd.f32 %v1504, %v1607
        %v1609 = vpop.f32.mrf.mxu0
        %1610 = vmatprep.mubr.f32.mxu0 0.0
        %1611 = vmatmul.mubr.f32.gmra.mxu0 %v1459
        %v1612 = vpop.f32.mrf.mxu0
        %v1613 = vadd.f32 %v1504, %v1612
        %v1614 = vpop.f32.mrf.mxu0
        %1615 = vmatprep.mubr.f32.mxu0 0.0
        %1616 = vmatmul.mubr.f32.gmra.mxu0 %v1460
        %v1617 = vpop.f32.mrf.mxu0
        %v1618 = vadd.f32 %v1504, %v1617
        %v1619 = vpop.f32.mrf.mxu0
        %1620 = vmatprep.mubr.f32.mxu0 0.0
        %1621 = vmatmul.mubr.f32.gmra.mxu0 %v1461
        %v1622 = vpop.f32.mrf.mxu0
        %v1623 = vadd.f32 %v1504, %v1622
        %v1624 = vpop.f32.mrf.mxu0
        %1625 = vmatprep.mubr.f32.mxu0 0.0
        %1626 = vmatmul.mubr.f32.gmra.mxu0 %v1462
        %v1627 = vpop.f32.mrf.mxu0
        %v1628 = vadd.f32 %v1504, %v1627
        %v1629 = vpop.f32.mrf.mxu0
        %1630 = vmatprep.mubr.f32.mxu0 0.0
        %1631 = vmatmul.mubr.f32.gmra.mxu0 %v1463
        %v1632 = vpop.f32.mrf.mxu0
        %v1633 = vadd.f32 %v1504, %v1632
        %v1634 = vpop.f32.mrf.mxu0
        %1635 = vmatprep.mubr.f32.mxu0 0.0
        %1636 = vmatmul.mubr.f32.gmra.mxu0 %v1464
        %v1637 = vpop.f32.mrf.mxu0
        %v1638 = vadd.f32 %v1504, %v1637
        %v1639 = vpop.f32.mrf.mxu0
        %1640 = vmatprep.mubr.f32.mxu0 0.0
        %1641 = vmatmul.mubr.f32.gmra.mxu0 %v1465
        %v1642 = vpop.f32.mrf.mxu0
        %v1643 = vadd.f32 %v1504, %v1642
        %v1644 = vpop.f32.mrf.mxu0
        %1645 = vmatprep.mubr.f32.mxu0 0.0
        %1646 = vmatmul.mubr.f32.gmra.mxu0 %v1466
        %v1647 = vpop.f32.mrf.mxu0
        %v1648 = vadd.f32 %v1504, %v1647
        %v1649 = vpop.f32.mrf.mxu0
        %1650 = vmatprep.mubr.f32.mxu0 0.0
        %1651 = vmatmul.mubr.f32.gmra.mxu0 %v1467
        %v1652 = vpop.f32.mrf.mxu0
        %v1653 = vadd.f32 %v1504, %v1652
        %v1654 = vpop.f32.mrf.mxu0
        %1655 = vmatprep.mubr.f32.mxu0 0.0
        %1656 = vmatmul.mubr.f32.gmra.mxu0 %v1468
        %v1657 = vpop.f32.mrf.mxu0
        %v1658 = vadd.f32 %v1504, %v1657
        %v1659 = vpop.f32.mrf.mxu0
        %1660 = vmatprep.mubr.f32.mxu0 0.0
        %1661 = vmatmul.mubr.f32.gmra.mxu0 %v1469
        %v1662 = vpop.f32.mrf.mxu0
        %v1663 = vadd.f32 %v1504, %v1662
        %v1664 = vpop.f32.mrf.mxu0
        %1665 = vmatprep.mubr.f32.mxu0 0.0
        %1666 = vmatmul.mubr.f32.gmra.mxu0 %v1470
        %v1667 = vpop.f32.mrf.mxu0
        %v1668 = vadd.f32 %v1504, %v1667
        %v1669 = vpop.f32.mrf.mxu0
        %1670 = vmatprep.mubr.f32.mxu0 0.0
        %1671 = vmatmul.mubr.f32.gmra.mxu0 %v1471
        %v1672 = vpop.f32.mrf.mxu0
        %v1673 = vadd.f32 %v1504, %v1672
        %v1674 = vpop.f32.mrf.mxu0
        %1675 = vmatprep.mubr.f32.mxu0 0.0
        %1676 = vmatmul.mubr.f32.gmra.mxu0 %v1472
        %v1677 = vpop.f32.mrf.mxu0
        %v1678 = vadd.f32 %v1504, %v1677
        %v1679 = vpop.f32.mrf.mxu0
        %1680 = vmatprep.mubr.f32.mxu0 0.0
        %1681 = vmatmul.mubr.f32.gmra.mxu0 %v1473
        %v1682 = vpop.f32.mrf.mxu0
        %v1683 = vadd.f32 %v1504, %v1682
        %v1684 = vpop.f32.mrf.mxu0
        %1685 = vmatprep.mubr.f32.mxu0 0.0
        %1686 = vmatmul.mubr.f32.gmra.mxu0 %v1474
        %v1687 = vpop.f32.mrf.mxu0
        %v1688 = vadd.f32 %v1504, %v1687
        %v1689 = vpop.f32.mrf.mxu0
        %1690 = vmatprep.mubr.f32.mxu0 0.0
        %1691 = vmatmul.mubr.f32.gmra.mxu0 %v1475
        %v1692 = vpop.f32.mrf.mxu0
        %v1693 = vadd.f32 %v1504, %v1692
        %v1694 = vpop.f32.mrf.mxu0
        %1695 = vmatprep.mubr.f32.mxu0 0.0
        %1696 = vmatmul.mubr.f32.gmra.mxu0 %v1476
        %v1697 = vpop.f32.mrf.mxu0
        %v1698 = vadd.f32 %v1504, %v1697
        %v1699 = vpop.f32.mrf.mxu0
        %1700 = vmatprep.mubr.f32.mxu0 0.0
        %1701 = vmatmul.mubr.f32.gmra.mxu0 %v1477
        %v1702 = vpop.f32.mrf.mxu0
        %v1703 = vadd.f32 %v1504, %v1702
        %v1704 = vpop.f32.mrf.mxu0
        %1705 = vmatprep.mubr.f32.mxu0 0.0
        %1706 = vmatmul.mubr.f32.gmra.mxu0 %v1478
        %v1707 = vpop.f32.mrf.mxu0
        %v1708 = vadd.f32 %v1504, %v1707
        %v1709 = vpop.f32.mrf.mxu0
        %1710 = vmatprep.mubr.f32.mxu0 0.0
        %1711 = vmatmul.mubr.f32.gmra.mxu0 %v1479
        %v1712 = vpop.f32.mrf.mxu0
        %v1713 = vadd.f32 %v1504, %v1712
        %v1714 = vpop.f32.mrf.mxu0
        %1715 = vmatprep.mubr.f32.mxu0 0.0
        %1716 = vmatmul.mubr.f32.gmra.mxu0 %v1480
        %v1717 = vpop.f32.mrf.mxu0
        %v1718 = vadd.f32 %v1504, %v1717
        %v1719 = vpop.f32.mrf.mxu0
        %1720 = vmatprep.mubr.f32.mxu0 0.0
        %1721 = vmatmul.mubr.f32.gmra.mxu0 %v1481
        %v1722 = vpop.f32.mrf.mxu0
        %v1723 = vadd.f32 %v1504, %v1722
        %v1724 = vpop.f32.mrf.mxu0
        %1725 = vmatprep.mubr.f32.mxu0 0.0
        %1726 = vmatmul.mubr.f32.gmra.mxu0 %v1482
        %v1727 = vpop.f32.mrf.mxu0
        %v1728 = vadd.f32 %v1504, %v1727
        %v1729 = vpop.f32.mrf.mxu0
        %1730 = vdwg.mxu0
        %v1731 = vmax.f32 %v1573, 0.0
        %v1732 = vmax.f32 %v1578, 0.0
        %v1733 = vmax.f32 %v1583, 0.0
        %v1734 = vmax.f32 %v1588, 0.0
        %v1735 = vmax.f32 %v1593, 0.0
        %v1736 = vmax.f32 %v1598, 0.0
        %v1737 = vmax.f32 %v1603, 0.0
        %v1738 = vmax.f32 %v1608, 0.0
        %v1739 = vmax.f32 %v1613, 0.0
        %v1740 = vmax.f32 %v1618, 0.0
        %v1741 = vmax.f32 %v1623, 0.0
        %v1742 = vmax.f32 %v1628, 0.0
        %v1743 = vmax.f32 %v1633, 0.0
        %v1744 = vmax.f32 %v1638, 0.0
        %v1745 = vmax.f32 %v1643, 0.0
        %v1746 = vmax.f32 %v1648, 0.0
        %v1747 = vmax.f32 %v1653, 0.0
        %v1748 = vmax.f32 %v1658, 0.0
        %v1749 = vmax.f32 %v1663, 0.0
        %v1750 = vmax.f32 %v1668, 0.0
        %v1751 = vmax.f32 %v1673, 0.0
        %v1752 = vmax.f32 %v1678, 0.0
        %v1753 = vmax.f32 %v1683, 0.0
        %v1754 = vmax.f32 %v1688, 0.0
        %v1755 = vmax.f32 %v1693, 0.0
        %v1756 = vmax.f32 %v1698, 0.0
        %v1757 = vmax.f32 %v1703, 0.0
        %v1758 = vmax.f32 %v1708, 0.0
        %v1759 = vmax.f32 %v1713, 0.0
        %v1760 = vmax.f32 %v1718, 0.0
        %v1761 = vmax.f32 %v1723, 0.0
        %v1762 = vmax.f32 %v1728, 0.0
        %vm1763 = vcmp.ne.f32.partialorder %v1573, %v1573
        %vm1764 = vcmp.ne.f32.partialorder %v1578, %v1578
        %vm1765 = vcmp.ne.f32.partialorder %v1583, %v1583
        %vm1766 = vcmp.ne.f32.partialorder %v1588, %v1588
        %vm1767 = vcmp.ne.f32.partialorder %v1593, %v1593
        %vm1768 = vcmp.ne.f32.partialorder %v1598, %v1598
        %vm1769 = vcmp.ne.f32.partialorder %v1603, %v1603
        %vm1770 = vcmp.ne.f32.partialorder %v1608, %v1608
        %vm1771 = vcmp.ne.f32.partialorder %v1613, %v1613
        %vm1772 = vcmp.ne.f32.partialorder %v1618, %v1618
        %vm1773 = vcmp.ne.f32.partialorder %v1623, %v1623
        %vm1774 = vcmp.ne.f32.partialorder %v1628, %v1628
        %vm1775 = vcmp.ne.f32.partialorder %v1633, %v1633
        %vm1776 = vcmp.ne.f32.partialorder %v1638, %v1638
        %vm1777 = vcmp.ne.f32.partialorder %v1643, %v1643
        %vm1778 = vcmp.ne.f32.partialorder %v1648, %v1648
        %vm1779 = vcmp.ne.f32.partialorder %v1653, %v1653
        %vm1780 = vcmp.ne.f32.partialorder %v1658, %v1658
        %vm1781 = vcmp.ne.f32.partialorder %v1663, %v1663
        %vm1782 = vcmp.ne.f32.partialorder %v1668, %v1668
        %vm1783 = vcmp.ne.f32.partialorder %v1673, %v1673
        %vm1784 = vcmp.ne.f32.partialorder %v1678, %v1678
        %vm1785 = vcmp.ne.f32.partialorder %v1683, %v1683
        %vm1786 = vcmp.ne.f32.partialorder %v1688, %v1688
        %vm1787 = vcmp.ne.f32.partialorder %v1693, %v1693
        %vm1788 = vcmp.ne.f32.partialorder %v1698, %v1698
        %vm1789 = vcmp.ne.f32.partialorder %v1703, %v1703
        %vm1790 = vcmp.ne.f32.partialorder %v1708, %v1708
        %vm1791 = vcmp.ne.f32.partialorder %v1713, %v1713
        %vm1792 = vcmp.ne.f32.partialorder %v1718, %v1718
        %vm1793 = vcmp.ne.f32.partialorder %v1723, %v1723
        %vm1794 = vcmp.ne.f32.partialorder %v1728, %v1728
        %v1795 = vadd.f32 %v1573, 0.0
        %v1796 = vadd.f32 %v1578, 0.0
        %v1797 = vadd.f32 %v1583, 0.0
        %v1798 = vadd.f32 %v1588, 0.0
        %v1799 = vadd.f32 %v1593, 0.0
        %v1800 = vadd.f32 %v1598, 0.0
        %v1801 = vadd.f32 %v1603, 0.0
        %v1802 = vadd.f32 %v1608, 0.0
        %v1803 = vadd.f32 %v1613, 0.0
        %v1804 = vadd.f32 %v1618, 0.0
        %v1805 = vadd.f32 %v1623, 0.0
        %v1806 = vadd.f32 %v1628, 0.0
        %v1807 = vadd.f32 %v1633, 0.0
        %v1808 = vadd.f32 %v1638, 0.0
        %v1809 = vadd.f32 %v1643, 0.0
        %v1810 = vadd.f32 %v1648, 0.0
        %v1811 = vadd.f32 %v1653, 0.0
        %v1812 = vadd.f32 %v1658, 0.0
        %v1813 = vadd.f32 %v1663, 0.0
        %v1814 = vadd.f32 %v1668, 0.0
        %v1815 = vadd.f32 %v1673, 0.0
        %v1816 = vadd.f32 %v1678, 0.0
        %v1817 = vadd.f32 %v1683, 0.0
        %v1818 = vadd.f32 %v1688, 0.0
        %v1819 = vadd.f32 %v1693, 0.0
        %v1820 = vadd.f32 %v1698, 0.0
        %v1821 = vadd.f32 %v1703, 0.0
        %v1822 = vadd.f32 %v1708, 0.0
        %v1823 = vadd.f32 %v1713, 0.0
        %v1824 = vadd.f32 %v1718, 0.0
        %v1825 = vadd.f32 %v1723, 0.0
        %v1826 = vadd.f32 %v1728, 0.0
        %v1827 = vand.u32 2147483647, %v1573
        %v1828 = vand.u32 2147483647, %v1578
        %v1829 = vand.u32 2147483647, %v1583
        %v1830 = vand.u32 2147483647, %v1588
        %v1831 = vand.u32 2147483647, %v1593
        %v1832 = vand.u32 2147483647, %v1598
        %v1833 = vand.u32 2147483647, %v1603
        %v1834 = vand.u32 2147483647, %v1608
        %v1835 = vand.u32 2147483647, %v1613
        %v1836 = vand.u32 2147483647, %v1618
        %v1837 = vand.u32 2147483647, %v1623
        %v1838 = vand.u32 2147483647, %v1628
        %v1839 = vand.u32 2147483647, %v1633
        %v1840 = vand.u32 2147483647, %v1638
        %v1841 = vand.u32 2147483647, %v1643
        %v1842 = vand.u32 2147483647, %v1648
        %v1843 = vand.u32 2147483647, %v1653
        %v1844 = vand.u32 2147483647, %v1658
        %v1845 = vand.u32 2147483647, %v1663
        %v1846 = vand.u32 2147483647, %v1668
        %v1847 = vand.u32 2147483647, %v1673
        %v1848 = vand.u32 2147483647, %v1678
        %v1849 = vand.u32 2147483647, %v1683
        %v1850 = vand.u32 2147483647, %v1688
        %v1851 = vand.u32 2147483647, %v1693
        %v1852 = vand.u32 2147483647, %v1698
        %v1853 = vand.u32 2147483647, %v1703
        %v1854 = vand.u32 2147483647, %v1708
        %v1855 = vand.u32 2147483647, %v1713
        %v1856 = vand.u32 2147483647, %v1718
        %v1857 = vand.u32 2147483647, %v1723
        %v1858 = vand.u32 2147483647, %v1728
        %v1859 = vsub.f32 0.0, %v1827
        %v1860 = vsub.f32 0.0, %v1828
        %v1861 = vsub.f32 0.0, %v1829
        %v1862 = vsub.f32 0.0, %v1830
        %v1863 = vsub.f32 0.0, %v1831
        %v1864 = vsub.f32 0.0, %v1832
        %v1865 = vsub.f32 0.0, %v1833
        %v1866 = vsub.f32 0.0, %v1834
        %v1867 = vsub.f32 0.0, %v1835
        %v1868 = vsub.f32 0.0, %v1836
        %v1869 = vsub.f32 0.0, %v1837
        %v1870 = vsub.f32 0.0, %v1838
        %v1871 = vsub.f32 0.0, %v1839
        %v1872 = vsub.f32 0.0, %v1840
        %v1873 = vsub.f32 0.0, %v1841
        %v1874 = vsub.f32 0.0, %v1842
        %v1875 = vsub.f32 0.0, %v1843
        %v1876 = vsub.f32 0.0, %v1844
        %v1877 = vsub.f32 0.0, %v1845
        %v1878 = vsub.f32 0.0, %v1846
        %v1879 = vsub.f32 0.0, %v1847
        %v1880 = vsub.f32 0.0, %v1848
        %v1881 = vsub.f32 0.0, %v1849
        %v1882 = vsub.f32 0.0, %v1850
        %v1883 = vsub.f32 0.0, %v1851
        %v1884 = vsub.f32 0.0, %v1852
        %v1885 = vsub.f32 0.0, %v1853
        %v1886 = vsub.f32 0.0, %v1854
        %v1887 = vsub.f32 0.0, %v1855
        %v1888 = vsub.f32 0.0, %v1856
        %v1889 = vsub.f32 0.0, %v1857
        %v1890 = vsub.f32 0.0, %v1858
        %v1891 = vmul.f32 %v1859, 1.442695
        %v1892 = vpow.pop %v1891
        %v1893 = vmul.f32 %v1860, 1.442695
        %v1894 = vpow.pop %v1893
        %v1895 = vmul.f32 %v1861, 1.442695
        %v1896 = vpow.pop %v1895
        %v1897 = vmul.f32 %v1862, 1.442695
        %v1898 = vpow.pop %v1897
        %v1899 = vmul.f32 %v1863, 1.442695
        %v1900 = vpow.pop %v1899
        %v1901 = vmul.f32 %v1864, 1.442695
        %v1902 = vpow.pop %v1901
        %v1903 = vmul.f32 %v1865, 1.442695
        %v1904 = vpow.pop %v1903
        %v1905 = vmul.f32 %v1866, 1.442695
        %v1906 = vpow.pop %v1905
        %v1907 = vmul.f32 %v1867, 1.442695
        %v1908 = vpow.pop %v1907
        %v1909 = vmul.f32 %v1868, 1.442695
        %v1910 = vpow.pop %v1909
        %v1911 = vmul.f32 %v1869, 1.442695
        %v1912 = vpow.pop %v1911
        %v1913 = vmul.f32 %v1870, 1.442695
        %v1914 = vpow.pop %v1913
        %v1915 = vmul.f32 %v1871, 1.442695
        %v1916 = vpow.pop %v1915
        %v1917 = vmul.f32 %v1872, 1.442695
        %v1918 = vpow.pop %v1917
        %v1919 = vmul.f32 %v1873, 1.442695
        %v1920 = vpow.pop %v1919
        %v1921 = vmul.f32 %v1874, 1.442695
        %v1922 = vpow.pop %v1921
        %v1923 = vmul.f32 %v1875, 1.442695
        %v1924 = vpow.pop %v1923
        %v1925 = vmul.f32 %v1876, 1.442695
        %v1926 = vpow.pop %v1925
        %v1927 = vmul.f32 %v1877, 1.442695
        %v1928 = vpow.pop %v1927
        %v1929 = vmul.f32 %v1878, 1.442695
        %v1930 = vpow.pop %v1929
        %v1931 = vmul.f32 %v1879, 1.442695
        %v1932 = vpow.pop %v1931
        %v1933 = vmul.f32 %v1880, 1.442695
        %v1934 = vpow.pop %v1933
        %v1935 = vmul.f32 %v1881, 1.442695
        %v1936 = vpow.pop %v1935
        %v1937 = vmul.f32 %v1882, 1.442695
        %v1938 = vpow.pop %v1937
        %v1939 = vmul.f32 %v1883, 1.442695
        %v1940 = vpow.pop %v1939
        %v1941 = vmul.f32 %v1884, 1.442695
        %v1942 = vpow.pop %v1941
        %v1943 = vmul.f32 %v1885, 1.442695
        %v1944 = vpow.pop %v1943
        %v1945 = vmul.f32 %v1886, 1.442695
        %v1946 = vpow.pop %v1945
        %v1947 = vmul.f32 %v1887, 1.442695
        %v1948 = vpow.pop %v1947
        %v1949 = vmul.f32 %v1888, 1.442695
        %v1950 = vpow.pop %v1949
        %v1951 = vmul.f32 %v1889, 1.442695
        %v1952 = vpow.pop %v1951
        %v1953 = vmul.f32 %v1890, 1.442695
        %v1954 = vpow.pop %v1953
        %v1955 = vadd.f32 %v1892, 1.0
        %v1956 = vlog2.pop %v1955
        %v1957 = vmul.f32 %v1956, 0.6931472
        %v1958 = vmul.f32 -0.5, %v1892
        %v1959 = vadd.f32 %v1958, 1.0
        %v1960 = vmul.f32 %v1959, %v1892
        %v1961 = vand.u32 2147483647, %v1892
        %vm1962 = vcmp.lt.f32.partialorder %v1961, 0.0004427343
        %v1963 = vsel %vm1962, %v1960, %v1957
        %v1964 = vadd.f32 %v1894, 1.0
        %v1965 = vlog2.pop %v1964
        %v1966 = vmul.f32 %v1965, 0.6931472
        %v1967 = vmul.f32 -0.5, %v1894
        %v1968 = vadd.f32 %v1967, 1.0
        %v1969 = vmul.f32 %v1968, %v1894
        %v1970 = vand.u32 2147483647, %v1894
        %vm1971 = vcmp.lt.f32.partialorder %v1970, 0.0004427343
        %v1972 = vsel %vm1971, %v1969, %v1966
        %v1973 = vadd.f32 %v1896, 1.0
        %v1974 = vlog2.pop %v1973
        %v1975 = vmul.f32 %v1974, 0.6931472
        %v1976 = vmul.f32 -0.5, %v1896
        %v1977 = vadd.f32 %v1976, 1.0
        %v1978 = vmul.f32 %v1977, %v1896
        %v1979 = vand.u32 2147483647, %v1896
        %vm1980 = vcmp.lt.f32.partialorder %v1979, 0.0004427343
        %v1981 = vsel %vm1980, %v1978, %v1975
        %v1982 = vadd.f32 %v1898, 1.0
        %v1983 = vlog2.pop %v1982
        %v1984 = vmul.f32 %v1983, 0.6931472
        %v1985 = vmul.f32 -0.5, %v1898
        %v1986 = vadd.f32 %v1985, 1.0
        %v1987 = vmul.f32 %v1986, %v1898
        %v1988 = vand.u32 2147483647, %v1898
        %vm1989 = vcmp.lt.f32.partialorder %v1988, 0.0004427343
        %v1990 = vsel %vm1989, %v1987, %v1984
        %v1991 = vadd.f32 %v1900, 1.0
        %v1992 = vlog2.pop %v1991
        %v1993 = vmul.f32 %v1992, 0.6931472
        %v1994 = vmul.f32 -0.5, %v1900
        %v1995 = vadd.f32 %v1994, 1.0
        %v1996 = vmul.f32 %v1995, %v1900
        %v1997 = vand.u32 2147483647, %v1900
        %vm1998 = vcmp.lt.f32.partialorder %v1997, 0.0004427343
        %v1999 = vsel %vm1998, %v1996, %v1993
        %v2000 = vadd.f32 %v1902, 1.0
        %v2001 = vlog2.pop %v2000
        %v2002 = vmul.f32 %v2001, 0.6931472
        %v2003 = vmul.f32 -0.5, %v1902
        %v2004 = vadd.f32 %v2003, 1.0
        %v2005 = vmul.f32 %v2004, %v1902
        %v2006 = vand.u32 2147483647, %v1902
        %vm2007 = vcmp.lt.f32.partialorder %v2006, 0.0004427343
        %v2008 = vsel %vm2007, %v2005, %v2002
        %v2009 = vadd.f32 %v1904, 1.0
        %v2010 = vlog2.pop %v2009
        %v2011 = vmul.f32 %v2010, 0.6931472
        %v2012 = vmul.f32 -0.5, %v1904
        %v2013 = vadd.f32 %v2012, 1.0
        %v2014 = vmul.f32 %v2013, %v1904
        %v2015 = vand.u32 2147483647, %v1904
        %vm2016 = vcmp.lt.f32.partialorder %v2015, 0.0004427343
        %v2017 = vsel %vm2016, %v2014, %v2011
        %v2018 = vadd.f32 %v1906, 1.0
        %v2019 = vlog2.pop %v2018
        %v2020 = vmul.f32 %v2019, 0.6931472
        %v2021 = vmul.f32 -0.5, %v1906
        %v2022 = vadd.f32 %v2021, 1.0
        %v2023 = vmul.f32 %v2022, %v1906
        %v2024 = vand.u32 2147483647, %v1906
        %vm2025 = vcmp.lt.f32.partialorder %v2024, 0.0004427343
        %v2026 = vsel %vm2025, %v2023, %v2020
        %v2027 = vadd.f32 %v1908, 1.0
        %v2028 = vlog2.pop %v2027
        %v2029 = vmul.f32 %v2028, 0.6931472
        %v2030 = vmul.f32 -0.5, %v1908
        %v2031 = vadd.f32 %v2030, 1.0
        %v2032 = vmul.f32 %v2031, %v1908
        %v2033 = vand.u32 2147483647, %v1908
        %vm2034 = vcmp.lt.f32.partialorder %v2033, 0.0004427343
        %v2035 = vsel %vm2034, %v2032, %v2029
        %v2036 = vadd.f32 %v1910, 1.0
        %v2037 = vlog2.pop %v2036
        %v2038 = vmul.f32 %v2037, 0.6931472
        %v2039 = vmul.f32 -0.5, %v1910
        %v2040 = vadd.f32 %v2039, 1.0
        %v2041 = vmul.f32 %v2040, %v1910
        %v2042 = vand.u32 2147483647, %v1910
        %vm2043 = vcmp.lt.f32.partialorder %v2042, 0.0004427343
        %v2044 = vsel %vm2043, %v2041, %v2038
        %v2045 = vadd.f32 %v1912, 1.0
        %v2046 = vlog2.pop %v2045
        %v2047 = vmul.f32 %v2046, 0.6931472
        %v2048 = vmul.f32 -0.5, %v1912
        %v2049 = vadd.f32 %v2048, 1.0
        %v2050 = vmul.f32 %v2049, %v1912
        %v2051 = vand.u32 2147483647, %v1912
        %vm2052 = vcmp.lt.f32.partialorder %v2051, 0.0004427343
        %v2053 = vsel %vm2052, %v2050, %v2047
        %v2054 = vadd.f32 %v1914, 1.0
        %v2055 = vlog2.pop %v2054
        %v2056 = vmul.f32 %v2055, 0.6931472
        %v2057 = vmul.f32 -0.5, %v1914
        %v2058 = vadd.f32 %v2057, 1.0
        %v2059 = vmul.f32 %v2058, %v1914
        %v2060 = vand.u32 2147483647, %v1914
        %vm2061 = vcmp.lt.f32.partialorder %v2060, 0.0004427343
        %v2062 = vsel %vm2061, %v2059, %v2056
        %v2063 = vadd.f32 %v1916, 1.0
        %v2064 = vlog2.pop %v2063
        %v2065 = vmul.f32 %v2064, 0.6931472
        %v2066 = vmul.f32 -0.5, %v1916
        %v2067 = vadd.f32 %v2066, 1.0
        %v2068 = vmul.f32 %v2067, %v1916
        %v2069 = vand.u32 2147483647, %v1916
        %vm2070 = vcmp.lt.f32.partialorder %v2069, 0.0004427343
        %v2071 = vsel %vm2070, %v2068, %v2065
        %v2072 = vadd.f32 %v1918, 1.0
        %v2073 = vlog2.pop %v2072
        %v2074 = vmul.f32 %v2073, 0.6931472
        %v2075 = vmul.f32 -0.5, %v1918
        %v2076 = vadd.f32 %v2075, 1.0
        %v2077 = vmul.f32 %v2076, %v1918
        %v2078 = vand.u32 2147483647, %v1918
        %vm2079 = vcmp.lt.f32.partialorder %v2078, 0.0004427343
        %v2080 = vsel %vm2079, %v2077, %v2074
        %v2081 = vadd.f32 %v1920, 1.0
        %v2082 = vlog2.pop %v2081
        %v2083 = vmul.f32 %v2082, 0.6931472
        %v2084 = vmul.f32 -0.5, %v1920
        %v2085 = vadd.f32 %v2084, 1.0
        %v2086 = vmul.f32 %v2085, %v1920
        %v2087 = vand.u32 2147483647, %v1920
        %vm2088 = vcmp.lt.f32.partialorder %v2087, 0.0004427343
        %v2089 = vsel %vm2088, %v2086, %v2083
        %v2090 = vadd.f32 %v1922, 1.0
        %v2091 = vlog2.pop %v2090
        %v2092 = vmul.f32 %v2091, 0.6931472
        %v2093 = vmul.f32 -0.5, %v1922
        %v2094 = vadd.f32 %v2093, 1.0
        %v2095 = vmul.f32 %v2094, %v1922
        %v2096 = vand.u32 2147483647, %v1922
        %vm2097 = vcmp.lt.f32.partialorder %v2096, 0.0004427343
        %v2098 = vsel %vm2097, %v2095, %v2092
        %v2099 = vadd.f32 %v1924, 1.0
        %v2100 = vlog2.pop %v2099
        %v2101 = vmul.f32 %v2100, 0.6931472
        %v2102 = vmul.f32 -0.5, %v1924
        %v2103 = vadd.f32 %v2102, 1.0
        %v2104 = vmul.f32 %v2103, %v1924
        %v2105 = vand.u32 2147483647, %v1924
        %vm2106 = vcmp.lt.f32.partialorder %v2105, 0.0004427343
        %v2107 = vsel %vm2106, %v2104, %v2101
        %v2108 = vadd.f32 %v1926, 1.0
        %v2109 = vlog2.pop %v2108
        %v2110 = vmul.f32 %v2109, 0.6931472
        %v2111 = vmul.f32 -0.5, %v1926
        %v2112 = vadd.f32 %v2111, 1.0
        %v2113 = vmul.f32 %v2112, %v1926
        %v2114 = vand.u32 2147483647, %v1926
        %vm2115 = vcmp.lt.f32.partialorder %v2114, 0.0004427343
        %v2116 = vsel %vm2115, %v2113, %v2110
        %v2117 = vadd.f32 %v1928, 1.0
        %v2118 = vlog2.pop %v2117
        %v2119 = vmul.f32 %v2118, 0.6931472
        %v2120 = vmul.f32 -0.5, %v1928
        %v2121 = vadd.f32 %v2120, 1.0
        %v2122 = vmul.f32 %v2121, %v1928
        %v2123 = vand.u32 2147483647, %v1928
        %vm2124 = vcmp.lt.f32.partialorder %v2123, 0.0004427343
        %v2125 = vsel %vm2124, %v2122, %v2119
        %v2126 = vadd.f32 %v1930, 1.0
        %v2127 = vlog2.pop %v2126
        %v2128 = vmul.f32 %v2127, 0.6931472
        %v2129 = vmul.f32 -0.5, %v1930
        %v2130 = vadd.f32 %v2129, 1.0
        %v2131 = vmul.f32 %v2130, %v1930
        %v2132 = vand.u32 2147483647, %v1930
        %vm2133 = vcmp.lt.f32.partialorder %v2132, 0.0004427343
        %v2134 = vsel %vm2133, %v2131, %v2128
        %v2135 = vadd.f32 %v1932, 1.0
        %v2136 = vlog2.pop %v2135
        %v2137 = vmul.f32 %v2136, 0.6931472
        %v2138 = vmul.f32 -0.5, %v1932
        %v2139 = vadd.f32 %v2138, 1.0
        %v2140 = vmul.f32 %v2139, %v1932
        %v2141 = vand.u32 2147483647, %v1932
        %vm2142 = vcmp.lt.f32.partialorder %v2141, 0.0004427343
        %v2143 = vsel %vm2142, %v2140, %v2137
        %v2144 = vadd.f32 %v1934, 1.0
        %v2145 = vlog2.pop %v2144
        %v2146 = vmul.f32 %v2145, 0.6931472
        %v2147 = vmul.f32 -0.5, %v1934
        %v2148 = vadd.f32 %v2147, 1.0
        %v2149 = vmul.f32 %v2148, %v1934
        %v2150 = vand.u32 2147483647, %v1934
        %vm2151 = vcmp.lt.f32.partialorder %v2150, 0.0004427343
        %v2152 = vsel %vm2151, %v2149, %v2146
        %v2153 = vadd.f32 %v1936, 1.0
        %v2154 = vlog2.pop %v2153
        %v2155 = vmul.f32 %v2154, 0.6931472
        %v2156 = vmul.f32 -0.5, %v1936
        %v2157 = vadd.f32 %v2156, 1.0
        %v2158 = vmul.f32 %v2157, %v1936
        %v2159 = vand.u32 2147483647, %v1936
        %vm2160 = vcmp.lt.f32.partialorder %v2159, 0.0004427343
        %v2161 = vsel %vm2160, %v2158, %v2155
        %v2162 = vadd.f32 %v1938, 1.0
        %v2163 = vlog2.pop %v2162
        %v2164 = vmul.f32 %v2163, 0.6931472
        %v2165 = vmul.f32 -0.5, %v1938
        %v2166 = vadd.f32 %v2165, 1.0
        %v2167 = vmul.f32 %v2166, %v1938
        %v2168 = vand.u32 2147483647, %v1938
        %vm2169 = vcmp.lt.f32.partialorder %v2168, 0.0004427343
        %v2170 = vsel %vm2169, %v2167, %v2164
        %v2171 = vadd.f32 %v1940, 1.0
        %v2172 = vlog2.pop %v2171
        %v2173 = vmul.f32 %v2172, 0.6931472
        %v2174 = vmul.f32 -0.5, %v1940
        %v2175 = vadd.f32 %v2174, 1.0
        %v2176 = vmul.f32 %v2175, %v1940
        %v2177 = vand.u32 2147483647, %v1940
        %vm2178 = vcmp.lt.f32.partialorder %v2177, 0.0004427343
        %v2179 = vsel %vm2178, %v2176, %v2173
        %v2180 = vadd.f32 %v1942, 1.0
        %v2181 = vlog2.pop %v2180
        %v2182 = vmul.f32 %v2181, 0.6931472
        %v2183 = vmul.f32 -0.5, %v1942
        %v2184 = vadd.f32 %v2183, 1.0
        %v2185 = vmul.f32 %v2184, %v1942
        %v2186 = vand.u32 2147483647, %v1942
        %vm2187 = vcmp.lt.f32.partialorder %v2186, 0.0004427343
        %v2188 = vsel %vm2187, %v2185, %v2182
        %v2189 = vadd.f32 %v1944, 1.0
        %v2190 = vlog2.pop %v2189
        %v2191 = vmul.f32 %v2190, 0.6931472
        %v2192 = vmul.f32 -0.5, %v1944
        %v2193 = vadd.f32 %v2192, 1.0
        %v2194 = vmul.f32 %v2193, %v1944
        %v2195 = vand.u32 2147483647, %v1944
        %vm2196 = vcmp.lt.f32.partialorder %v2195, 0.0004427343
        %v2197 = vsel %vm2196, %v2194, %v2191
        %v2198 = vadd.f32 %v1946, 1.0
        %v2199 = vlog2.pop %v2198
        %v2200 = vmul.f32 %v2199, 0.6931472
        %v2201 = vmul.f32 -0.5, %v1946
        %v2202 = vadd.f32 %v2201, 1.0
        %v2203 = vmul.f32 %v2202, %v1946
        %v2204 = vand.u32 2147483647, %v1946
        %vm2205 = vcmp.lt.f32.partialorder %v2204, 0.0004427343
        %v2206 = vsel %vm2205, %v2203, %v2200
        %v2207 = vadd.f32 %v1948, 1.0
        %v2208 = vlog2.pop %v2207
        %v2209 = vmul.f32 %v2208, 0.6931472
        %v2210 = vmul.f32 -0.5, %v1948
        %v2211 = vadd.f32 %v2210, 1.0
        %v2212 = vmul.f32 %v2211, %v1948
        %v2213 = vand.u32 2147483647, %v1948
        %vm2214 = vcmp.lt.f32.partialorder %v2213, 0.0004427343
        %v2215 = vsel %vm2214, %v2212, %v2209
        %v2216 = vadd.f32 %v1950, 1.0
        %v2217 = vlog2.pop %v2216
        %v2218 = vmul.f32 %v2217, 0.6931472
        %v2219 = vmul.f32 -0.5, %v1950
        %v2220 = vadd.f32 %v2219, 1.0
        %v2221 = vmul.f32 %v2220, %v1950
        %v2222 = vand.u32 2147483647, %v1950
        %vm2223 = vcmp.lt.f32.partialorder %v2222, 0.0004427343
        %v2224 = vsel %vm2223, %v2221, %v2218
        %v2225 = vadd.f32 %v1952, 1.0
        %v2226 = vlog2.pop %v2225
        %v2227 = vmul.f32 %v2226, 0.6931472
        %v2228 = vmul.f32 -0.5, %v1952
        %v2229 = vadd.f32 %v2228, 1.0
        %v2230 = vmul.f32 %v2229, %v1952
        %v2231 = vand.u32 2147483647, %v1952
        %vm2232 = vcmp.lt.f32.partialorder %v2231, 0.0004427343
        %v2233 = vsel %vm2232, %v2230, %v2227
        %v2234 = vadd.f32 %v1954, 1.0
        %v2235 = vlog2.pop %v2234
        %v2236 = vmul.f32 %v2235, 0.6931472
        %v2237 = vmul.f32 -0.5, %v1954
        %v2238 = vadd.f32 %v2237, 1.0
        %v2239 = vmul.f32 %v2238, %v1954
        %v2240 = vand.u32 2147483647, %v1954
        %vm2241 = vcmp.lt.f32.partialorder %v2240, 0.0004427343
        %v2242 = vsel %vm2241, %v2239, %v2236
        %v2243 = vadd.f32 %v1731, %v1963
        %v2244 = vadd.f32 %v1732, %v1972
        %v2245 = vadd.f32 %v1733, %v1981
        %v2246 = vadd.f32 %v1734, %v1990
        %v2247 = vadd.f32 %v1735, %v1999
        %v2248 = vadd.f32 %v1736, %v2008
        %v2249 = vadd.f32 %v1737, %v2017
        %v2250 = vadd.f32 %v1738, %v2026
        %v2251 = vadd.f32 %v1739, %v2035
        %v2252 = vadd.f32 %v1740, %v2044
        %v2253 = vadd.f32 %v1741, %v2053
        %v2254 = vadd.f32 %v1742, %v2062
        %v2255 = vadd.f32 %v1743, %v2071
        %v2256 = vadd.f32 %v1744, %v2080
        %v2257 = vadd.f32 %v1745, %v2089
        %v2258 = vadd.f32 %v1746, %v2098
        %v2259 = vadd.f32 %v1747, %v2107
        %v2260 = vadd.f32 %v1748, %v2116
        %v2261 = vadd.f32 %v1749, %v2125
        %v2262 = vadd.f32 %v1750, %v2134
        %v2263 = vadd.f32 %v1751, %v2143
        %v2264 = vadd.f32 %v1752, %v2152
        %v2265 = vadd.f32 %v1753, %v2161
        %v2266 = vadd.f32 %v1754, %v2170
        %v2267 = vadd.f32 %v1755, %v2179
        %v2268 = vadd.f32 %v1756, %v2188
        %v2269 = vadd.f32 %v1757, %v2197
        %v2270 = vadd.f32 %v1758, %v2206
        %v2271 = vadd.f32 %v1759, %v2215
        %v2272 = vadd.f32 %v1760, %v2224
        %v2273 = vadd.f32 %v1761, %v2233
        %v2274 = vadd.f32 %v1762, %v2242
        %v2275 = vsel %vm1763, %v1795, %v2243
        %v2276 = vsel %vm1764, %v1796, %v2244
        %v2277 = vsel %vm1765, %v1797, %v2245
        %v2278 = vsel %vm1766, %v1798, %v2246
        %v2279 = vsel %vm1767, %v1799, %v2247
        %v2280 = vsel %vm1768, %v1800, %v2248
        %v2281 = vsel %vm1769, %v1801, %v2249
        %v2282 = vsel %vm1770, %v1802, %v2250
        %v2283 = vsel %vm1771, %v1803, %v2251
        %v2284 = vsel %vm1772, %v1804, %v2252
        %v2285 = vsel %vm1773, %v1805, %v2253
        %v2286 = vsel %vm1774, %v1806, %v2254
        %v2287 = vsel %vm1775, %v1807, %v2255
        %v2288 = vsel %vm1776, %v1808, %v2256
        %v2289 = vsel %vm1777, %v1809, %v2257
        %v2290 = vsel %vm1778, %v1810, %v2258
        %v2291 = vsel %vm1779, %v1811, %v2259
        %v2292 = vsel %vm1780, %v1812, %v2260
        %v2293 = vsel %vm1781, %v1813, %v2261
        %v2294 = vsel %vm1782, %v1814, %v2262
        %v2295 = vsel %vm1783, %v1815, %v2263
        %v2296 = vsel %vm1784, %v1816, %v2264
        %v2297 = vsel %vm1785, %v1817, %v2265
        %v2298 = vsel %vm1786, %v1818, %v2266
        %v2299 = vsel %vm1787, %v1819, %v2267
        %v2300 = vsel %vm1788, %v1820, %v2268
        %v2301 = vsel %vm1789, %v1821, %v2269
        %v2302 = vsel %vm1790, %v1822, %v2270
        %v2303 = vsel %vm1791, %v1823, %v2271
        %v2304 = vsel %vm1792, %v1824, %v2272
        %v2305 = vsel %vm1793, %v1825, %v2273
        %v2306 = vsel %vm1794, %v1826, %v2274
        %v2307 = vld [vmem:[%s5] sm:$0xff]
        %v2308 = vld [vmem:[%s5 + $0x8] sm:$0xff]
        %v2309 = vld [vmem:[%s5 + $0x10] sm:$0xff]
        %v2310 = vld [vmem:[%s5 + $0x18] sm:$0xff]
        %v2311 = vld [vmem:[%s5 + $0x20] sm:$0xff]
        %v2312 = vld [vmem:[%s5 + $0x28] sm:$0xff]
        %v2313 = vld [vmem:[%s5 + $0x30] sm:$0xff]
        %v2314 = vld [vmem:[%s5 + $0x38] sm:$0xff]
        %v2315 = vld [vmem:[%s5 + $0x40] sm:$0xff]
        %v2316 = vld [vmem:[%s5 + $0x48] sm:$0xff]
        %v2317 = vld [vmem:[%s5 + $0x50] sm:$0xff]
        %v2318 = vld [vmem:[%s5 + $0x58] sm:$0xff]
        %v2319 = vld [vmem:[%s5 + $0x60] sm:$0xff]
        %v2320 = vld [vmem:[%s5 + $0x68] sm:$0xff]
        %v2321 = vld [vmem:[%s5 + $0x70] sm:$0xff]
        %v2322 = vld [vmem:[%s5 + $0x78] sm:$0xff]
        %v2323 = vld [vmem:[%s6] sm:$0x1]
        %v2325 = vlaneseq
        %v2326 = vshrl.u32 %v2325, 7
        %v2327 = vsub.s32 0, %v2326
        %v2328 = vrot.slane %v2323, %v2327
        %2330 = vmatprep.subr.mxu0 0.0
        %2331 = vmatpush1.msra.mxu0 %v2322
        %2332 = vmatprep.subr.mxu0 0.0
        %2333 = vmatpush1.msra.mxu0 %v2321
        %2334 = vmatprep.subr.mxu0 0.0
        %2335 = vmatpush1.msra.mxu0 %v2320
        %2336 = vmatprep.subr.mxu0 0.0
        %2337 = vmatpush1.msra.mxu0 %v2319
        %2338 = vmatprep.subr.mxu0 0.0
        %2339 = vmatpush1.msra.mxu0 %v2318
        %2340 = vmatprep.subr.mxu0 0.0
        %2341 = vmatpush1.msra.mxu0 %v2317
        %2342 = vmatprep.subr.mxu0 0.0
        %2343 = vmatpush1.msra.mxu0 %v2316
        %2344 = vmatprep.subr.mxu0 0.0
        %2345 = vmatpush1.msra.mxu0 %v2315
        %2346 = vmatprep.subr.mxu0 0.0
        %2347 = vmatpush1.msra.mxu0 %v2314
        %2348 = vmatprep.subr.mxu0 0.0
        %2349 = vmatpush1.msra.mxu0 %v2313
        %2350 = vmatprep.subr.mxu0 0.0
        %2351 = vmatpush1.msra.mxu0 %v2312
        %2352 = vmatprep.subr.mxu0 0.0
        %2353 = vmatpush1.msra.mxu0 %v2311
        %2354 = vmatprep.subr.mxu0 0.0
        %2355 = vmatpush1.msra.mxu0 %v2310
        %2356 = vmatprep.subr.mxu0 0.0
        %2357 = vmatpush1.msra.mxu0 %v2309
        %2358 = vmatprep.subr.mxu0 0.0
        %2359 = vmatpush1.msra.mxu0 %v2308
        %2360 = vmatprep.subr.mxu0 0.0
        %2361 = vmatpush1.msra.mxu0 %v2307
        %2362 = vmatprep.subr.mxu0 0.0
        %2363 = vmatpush2.msra.mxu0 0.0
        %2364 = vmatprep.subr.mxu0 0.0
        %2365 = vmatpush2.msra.mxu0 0.0
        %2366 = vmatprep.subr.mxu0 0.0
        %2367 = vmatpush2.msra.mxu0 0.0
        %2368 = vmatprep.subr.mxu0 0.0
        %2369 = vmatpush2.msra.mxu0 0.0
        %2370 = vmatprep.subr.mxu0 0.0
        %2371 = vmatpush2.msra.mxu0 0.0
        %2372 = vmatprep.subr.mxu0 0.0
        %2373 = vmatpush2.msra.mxu0 0.0
        %2374 = vmatprep.subr.mxu0 0.0
        %2375 = vmatpush2.msra.mxu0 0.0
        %2376 = vmatprep.subr.mxu0 0.0
        %2377 = vmatpush2.msra.mxu0 0.0
        %2378 = vmatprep.subr.mxu0 0.0
        %2379 = vmatpush2.msra.mxu0 0.0
        %2380 = vmatprep.subr.mxu0 0.0
        %2381 = vmatpush2.msra.mxu0 0.0
        %2382 = vmatprep.subr.mxu0 0.0
        %2383 = vmatpush2.msra.mxu0 0.0
        %2384 = vmatprep.subr.mxu0 0.0
        %2385 = vmatpush2.msra.mxu0 0.0
        %2386 = vmatprep.subr.mxu0 0.0
        %2387 = vmatpush2.msra.mxu0 0.0
        %2388 = vmatprep.subr.mxu0 0.0
        %2389 = vmatpush2.msra.mxu0 0.0
        %2390 = vmatprep.subr.mxu0 0.0
        %2391 = vmatpush2.msra.mxu0 0.0
        %2392 = vmatprep.subr.mxu0 0.0
        %2393 = vmatpush2.msra.mxu0 0.0
        %2394 = vmatprep.mubr.f32.mxu0 0.0
        %2395 = vmatmul.mubr.f32.gmra.mxu0 %v2275
        %v2396 = vpop.f32.mrf.mxu0
        %v2397 = vadd.f32 %v2328, %v2396
        %v2398 = vpop.f32.mrf.mxu0
        %2399 = vmatprep.mubr.f32.mxu0 0.0
        %2400 = vmatmul.mubr.f32.gmra.mxu0 %v2276
        %v2401 = vpop.f32.mrf.mxu0
        %v2402 = vadd.f32 %v2328, %v2401
        %v2403 = vpop.f32.mrf.mxu0
        %2404 = vmatprep.mubr.f32.mxu0 0.0
        %2405 = vmatmul.mubr.f32.gmra.mxu0 %v2277
        %v2406 = vpop.f32.mrf.mxu0
        %v2407 = vadd.f32 %v2328, %v2406
        %v2408 = vpop.f32.mrf.mxu0
        %2409 = vmatprep.mubr.f32.mxu0 0.0
        %2410 = vmatmul.mubr.f32.gmra.mxu0 %v2278
        %v2411 = vpop.f32.mrf.mxu0
        %v2412 = vadd.f32 %v2328, %v2411
        %v2413 = vpop.f32.mrf.mxu0
        %2414 = vmatprep.mubr.f32.mxu0 0.0
        %2415 = vmatmul.mubr.f32.gmra.mxu0 %v2279
        %v2416 = vpop.f32.mrf.mxu0
        %v2417 = vadd.f32 %v2328, %v2416
        %v2418 = vpop.f32.mrf.mxu0
        %2419 = vmatprep.mubr.f32.mxu0 0.0
        %2420 = vmatmul.mubr.f32.gmra.mxu0 %v2280
        %v2421 = vpop.f32.mrf.mxu0
        %v2422 = vadd.f32 %v2328, %v2421
        %v2423 = vpop.f32.mrf.mxu0
        %2424 = vmatprep.mubr.f32.mxu0 0.0
        %2425 = vmatmul.mubr.f32.gmra.mxu0 %v2281
        %v2426 = vpop.f32.mrf.mxu0
        %v2427 = vadd.f32 %v2328, %v2426
        %v2428 = vpop.f32.mrf.mxu0
        %2429 = vmatprep.mubr.f32.mxu0 0.0
        %2430 = vmatmul.mubr.f32.gmra.mxu0 %v2282
        %v2431 = vpop.f32.mrf.mxu0
        %v2432 = vadd.f32 %v2328, %v2431
        %v2433 = vpop.f32.mrf.mxu0
        %2434 = vmatprep.mubr.f32.mxu0 0.0
        %2435 = vmatmul.mubr.f32.gmra.mxu0 %v2283
        %v2436 = vpop.f32.mrf.mxu0
        %v2437 = vadd.f32 %v2328, %v2436
        %v2438 = vpop.f32.mrf.mxu0
        %2439 = vmatprep.mubr.f32.mxu0 0.0
        %2440 = vmatmul.mubr.f32.gmra.mxu0 %v2284
        %v2441 = vpop.f32.mrf.mxu0
        %v2442 = vadd.f32 %v2328, %v2441
        %v2443 = vpop.f32.mrf.mxu0
        %2444 = vmatprep.mubr.f32.mxu0 0.0
        %2445 = vmatmul.mubr.f32.gmra.mxu0 %v2285
        %v2446 = vpop.f32.mrf.mxu0
        %v2447 = vadd.f32 %v2328, %v2446
        %v2448 = vpop.f32.mrf.mxu0
        %2449 = vmatprep.mubr.f32.mxu0 0.0
        %2450 = vmatmul.mubr.f32.gmra.mxu0 %v2286
        %v2451 = vpop.f32.mrf.mxu0
        %v2452 = vadd.f32 %v2328, %v2451
        %v2453 = vpop.f32.mrf.mxu0
        %2454 = vmatprep.mubr.f32.mxu0 0.0
        %2455 = vmatmul.mubr.f32.gmra.mxu0 %v2287
        %v2456 = vpop.f32.mrf.mxu0
        %v2457 = vadd.f32 %v2328, %v2456
        %v2458 = vpop.f32.mrf.mxu0
        %2459 = vmatprep.mubr.f32.mxu0 0.0
        %2460 = vmatmul.mubr.f32.gmra.mxu0 %v2288
        %v2461 = vpop.f32.mrf.mxu0
        %v2462 = vadd.f32 %v2328, %v2461
        %v2463 = vpop.f32.mrf.mxu0
        %2464 = vmatprep.mubr.f32.mxu0 0.0
        %2465 = vmatmul.mubr.f32.gmra.mxu0 %v2289
        %v2466 = vpop.f32.mrf.mxu0
        %v2467 = vadd.f32 %v2328, %v2466
        %v2468 = vpop.f32.mrf.mxu0
        %2469 = vmatprep.mubr.f32.mxu0 0.0
        %2470 = vmatmul.mubr.f32.gmra.mxu0 %v2290
        %v2471 = vpop.f32.mrf.mxu0
        %v2472 = vadd.f32 %v2328, %v2471
        %v2473 = vpop.f32.mrf.mxu0
        %2474 = vmatprep.mubr.f32.mxu0 0.0
        %2475 = vmatmul.mubr.f32.gmra.mxu0 %v2291
        %v2476 = vpop.f32.mrf.mxu0
        %v2477 = vadd.f32 %v2328, %v2476
        %v2478 = vpop.f32.mrf.mxu0
        %2479 = vmatprep.mubr.f32.mxu0 0.0
        %2480 = vmatmul.mubr.f32.gmra.mxu0 %v2292
        %v2481 = vpop.f32.mrf.mxu0
        %v2482 = vadd.f32 %v2328, %v2481
        %v2483 = vpop.f32.mrf.mxu0
        %2484 = vmatprep.mubr.f32.mxu0 0.0
        %2485 = vmatmul.mubr.f32.gmra.mxu0 %v2293
        %v2486 = vpop.f32.mrf.mxu0
        %v2487 = vadd.f32 %v2328, %v2486
        %v2488 = vpop.f32.mrf.mxu0
        %2489 = vmatprep.mubr.f32.mxu0 0.0
        %2490 = vmatmul.mubr.f32.gmra.mxu0 %v2294
        %v2491 = vpop.f32.mrf.mxu0
        %v2492 = vadd.f32 %v2328, %v2491
        %v2493 = vpop.f32.mrf.mxu0
        %2494 = vmatprep.mubr.f32.mxu0 0.0
        %2495 = vmatmul.mubr.f32.gmra.mxu0 %v2295
        %v2496 = vpop.f32.mrf.mxu0
        %v2497 = vadd.f32 %v2328, %v2496
        %v2498 = vpop.f32.mrf.mxu0
        %2499 = vmatprep.mubr.f32.mxu0 0.0
        %2500 = vmatmul.mubr.f32.gmra.mxu0 %v2296
        %v2501 = vpop.f32.mrf.mxu0
        %v2502 = vadd.f32 %v2328, %v2501
        %v2503 = vpop.f32.mrf.mxu0
        %2504 = vmatprep.mubr.f32.mxu0 0.0
        %2505 = vmatmul.mubr.f32.gmra.mxu0 %v2297
        %v2506 = vpop.f32.mrf.mxu0
        %v2507 = vadd.f32 %v2328, %v2506
        %v2508 = vpop.f32.mrf.mxu0
        %2509 = vmatprep.mubr.f32.mxu0 0.0
        %2510 = vmatmul.mubr.f32.gmra.mxu0 %v2298
        %v2511 = vpop.f32.mrf.mxu0
        %v2512 = vadd.f32 %v2328, %v2511
        %v2513 = vpop.f32.mrf.mxu0
        %2514 = vmatprep.mubr.f32.mxu0 0.0
        %2515 = vmatmul.mubr.f32.gmra.mxu0 %v2299
        %v2516 = vpop.f32.mrf.mxu0
        %v2517 = vadd.f32 %v2328, %v2516
        %v2518 = vpop.f32.mrf.mxu0
        %2519 = vmatprep.mubr.f32.mxu0 0.0
        %2520 = vmatmul.mubr.f32.gmra.mxu0 %v2300
        %v2521 = vpop.f32.mrf.mxu0
        %v2522 = vadd.f32 %v2328, %v2521
        %v2523 = vpop.f32.mrf.mxu0
        %2524 = vmatprep.mubr.f32.mxu0 0.0
        %2525 = vmatmul.mubr.f32.gmra.mxu0 %v2301
        %v2526 = vpop.f32.mrf.mxu0
        %v2527 = vadd.f32 %v2328, %v2526
        %v2528 = vpop.f32.mrf.mxu0
        %2529 = vmatprep.mubr.f32.mxu0 0.0
        %2530 = vmatmul.mubr.f32.gmra.mxu0 %v2302
        %v2531 = vpop.f32.mrf.mxu0
        %v2532 = vadd.f32 %v2328, %v2531
        %v2533 = vpop.f32.mrf.mxu0
        %2534 = vmatprep.mubr.f32.mxu0 0.0
        %2535 = vmatmul.mubr.f32.gmra.mxu0 %v2303
        %v2536 = vpop.f32.mrf.mxu0
        %v2537 = vadd.f32 %v2328, %v2536
        %v2538 = vpop.f32.mrf.mxu0
        %2539 = vmatprep.mubr.f32.mxu0 0.0
        %2540 = vmatmul.mubr.f32.gmra.mxu0 %v2304
        %v2541 = vpop.f32.mrf.mxu0
        %v2542 = vadd.f32 %v2328, %v2541
        %v2543 = vpop.f32.mrf.mxu0
        %2544 = vmatprep.mubr.f32.mxu0 0.0
        %2545 = vmatmul.mubr.f32.gmra.mxu0 %v2305
        %v2546 = vpop.f32.mrf.mxu0
        %v2547 = vadd.f32 %v2328, %v2546
        %v2548 = vpop.f32.mrf.mxu0
        %2549 = vmatprep.mubr.f32.mxu0 0.0
        %2550 = vmatmul.mubr.f32.gmra.mxu0 %v2306
        %v2551 = vpop.f32.mrf.mxu0
        %v2552 = vadd.f32 %v2328, %v2551
        %v2553 = vpop.f32.mrf.mxu0
        %2554 = vdwg.mxu0
        %v2555 = vmax.f32 %v2397, 0.0
        %v2556 = vmax.f32 %v2402, 0.0
        %v2557 = vmax.f32 %v2407, 0.0
        %v2558 = vmax.f32 %v2412, 0.0
        %v2559 = vmax.f32 %v2417, 0.0
        %v2560 = vmax.f32 %v2422, 0.0
        %v2561 = vmax.f32 %v2427, 0.0
        %v2562 = vmax.f32 %v2432, 0.0
        %v2563 = vmax.f32 %v2437, 0.0
        %v2564 = vmax.f32 %v2442, 0.0
        %v2565 = vmax.f32 %v2447, 0.0
        %v2566 = vmax.f32 %v2452, 0.0
        %v2567 = vmax.f32 %v2457, 0.0
        %v2568 = vmax.f32 %v2462, 0.0
        %v2569 = vmax.f32 %v2467, 0.0
        %v2570 = vmax.f32 %v2472, 0.0
        %v2571 = vmax.f32 %v2477, 0.0
        %v2572 = vmax.f32 %v2482, 0.0
        %v2573 = vmax.f32 %v2487, 0.0
        %v2574 = vmax.f32 %v2492, 0.0
        %v2575 = vmax.f32 %v2497, 0.0
        %v2576 = vmax.f32 %v2502, 0.0
        %v2577 = vmax.f32 %v2507, 0.0
        %v2578 = vmax.f32 %v2512, 0.0
        %v2579 = vmax.f32 %v2517, 0.0
        %v2580 = vmax.f32 %v2522, 0.0
        %v2581 = vmax.f32 %v2527, 0.0
        %v2582 = vmax.f32 %v2532, 0.0
        %v2583 = vmax.f32 %v2537, 0.0
        %v2584 = vmax.f32 %v2542, 0.0
        %v2585 = vmax.f32 %v2547, 0.0
        %v2586 = vmax.f32 %v2552, 0.0
        %vm2587 = vcmp.ne.f32.partialorder %v2397, %v2397
        %vm2588 = vcmp.ne.f32.partialorder %v2402, %v2402
        %vm2589 = vcmp.ne.f32.partialorder %v2407, %v2407
        %vm2590 = vcmp.ne.f32.partialorder %v2412, %v2412
        %vm2591 = vcmp.ne.f32.partialorder %v2417, %v2417
        %vm2592 = vcmp.ne.f32.partialorder %v2422, %v2422
        %vm2593 = vcmp.ne.f32.partialorder %v2427, %v2427
        %vm2594 = vcmp.ne.f32.partialorder %v2432, %v2432
        %vm2595 = vcmp.ne.f32.partialorder %v2437, %v2437
        %vm2596 = vcmp.ne.f32.partialorder %v2442, %v2442
        %vm2597 = vcmp.ne.f32.partialorder %v2447, %v2447
        %vm2598 = vcmp.ne.f32.partialorder %v2452, %v2452
        %vm2599 = vcmp.ne.f32.partialorder %v2457, %v2457
        %vm2600 = vcmp.ne.f32.partialorder %v2462, %v2462
        %vm2601 = vcmp.ne.f32.partialorder %v2467, %v2467
        %vm2602 = vcmp.ne.f32.partialorder %v2472, %v2472
        %vm2603 = vcmp.ne.f32.partialorder %v2477, %v2477
        %vm2604 = vcmp.ne.f32.partialorder %v2482, %v2482
        %vm2605 = vcmp.ne.f32.partialorder %v2487, %v2487
        %vm2606 = vcmp.ne.f32.partialorder %v2492, %v2492
        %vm2607 = vcmp.ne.f32.partialorder %v2497, %v2497
        %vm2608 = vcmp.ne.f32.partialorder %v2502, %v2502
        %vm2609 = vcmp.ne.f32.partialorder %v2507, %v2507
        %vm2610 = vcmp.ne.f32.partialorder %v2512, %v2512
        %vm2611 = vcmp.ne.f32.partialorder %v2517, %v2517
        %vm2612 = vcmp.ne.f32.partialorder %v2522, %v2522
        %vm2613 = vcmp.ne.f32.partialorder %v2527, %v2527
        %vm2614 = vcmp.ne.f32.partialorder %v2532, %v2532
        %vm2615 = vcmp.ne.f32.partialorder %v2537, %v2537
        %vm2616 = vcmp.ne.f32.partialorder %v2542, %v2542
        %vm2617 = vcmp.ne.f32.partialorder %v2547, %v2547
        %vm2618 = vcmp.ne.f32.partialorder %v2552, %v2552
        %v2619 = vadd.f32 %v2397, 0.0
        %v2620 = vadd.f32 %v2402, 0.0
        %v2621 = vadd.f32 %v2407, 0.0
        %v2622 = vadd.f32 %v2412, 0.0
        %v2623 = vadd.f32 %v2417, 0.0
        %v2624 = vadd.f32 %v2422, 0.0
        %v2625 = vadd.f32 %v2427, 0.0
        %v2626 = vadd.f32 %v2432, 0.0
        %v2627 = vadd.f32 %v2437, 0.0
        %v2628 = vadd.f32 %v2442, 0.0
        %v2629 = vadd.f32 %v2447, 0.0
        %v2630 = vadd.f32 %v2452, 0.0
        %v2631 = vadd.f32 %v2457, 0.0
        %v2632 = vadd.f32 %v2462, 0.0
        %v2633 = vadd.f32 %v2467, 0.0
        %v2634 = vadd.f32 %v2472, 0.0
        %v2635 = vadd.f32 %v2477, 0.0
        %v2636 = vadd.f32 %v2482, 0.0
        %v2637 = vadd.f32 %v2487, 0.0
        %v2638 = vadd.f32 %v2492, 0.0
        %v2639 = vadd.f32 %v2497, 0.0
        %v2640 = vadd.f32 %v2502, 0.0
        %v2641 = vadd.f32 %v2507, 0.0
        %v2642 = vadd.f32 %v2512, 0.0
        %v2643 = vadd.f32 %v2517, 0.0
        %v2644 = vadd.f32 %v2522, 0.0
        %v2645 = vadd.f32 %v2527, 0.0
        %v2646 = vadd.f32 %v2532, 0.0
        %v2647 = vadd.f32 %v2537, 0.0
        %v2648 = vadd.f32 %v2542, 0.0
        %v2649 = vadd.f32 %v2547, 0.0
        %v2650 = vadd.f32 %v2552, 0.0
        %v2651 = vand.u32 2147483647, %v2397
        %v2652 = vand.u32 2147483647, %v2402
        %v2653 = vand.u32 2147483647, %v2407
        %v2654 = vand.u32 2147483647, %v2412
        %v2655 = vand.u32 2147483647, %v2417
        %v2656 = vand.u32 2147483647, %v2422
        %v2657 = vand.u32 2147483647, %v2427
        %v2658 = vand.u32 2147483647, %v2432
        %v2659 = vand.u32 2147483647, %v2437
        %v2660 = vand.u32 2147483647, %v2442
        %v2661 = vand.u32 2147483647, %v2447
        %v2662 = vand.u32 2147483647, %v2452
        %v2663 = vand.u32 2147483647, %v2457
        %v2664 = vand.u32 2147483647, %v2462
        %v2665 = vand.u32 2147483647, %v2467
        %v2666 = vand.u32 2147483647, %v2472
        %v2667 = vand.u32 2147483647, %v2477
        %v2668 = vand.u32 2147483647, %v2482
        %v2669 = vand.u32 2147483647, %v2487
        %v2670 = vand.u32 2147483647, %v2492
        %v2671 = vand.u32 2147483647, %v2497
        %v2672 = vand.u32 2147483647, %v2502
        %v2673 = vand.u32 2147483647, %v2507
        %v2674 = vand.u32 2147483647, %v2512
        %v2675 = vand.u32 2147483647, %v2517
        %v2676 = vand.u32 2147483647, %v2522
        %v2677 = vand.u32 2147483647, %v2527
        %v2678 = vand.u32 2147483647, %v2532
        %v2679 = vand.u32 2147483647, %v2537
        %v2680 = vand.u32 2147483647, %v2542
        %v2681 = vand.u32 2147483647, %v2547
        %v2682 = vand.u32 2147483647, %v2552
        %v2683 = vsub.f32 0.0, %v2651
        %v2684 = vsub.f32 0.0, %v2652
        %v2685 = vsub.f32 0.0, %v2653
        %v2686 = vsub.f32 0.0, %v2654
        %v2687 = vsub.f32 0.0, %v2655
        %v2688 = vsub.f32 0.0, %v2656
        %v2689 = vsub.f32 0.0, %v2657
        %v2690 = vsub.f32 0.0, %v2658
        %v2691 = vsub.f32 0.0, %v2659
        %v2692 = vsub.f32 0.0, %v2660
        %v2693 = vsub.f32 0.0, %v2661
        %v2694 = vsub.f32 0.0, %v2662
        %v2695 = vsub.f32 0.0, %v2663
        %v2696 = vsub.f32 0.0, %v2664
        %v2697 = vsub.f32 0.0, %v2665
        %v2698 = vsub.f32 0.0, %v2666
        %v2699 = vsub.f32 0.0, %v2667
        %v2700 = vsub.f32 0.0, %v2668
        %v2701 = vsub.f32 0.0, %v2669
        %v2702 = vsub.f32 0.0, %v2670
        %v2703 = vsub.f32 0.0, %v2671
        %v2704 = vsub.f32 0.0, %v2672
        %v2705 = vsub.f32 0.0, %v2673
        %v2706 = vsub.f32 0.0, %v2674
        %v2707 = vsub.f32 0.0, %v2675
        %v2708 = vsub.f32 0.0, %v2676
        %v2709 = vsub.f32 0.0, %v2677
        %v2710 = vsub.f32 0.0, %v2678
        %v2711 = vsub.f32 0.0, %v2679
        %v2712 = vsub.f32 0.0, %v2680
        %v2713 = vsub.f32 0.0, %v2681
        %v2714 = vsub.f32 0.0, %v2682
        %v2715 = vmul.f32 %v2683, 1.442695
        %v2716 = vpow.pop %v2715
        %v2717 = vmul.f32 %v2684, 1.442695
        %v2718 = vpow.pop %v2717
        %v2719 = vmul.f32 %v2685, 1.442695
        %v2720 = vpow.pop %v2719
        %v2721 = vmul.f32 %v2686, 1.442695
        %v2722 = vpow.pop %v2721
        %v2723 = vmul.f32 %v2687, 1.442695
        %v2724 = vpow.pop %v2723
        %v2725 = vmul.f32 %v2688, 1.442695
        %v2726 = vpow.pop %v2725
        %v2727 = vmul.f32 %v2689, 1.442695
        %v2728 = vpow.pop %v2727
        %v2729 = vmul.f32 %v2690, 1.442695
        %v2730 = vpow.pop %v2729
        %v2731 = vmul.f32 %v2691, 1.442695
        %v2732 = vpow.pop %v2731
        %v2733 = vmul.f32 %v2692, 1.442695
        %v2734 = vpow.pop %v2733
        %v2735 = vmul.f32 %v2693, 1.442695
        %v2736 = vpow.pop %v2735
        %v2737 = vmul.f32 %v2694, 1.442695
        %v2738 = vpow.pop %v2737
        %v2739 = vmul.f32 %v2695, 1.442695
        %v2740 = vpow.pop %v2739
        %v2741 = vmul.f32 %v2696, 1.442695
        %v2742 = vpow.pop %v2741
        %v2743 = vmul.f32 %v2697, 1.442695
        %v2744 = vpow.pop %v2743
        %v2745 = vmul.f32 %v2698, 1.442695
        %v2746 = vpow.pop %v2745
        %v2747 = vmul.f32 %v2699, 1.442695
        %v2748 = vpow.pop %v2747
        %v2749 = vmul.f32 %v2700, 1.442695
        %v2750 = vpow.pop %v2749
        %v2751 = vmul.f32 %v2701, 1.442695
        %v2752 = vpow.pop %v2751
        %v2753 = vmul.f32 %v2702, 1.442695
        %v2754 = vpow.pop %v2753
        %v2755 = vmul.f32 %v2703, 1.442695
        %v2756 = vpow.pop %v2755
        %v2757 = vmul.f32 %v2704, 1.442695
        %v2758 = vpow.pop %v2757
        %v2759 = vmul.f32 %v2705, 1.442695
        %v2760 = vpow.pop %v2759
        %v2761 = vmul.f32 %v2706, 1.442695
        %v2762 = vpow.pop %v2761
        %v2763 = vmul.f32 %v2707, 1.442695
        %v2764 = vpow.pop %v2763
        %v2765 = vmul.f32 %v2708, 1.442695
        %v2766 = vpow.pop %v2765
        %v2767 = vmul.f32 %v2709, 1.442695
        %v2768 = vpow.pop %v2767
        %v2769 = vmul.f32 %v2710, 1.442695
        %v2770 = vpow.pop %v2769
        %v2771 = vmul.f32 %v2711, 1.442695
        %v2772 = vpow.pop %v2771
        %v2773 = vmul.f32 %v2712, 1.442695
        %v2774 = vpow.pop %v2773
        %v2775 = vmul.f32 %v2713, 1.442695
        %v2776 = vpow.pop %v2775
        %v2777 = vmul.f32 %v2714, 1.442695
        %v2778 = vpow.pop %v2777
        %v2779 = vadd.f32 %v2716, 1.0
        %v2780 = vlog2.pop %v2779
        %v2781 = vmul.f32 %v2780, 0.6931472
        %v2782 = vmul.f32 -0.5, %v2716
        %v2783 = vadd.f32 %v2782, 1.0
        %v2784 = vmul.f32 %v2783, %v2716
        %v2785 = vand.u32 2147483647, %v2716
        %vm2786 = vcmp.lt.f32.partialorder %v2785, 0.0004427343
        %v2787 = vsel %vm2786, %v2784, %v2781
        %v2788 = vadd.f32 %v2718, 1.0
        %v2789 = vlog2.pop %v2788
        %v2790 = vmul.f32 %v2789, 0.6931472
        %v2791 = vmul.f32 -0.5, %v2718
        %v2792 = vadd.f32 %v2791, 1.0
        %v2793 = vmul.f32 %v2792, %v2718
        %v2794 = vand.u32 2147483647, %v2718
        %vm2795 = vcmp.lt.f32.partialorder %v2794, 0.0004427343
        %v2796 = vsel %vm2795, %v2793, %v2790
        %v2797 = vadd.f32 %v2720, 1.0
        %v2798 = vlog2.pop %v2797
        %v2799 = vmul.f32 %v2798, 0.6931472
        %v2800 = vmul.f32 -0.5, %v2720
        %v2801 = vadd.f32 %v2800, 1.0
        %v2802 = vmul.f32 %v2801, %v2720
        %v2803 = vand.u32 2147483647, %v2720
        %vm2804 = vcmp.lt.f32.partialorder %v2803, 0.0004427343
        %v2805 = vsel %vm2804, %v2802, %v2799
        %v2806 = vadd.f32 %v2722, 1.0
        %v2807 = vlog2.pop %v2806
        %v2808 = vmul.f32 %v2807, 0.6931472
        %v2809 = vmul.f32 -0.5, %v2722
        %v2810 = vadd.f32 %v2809, 1.0
        %v2811 = vmul.f32 %v2810, %v2722
        %v2812 = vand.u32 2147483647, %v2722
        %vm2813 = vcmp.lt.f32.partialorder %v2812, 0.0004427343
        %v2814 = vsel %vm2813, %v2811, %v2808
        %v2815 = vadd.f32 %v2724, 1.0
        %v2816 = vlog2.pop %v2815
        %v2817 = vmul.f32 %v2816, 0.6931472
        %v2818 = vmul.f32 -0.5, %v2724
        %v2819 = vadd.f32 %v2818, 1.0
        %v2820 = vmul.f32 %v2819, %v2724
        %v2821 = vand.u32 2147483647, %v2724
        %vm2822 = vcmp.lt.f32.partialorder %v2821, 0.0004427343
        %v2823 = vsel %vm2822, %v2820, %v2817
        %v2824 = vadd.f32 %v2726, 1.0
        %v2825 = vlog2.pop %v2824
        %v2826 = vmul.f32 %v2825, 0.6931472
        %v2827 = vmul.f32 -0.5, %v2726
        %v2828 = vadd.f32 %v2827, 1.0
        %v2829 = vmul.f32 %v2828, %v2726
        %v2830 = vand.u32 2147483647, %v2726
        %vm2831 = vcmp.lt.f32.partialorder %v2830, 0.0004427343
        %v2832 = vsel %vm2831, %v2829, %v2826
        %v2833 = vadd.f32 %v2728, 1.0
        %v2834 = vlog2.pop %v2833
        %v2835 = vmul.f32 %v2834, 0.6931472
        %v2836 = vmul.f32 -0.5, %v2728
        %v2837 = vadd.f32 %v2836, 1.0
        %v2838 = vmul.f32 %v2837, %v2728
        %v2839 = vand.u32 2147483647, %v2728
        %vm2840 = vcmp.lt.f32.partialorder %v2839, 0.0004427343
        %v2841 = vsel %vm2840, %v2838, %v2835
        %v2842 = vadd.f32 %v2730, 1.0
        %v2843 = vlog2.pop %v2842
        %v2844 = vmul.f32 %v2843, 0.6931472
        %v2845 = vmul.f32 -0.5, %v2730
        %v2846 = vadd.f32 %v2845, 1.0
        %v2847 = vmul.f32 %v2846, %v2730
        %v2848 = vand.u32 2147483647, %v2730
        %vm2849 = vcmp.lt.f32.partialorder %v2848, 0.0004427343
        %v2850 = vsel %vm2849, %v2847, %v2844
        %v2851 = vadd.f32 %v2732, 1.0
        %v2852 = vlog2.pop %v2851
        %v2853 = vmul.f32 %v2852, 0.6931472
        %v2854 = vmul.f32 -0.5, %v2732
        %v2855 = vadd.f32 %v2854, 1.0
        %v2856 = vmul.f32 %v2855, %v2732
        %v2857 = vand.u32 2147483647, %v2732
        %vm2858 = vcmp.lt.f32.partialorder %v2857, 0.0004427343
        %v2859 = vsel %vm2858, %v2856, %v2853
        %v2860 = vadd.f32 %v2734, 1.0
        %v2861 = vlog2.pop %v2860
        %v2862 = vmul.f32 %v2861, 0.6931472
        %v2863 = vmul.f32 -0.5, %v2734
        %v2864 = vadd.f32 %v2863, 1.0
        %v2865 = vmul.f32 %v2864, %v2734
        %v2866 = vand.u32 2147483647, %v2734
        %vm2867 = vcmp.lt.f32.partialorder %v2866, 0.0004427343
        %v2868 = vsel %vm2867, %v2865, %v2862
        %v2869 = vadd.f32 %v2736, 1.0
        %v2870 = vlog2.pop %v2869
        %v2871 = vmul.f32 %v2870, 0.6931472
        %v2872 = vmul.f32 -0.5, %v2736
        %v2873 = vadd.f32 %v2872, 1.0
        %v2874 = vmul.f32 %v2873, %v2736
        %v2875 = vand.u32 2147483647, %v2736
        %vm2876 = vcmp.lt.f32.partialorder %v2875, 0.0004427343
        %v2877 = vsel %vm2876, %v2874, %v2871
        %v2878 = vadd.f32 %v2738, 1.0
        %v2879 = vlog2.pop %v2878
        %v2880 = vmul.f32 %v2879, 0.6931472
        %v2881 = vmul.f32 -0.5, %v2738
        %v2882 = vadd.f32 %v2881, 1.0
        %v2883 = vmul.f32 %v2882, %v2738
        %v2884 = vand.u32 2147483647, %v2738
        %vm2885 = vcmp.lt.f32.partialorder %v2884, 0.0004427343
        %v2886 = vsel %vm2885, %v2883, %v2880
        %v2887 = vadd.f32 %v2740, 1.0
        %v2888 = vlog2.pop %v2887
        %v2889 = vmul.f32 %v2888, 0.6931472
        %v2890 = vmul.f32 -0.5, %v2740
        %v2891 = vadd.f32 %v2890, 1.0
        %v2892 = vmul.f32 %v2891, %v2740
        %v2893 = vand.u32 2147483647, %v2740
        %vm2894 = vcmp.lt.f32.partialorder %v2893, 0.0004427343
        %v2895 = vsel %vm2894, %v2892, %v2889
        %v2896 = vadd.f32 %v2742, 1.0
        %v2897 = vlog2.pop %v2896
        %v2898 = vmul.f32 %v2897, 0.6931472
        %v2899 = vmul.f32 -0.5, %v2742
        %v2900 = vadd.f32 %v2899, 1.0
        %v2901 = vmul.f32 %v2900, %v2742
        %v2902 = vand.u32 2147483647, %v2742
        %vm2903 = vcmp.lt.f32.partialorder %v2902, 0.0004427343
        %v2904 = vsel %vm2903, %v2901, %v2898
        %v2905 = vadd.f32 %v2744, 1.0
        %v2906 = vlog2.pop %v2905
        %v2907 = vmul.f32 %v2906, 0.6931472
        %v2908 = vmul.f32 -0.5, %v2744
        %v2909 = vadd.f32 %v2908, 1.0
        %v2910 = vmul.f32 %v2909, %v2744
        %v2911 = vand.u32 2147483647, %v2744
        %vm2912 = vcmp.lt.f32.partialorder %v2911, 0.0004427343
        %v2913 = vsel %vm2912, %v2910, %v2907
        %v2914 = vadd.f32 %v2746, 1.0
        %v2915 = vlog2.pop %v2914
        %v2916 = vmul.f32 %v2915, 0.6931472
        %v2917 = vmul.f32 -0.5, %v2746
        %v2918 = vadd.f32 %v2917, 1.0
        %v2919 = vmul.f32 %v2918, %v2746
        %v2920 = vand.u32 2147483647, %v2746
        %vm2921 = vcmp.lt.f32.partialorder %v2920, 0.0004427343
        %v2922 = vsel %vm2921, %v2919, %v2916
        %v2923 = vadd.f32 %v2748, 1.0
        %v2924 = vlog2.pop %v2923
        %v2925 = vmul.f32 %v2924, 0.6931472
        %v2926 = vmul.f32 -0.5, %v2748
        %v2927 = vadd.f32 %v2926, 1.0
        %v2928 = vmul.f32 %v2927, %v2748
        %v2929 = vand.u32 2147483647, %v2748
        %vm2930 = vcmp.lt.f32.partialorder %v2929, 0.0004427343
        %v2931 = vsel %vm2930, %v2928, %v2925
        %v2932 = vadd.f32 %v2750, 1.0
        %v2933 = vlog2.pop %v2932
        %v2934 = vmul.f32 %v2933, 0.6931472
        %v2935 = vmul.f32 -0.5, %v2750
        %v2936 = vadd.f32 %v2935, 1.0
        %v2937 = vmul.f32 %v2936, %v2750
        %v2938 = vand.u32 2147483647, %v2750
        %vm2939 = vcmp.lt.f32.partialorder %v2938, 0.0004427343
        %v2940 = vsel %vm2939, %v2937, %v2934
        %v2941 = vadd.f32 %v2752, 1.0
        %v2942 = vlog2.pop %v2941
        %v2943 = vmul.f32 %v2942, 0.6931472
        %v2944 = vmul.f32 -0.5, %v2752
        %v2945 = vadd.f32 %v2944, 1.0
        %v2946 = vmul.f32 %v2945, %v2752
        %v2947 = vand.u32 2147483647, %v2752
        %vm2948 = vcmp.lt.f32.partialorder %v2947, 0.0004427343
        %v2949 = vsel %vm2948, %v2946, %v2943
        %v2950 = vadd.f32 %v2754, 1.0
        %v2951 = vlog2.pop %v2950
        %v2952 = vmul.f32 %v2951, 0.6931472
        %v2953 = vmul.f32 -0.5, %v2754
        %v2954 = vadd.f32 %v2953, 1.0
        %v2955 = vmul.f32 %v2954, %v2754
        %v2956 = vand.u32 2147483647, %v2754
        %vm2957 = vcmp.lt.f32.partialorder %v2956, 0.0004427343
        %v2958 = vsel %vm2957, %v2955, %v2952
        %v2959 = vadd.f32 %v2756, 1.0
        %v2960 = vlog2.pop %v2959
        %v2961 = vmul.f32 %v2960, 0.6931472
        %v2962 = vmul.f32 -0.5, %v2756
        %v2963 = vadd.f32 %v2962, 1.0
        %v2964 = vmul.f32 %v2963, %v2756
        %v2965 = vand.u32 2147483647, %v2756
        %vm2966 = vcmp.lt.f32.partialorder %v2965, 0.0004427343
        %v2967 = vsel %vm2966, %v2964, %v2961
        %v2968 = vadd.f32 %v2758, 1.0
        %v2969 = vlog2.pop %v2968
        %v2970 = vmul.f32 %v2969, 0.6931472
        %v2971 = vmul.f32 -0.5, %v2758
        %v2972 = vadd.f32 %v2971, 1.0
        %v2973 = vmul.f32 %v2972, %v2758
        %v2974 = vand.u32 2147483647, %v2758
        %vm2975 = vcmp.lt.f32.partialorder %v2974, 0.0004427343
        %v2976 = vsel %vm2975, %v2973, %v2970
        %v2977 = vadd.f32 %v2760, 1.0
        %v2978 = vlog2.pop %v2977
        %v2979 = vmul.f32 %v2978, 0.6931472
        %v2980 = vmul.f32 -0.5, %v2760
        %v2981 = vadd.f32 %v2980, 1.0
        %v2982 = vmul.f32 %v2981, %v2760
        %v2983 = vand.u32 2147483647, %v2760
        %vm2984 = vcmp.lt.f32.partialorder %v2983, 0.0004427343
        %v2985 = vsel %vm2984, %v2982, %v2979
        %v2986 = vadd.f32 %v2762, 1.0
        %v2987 = vlog2.pop %v2986
        %v2988 = vmul.f32 %v2987, 0.6931472
        %v2989 = vmul.f32 -0.5, %v2762
        %v2990 = vadd.f32 %v2989, 1.0
        %v2991 = vmul.f32 %v2990, %v2762
        %v2992 = vand.u32 2147483647, %v2762
        %vm2993 = vcmp.lt.f32.partialorder %v2992, 0.0004427343
        %v2994 = vsel %vm2993, %v2991, %v2988
        %v2995 = vadd.f32 %v2764, 1.0
        %v2996 = vlog2.pop %v2995
        %v2997 = vmul.f32 %v2996, 0.6931472
        %v2998 = vmul.f32 -0.5, %v2764
        %v2999 = vadd.f32 %v2998, 1.0
        %v3000 = vmul.f32 %v2999, %v2764
        %v3001 = vand.u32 2147483647, %v2764
        %vm3002 = vcmp.lt.f32.partialorder %v3001, 0.0004427343
        %v3003 = vsel %vm3002, %v3000, %v2997
        %v3004 = vadd.f32 %v2766, 1.0
        %v3005 = vlog2.pop %v3004
        %v3006 = vmul.f32 %v3005, 0.6931472
        %v3007 = vmul.f32 -0.5, %v2766
        %v3008 = vadd.f32 %v3007, 1.0
        %v3009 = vmul.f32 %v3008, %v2766
        %v3010 = vand.u32 2147483647, %v2766
        %vm3011 = vcmp.lt.f32.partialorder %v3010, 0.0004427343
        %v3012 = vsel %vm3011, %v3009, %v3006
        %v3013 = vadd.f32 %v2768, 1.0
        %v3014 = vlog2.pop %v3013
        %v3015 = vmul.f32 %v3014, 0.6931472
        %v3016 = vmul.f32 -0.5, %v2768
        %v3017 = vadd.f32 %v3016, 1.0
        %v3018 = vmul.f32 %v3017, %v2768
        %v3019 = vand.u32 2147483647, %v2768
        %vm3020 = vcmp.lt.f32.partialorder %v3019, 0.0004427343
        %v3021 = vsel %vm3020, %v3018, %v3015
        %v3022 = vadd.f32 %v2770, 1.0
        %v3023 = vlog2.pop %v3022
        %v3024 = vmul.f32 %v3023, 0.6931472
        %v3025 = vmul.f32 -0.5, %v2770
        %v3026 = vadd.f32 %v3025, 1.0
        %v3027 = vmul.f32 %v3026, %v2770
        %v3028 = vand.u32 2147483647, %v2770
        %vm3029 = vcmp.lt.f32.partialorder %v3028, 0.0004427343
        %v3030 = vsel %vm3029, %v3027, %v3024
        %v3031 = vadd.f32 %v2772, 1.0
        %v3032 = vlog2.pop %v3031
        %v3033 = vmul.f32 %v3032, 0.6931472
        %v3034 = vmul.f32 -0.5, %v2772
        %v3035 = vadd.f32 %v3034, 1.0
        %v3036 = vmul.f32 %v3035, %v2772
        %v3037 = vand.u32 2147483647, %v2772
        %vm3038 = vcmp.lt.f32.partialorder %v3037, 0.0004427343
        %v3039 = vsel %vm3038, %v3036, %v3033
        %v3040 = vadd.f32 %v2774, 1.0
        %v3041 = vlog2.pop %v3040
        %v3042 = vmul.f32 %v3041, 0.6931472
        %v3043 = vmul.f32 -0.5, %v2774
        %v3044 = vadd.f32 %v3043, 1.0
        %v3045 = vmul.f32 %v3044, %v2774
        %v3046 = vand.u32 2147483647, %v2774
        %vm3047 = vcmp.lt.f32.partialorder %v3046, 0.0004427343
        %v3048 = vsel %vm3047, %v3045, %v3042
        %v3049 = vadd.f32 %v2776, 1.0
        %v3050 = vlog2.pop %v3049
        %v3051 = vmul.f32 %v3050, 0.6931472
        %v3052 = vmul.f32 -0.5, %v2776
        %v3053 = vadd.f32 %v3052, 1.0
        %v3054 = vmul.f32 %v3053, %v2776
        %v3055 = vand.u32 2147483647, %v2776
        %vm3056 = vcmp.lt.f32.partialorder %v3055, 0.0004427343
        %v3057 = vsel %vm3056, %v3054, %v3051
        %v3058 = vadd.f32 %v2778, 1.0
        %v3059 = vlog2.pop %v3058
        %v3060 = vmul.f32 %v3059, 0.6931472
        %v3061 = vmul.f32 -0.5, %v2778
        %v3062 = vadd.f32 %v3061, 1.0
        %v3063 = vmul.f32 %v3062, %v2778
        %v3064 = vand.u32 2147483647, %v2778
        %vm3065 = vcmp.lt.f32.partialorder %v3064, 0.0004427343
        %v3066 = vsel %vm3065, %v3063, %v3060
        %v3067 = vadd.f32 %v2555, %v2787
        %v3068 = vadd.f32 %v2556, %v2796
        %v3069 = vadd.f32 %v2557, %v2805
        %v3070 = vadd.f32 %v2558, %v2814
        %v3071 = vadd.f32 %v2559, %v2823
        %v3072 = vadd.f32 %v2560, %v2832
        %v3073 = vadd.f32 %v2561, %v2841
        %v3074 = vadd.f32 %v2562, %v2850
        %v3075 = vadd.f32 %v2563, %v2859
        %v3076 = vadd.f32 %v2564, %v2868
        %v3077 = vadd.f32 %v2565, %v2877
        %v3078 = vadd.f32 %v2566, %v2886
        %v3079 = vadd.f32 %v2567, %v2895
        %v3080 = vadd.f32 %v2568, %v2904
        %v3081 = vadd.f32 %v2569, %v2913
        %v3082 = vadd.f32 %v2570, %v2922
        %v3083 = vadd.f32 %v2571, %v2931
        %v3084 = vadd.f32 %v2572, %v2940
        %v3085 = vadd.f32 %v2573, %v2949
        %v3086 = vadd.f32 %v2574, %v2958
        %v3087 = vadd.f32 %v2575, %v2967
        %v3088 = vadd.f32 %v2576, %v2976
        %v3089 = vadd.f32 %v2577, %v2985
        %v3090 = vadd.f32 %v2578, %v2994
        %v3091 = vadd.f32 %v2579, %v3003
        %v3092 = vadd.f32 %v2580, %v3012
        %v3093 = vadd.f32 %v2581, %v3021
        %v3094 = vadd.f32 %v2582, %v3030
        %v3095 = vadd.f32 %v2583, %v3039
        %v3096 = vadd.f32 %v2584, %v3048
        %v3097 = vadd.f32 %v2585, %v3057
        %v3098 = vadd.f32 %v2586, %v3066
        %v3099 = vsel %vm2587, %v2619, %v3067
        %v3100 = vsel %vm2588, %v2620, %v3068
        %v3101 = vsel %vm2589, %v2621, %v3069
        %v3102 = vsel %vm2590, %v2622, %v3070
        %v3103 = vsel %vm2591, %v2623, %v3071
        %v3104 = vsel %vm2592, %v2624, %v3072
        %v3105 = vsel %vm2593, %v2625, %v3073
        %v3106 = vsel %vm2594, %v2626, %v3074
        %v3107 = vsel %vm2595, %v2627, %v3075
        %v3108 = vsel %vm2596, %v2628, %v3076
        %v3109 = vsel %vm2597, %v2629, %v3077
        %v3110 = vsel %vm2598, %v2630, %v3078
        %v3111 = vsel %vm2599, %v2631, %v3079
        %v3112 = vsel %vm2600, %v2632, %v3080
        %v3113 = vsel %vm2601, %v2633, %v3081
        %v3114 = vsel %vm2602, %v2634, %v3082
        %v3115 = vsel %vm2603, %v2635, %v3083
        %v3116 = vsel %vm2604, %v2636, %v3084
        %v3117 = vsel %vm2605, %v2637, %v3085
        %v3118 = vsel %vm2606, %v2638, %v3086
        %v3119 = vsel %vm2607, %v2639, %v3087
        %v3120 = vsel %vm2608, %v2640, %v3088
        %v3121 = vsel %vm2609, %v2641, %v3089
        %v3122 = vsel %vm2610, %v2642, %v3090
        %v3123 = vsel %vm2611, %v2643, %v3091
        %v3124 = vsel %vm2612, %v2644, %v3092
        %v3125 = vsel %vm2613, %v2645, %v3093
        %v3126 = vsel %vm2614, %v2646, %v3094
        %v3127 = vsel %vm2615, %v2647, %v3095
        %v3128 = vsel %vm2616, %v2648, %v3096
        %v3129 = vsel %vm2617, %v2649, %v3097
        %v3130 = vsel %vm2618, %v2650, %v3098
        %v3131 = vld [vmem:[%s7] sm:$0xff]
        %v3132 = vld [vmem:[%s7 + $0x8] sm:$0xff]
        %v3133 = vld [vmem:[%s7 + $0x10] sm:$0xff]
        %v3134 = vld [vmem:[%s7 + $0x18] sm:$0xff]
        %v3135 = vld [vmem:[%s7 + $0x20] sm:$0xff]
        %v3136 = vld [vmem:[%s7 + $0x28] sm:$0xff]
        %v3137 = vld [vmem:[%s7 + $0x30] sm:$0xff]
        %v3138 = vld [vmem:[%s7 + $0x38] sm:$0xff]
        %v3139 = vld [vmem:[%s7 + $0x40] sm:$0xff]
        %v3140 = vld [vmem:[%s7 + $0x48] sm:$0xff]
        %v3141 = vld [vmem:[%s7 + $0x50] sm:$0xff]
        %v3142 = vld [vmem:[%s7 + $0x58] sm:$0xff]
        %v3143 = vld [vmem:[%s7 + $0x60] sm:$0xff]
        %v3144 = vld [vmem:[%s7 + $0x68] sm:$0xff]
        %v3145 = vld [vmem:[%s7 + $0x70] sm:$0xff]
        %v3146 = vld [vmem:[%s7 + $0x78] sm:$0xff]
        %v3147 = vld [vmem:[%s8] sm:$0x1]
        %v3149 = vlaneseq
        %v3150 = vshrl.u32 %v3149, 7
        %v3151 = vsub.s32 0, %v3150
        %v3152 = vrot.slane %v3147, %v3151
        %3154 = vmatprep.subr.mxu0 0.0
        %3155 = vmatpush1.msra.mxu0 %v3146
        %3156 = vmatprep.subr.mxu0 0.0
        %3157 = vmatpush1.msra.mxu0 %v3145
        %3158 = vmatprep.subr.mxu0 0.0
        %3159 = vmatpush1.msra.mxu0 %v3144
        %3160 = vmatprep.subr.mxu0 0.0
        %3161 = vmatpush1.msra.mxu0 %v3143
        %3162 = vmatprep.subr.mxu0 0.0
        %3163 = vmatpush1.msra.mxu0 %v3142
        %3164 = vmatprep.subr.mxu0 0.0
        %3165 = vmatpush1.msra.mxu0 %v3141
        %3166 = vmatprep.subr.mxu0 0.0
        %3167 = vmatpush1.msra.mxu0 %v3140
        %3168 = vmatprep.subr.mxu0 0.0
        %3169 = vmatpush1.msra.mxu0 %v3139
        %3170 = vmatprep.subr.mxu0 0.0
        %3171 = vmatpush1.msra.mxu0 %v3138
        %3172 = vmatprep.subr.mxu0 0.0
        %3173 = vmatpush1.msra.mxu0 %v3137
        %3174 = vmatprep.subr.mxu0 0.0
        %3175 = vmatpush1.msra.mxu0 %v3136
        %3176 = vmatprep.subr.mxu0 0.0
        %3177 = vmatpush1.msra.mxu0 %v3135
        %3178 = vmatprep.subr.mxu0 0.0
        %3179 = vmatpush1.msra.mxu0 %v3134
        %3180 = vmatprep.subr.mxu0 0.0
        %3181 = vmatpush1.msra.mxu0 %v3133
        %3182 = vmatprep.subr.mxu0 0.0
        %3183 = vmatpush1.msra.mxu0 %v3132
        %3184 = vmatprep.subr.mxu0 0.0
        %3185 = vmatpush1.msra.mxu0 %v3131
        %3186 = vmatprep.subr.mxu0 0.0
        %3187 = vmatpush2.msra.mxu0 0.0
        %3188 = vmatprep.subr.mxu0 0.0
        %3189 = vmatpush2.msra.mxu0 0.0
        %3190 = vmatprep.subr.mxu0 0.0
        %3191 = vmatpush2.msra.mxu0 0.0
        %3192 = vmatprep.subr.mxu0 0.0
        %3193 = vmatpush2.msra.mxu0 0.0
        %3194 = vmatprep.subr.mxu0 0.0
        %3195 = vmatpush2.msra.mxu0 0.0
        %3196 = vmatprep.subr.mxu0 0.0
        %3197 = vmatpush2.msra.mxu0 0.0
        %3198 = vmatprep.subr.mxu0 0.0
        %3199 = vmatpush2.msra.mxu0 0.0
        %3200 = vmatprep.subr.mxu0 0.0
        %3201 = vmatpush2.msra.mxu0 0.0
        %3202 = vmatprep.subr.mxu0 0.0
        %3203 = vmatpush2.msra.mxu0 0.0
        %3204 = vmatprep.subr.mxu0 0.0
        %3205 = vmatpush2.msra.mxu0 0.0
        %3206 = vmatprep.subr.mxu0 0.0
        %3207 = vmatpush2.msra.mxu0 0.0
        %3208 = vmatprep.subr.mxu0 0.0
        %3209 = vmatpush2.msra.mxu0 0.0
        %3210 = vmatprep.subr.mxu0 0.0
        %3211 = vmatpush2.msra.mxu0 0.0
        %3212 = vmatprep.subr.mxu0 0.0
        %3213 = vmatpush2.msra.mxu0 0.0
        %3214 = vmatprep.subr.mxu0 0.0
        %3215 = vmatpush2.msra.mxu0 0.0
        %3216 = vmatprep.subr.mxu0 0.0
        %3217 = vmatpush2.msra.mxu0 0.0
        %3218 = vmatprep.mubr.f32.mxu0 0.0
        %3219 = vmatmul.mubr.f32.gmra.mxu0 %v3099
        %v3220 = vpop.f32.mrf.mxu0
        %v3221 = vadd.f32 %v3152, %v3220
        %v3222 = vpop.f32.mrf.mxu0
        %3223 = vmatprep.mubr.f32.mxu0 0.0
        %3224 = vmatmul.mubr.f32.gmra.mxu0 %v3100
        %v3225 = vpop.f32.mrf.mxu0
        %v3226 = vadd.f32 %v3152, %v3225
        %v3227 = vpop.f32.mrf.mxu0
        %3228 = vmatprep.mubr.f32.mxu0 0.0
        %3229 = vmatmul.mubr.f32.gmra.mxu0 %v3101
        %v3230 = vpop.f32.mrf.mxu0
        %v3231 = vadd.f32 %v3152, %v3230
        %v3232 = vpop.f32.mrf.mxu0
        %3233 = vmatprep.mubr.f32.mxu0 0.0
        %3234 = vmatmul.mubr.f32.gmra.mxu0 %v3102
        %v3235 = vpop.f32.mrf.mxu0
        %v3236 = vadd.f32 %v3152, %v3235
        %v3237 = vpop.f32.mrf.mxu0
        %3238 = vmatprep.mubr.f32.mxu0 0.0
        %3239 = vmatmul.mubr.f32.gmra.mxu0 %v3103
        %v3240 = vpop.f32.mrf.mxu0
        %v3241 = vadd.f32 %v3152, %v3240
        %v3242 = vpop.f32.mrf.mxu0
        %3243 = vmatprep.mubr.f32.mxu0 0.0
        %3244 = vmatmul.mubr.f32.gmra.mxu0 %v3104
        %v3245 = vpop.f32.mrf.mxu0
        %v3246 = vadd.f32 %v3152, %v3245
        %v3247 = vpop.f32.mrf.mxu0
        %3248 = vmatprep.mubr.f32.mxu0 0.0
        %3249 = vmatmul.mubr.f32.gmra.mxu0 %v3105
        %v3250 = vpop.f32.mrf.mxu0
        %v3251 = vadd.f32 %v3152, %v3250
        %v3252 = vpop.f32.mrf.mxu0
        %3253 = vmatprep.mubr.f32.mxu0 0.0
        %3254 = vmatmul.mubr.f32.gmra.mxu0 %v3106
        %v3255 = vpop.f32.mrf.mxu0
        %v3256 = vadd.f32 %v3152, %v3255
        %v3257 = vpop.f32.mrf.mxu0
        %3258 = vmatprep.mubr.f32.mxu0 0.0
        %3259 = vmatmul.mubr.f32.gmra.mxu0 %v3107
        %v3260 = vpop.f32.mrf.mxu0
        %v3261 = vadd.f32 %v3152, %v3260
        %v3262 = vpop.f32.mrf.mxu0
        %3263 = vmatprep.mubr.f32.mxu0 0.0
        %3264 = vmatmul.mubr.f32.gmra.mxu0 %v3108
        %v3265 = vpop.f32.mrf.mxu0
        %v3266 = vadd.f32 %v3152, %v3265
        %v3267 = vpop.f32.mrf.mxu0
        %3268 = vmatprep.mubr.f32.mxu0 0.0
        %3269 = vmatmul.mubr.f32.gmra.mxu0 %v3109
        %v3270 = vpop.f32.mrf.mxu0
        %v3271 = vadd.f32 %v3152, %v3270
        %v3272 = vpop.f32.mrf.mxu0
        %3273 = vmatprep.mubr.f32.mxu0 0.0
        %3274 = vmatmul.mubr.f32.gmra.mxu0 %v3110
        %v3275 = vpop.f32.mrf.mxu0
        %v3276 = vadd.f32 %v3152, %v3275
        %v3277 = vpop.f32.mrf.mxu0
        %3278 = vmatprep.mubr.f32.mxu0 0.0
        %3279 = vmatmul.mubr.f32.gmra.mxu0 %v3111
        %v3280 = vpop.f32.mrf.mxu0
        %v3281 = vadd.f32 %v3152, %v3280
        %v3282 = vpop.f32.mrf.mxu0
        %3283 = vmatprep.mubr.f32.mxu0 0.0
        %3284 = vmatmul.mubr.f32.gmra.mxu0 %v3112
        %v3285 = vpop.f32.mrf.mxu0
        %v3286 = vadd.f32 %v3152, %v3285
        %v3287 = vpop.f32.mrf.mxu0
        %3288 = vmatprep.mubr.f32.mxu0 0.0
        %3289 = vmatmul.mubr.f32.gmra.mxu0 %v3113
        %v3290 = vpop.f32.mrf.mxu0
        %v3291 = vadd.f32 %v3152, %v3290
        %v3292 = vpop.f32.mrf.mxu0
        %3293 = vmatprep.mubr.f32.mxu0 0.0
        %3294 = vmatmul.mubr.f32.gmra.mxu0 %v3114
        %v3295 = vpop.f32.mrf.mxu0
        %v3296 = vadd.f32 %v3152, %v3295
        %v3297 = vpop.f32.mrf.mxu0
        %3298 = vmatprep.mubr.f32.mxu0 0.0
        %3299 = vmatmul.mubr.f32.gmra.mxu0 %v3115
        %v3300 = vpop.f32.mrf.mxu0
        %v3301 = vadd.f32 %v3152, %v3300
        %v3302 = vpop.f32.mrf.mxu0
        %3303 = vmatprep.mubr.f32.mxu0 0.0
        %3304 = vmatmul.mubr.f32.gmra.mxu0 %v3116
        %v3305 = vpop.f32.mrf.mxu0
        %v3306 = vadd.f32 %v3152, %v3305
        %v3307 = vpop.f32.mrf.mxu0
        %3308 = vmatprep.mubr.f32.mxu0 0.0
        %3309 = vmatmul.mubr.f32.gmra.mxu0 %v3117
        %v3310 = vpop.f32.mrf.mxu0
        %v3311 = vadd.f32 %v3152, %v3310
        %v3312 = vpop.f32.mrf.mxu0
        %3313 = vmatprep.mubr.f32.mxu0 0.0
        %3314 = vmatmul.mubr.f32.gmra.mxu0 %v3118
        %v3315 = vpop.f32.mrf.mxu0
        %v3316 = vadd.f32 %v3152, %v3315
        %v3317 = vpop.f32.mrf.mxu0
        %3318 = vmatprep.mubr.f32.mxu0 0.0
        %3319 = vmatmul.mubr.f32.gmra.mxu0 %v3119
        %v3320 = vpop.f32.mrf.mxu0
        %v3321 = vadd.f32 %v3152, %v3320
        %v3322 = vpop.f32.mrf.mxu0
        %3323 = vmatprep.mubr.f32.mxu0 0.0
        %3324 = vmatmul.mubr.f32.gmra.mxu0 %v3120
        %v3325 = vpop.f32.mrf.mxu0
        %v3326 = vadd.f32 %v3152, %v3325
        %v3327 = vpop.f32.mrf.mxu0
        %3328 = vmatprep.mubr.f32.mxu0 0.0
        %3329 = vmatmul.mubr.f32.gmra.mxu0 %v3121
        %v3330 = vpop.f32.mrf.mxu0
        %v3331 = vadd.f32 %v3152, %v3330
        %v3332 = vpop.f32.mrf.mxu0
        %3333 = vmatprep.mubr.f32.mxu0 0.0
        %3334 = vmatmul.mubr.f32.gmra.mxu0 %v3122
        %v3335 = vpop.f32.mrf.mxu0
        %v3336 = vadd.f32 %v3152, %v3335
        %v3337 = vpop.f32.mrf.mxu0
        %3338 = vmatprep.mubr.f32.mxu0 0.0
        %3339 = vmatmul.mubr.f32.gmra.mxu0 %v3123
        %v3340 = vpop.f32.mrf.mxu0
        %v3341 = vadd.f32 %v3152, %v3340
        %v3342 = vpop.f32.mrf.mxu0
        %3343 = vmatprep.mubr.f32.mxu0 0.0
        %3344 = vmatmul.mubr.f32.gmra.mxu0 %v3124
        %v3345 = vpop.f32.mrf.mxu0
        %v3346 = vadd.f32 %v3152, %v3345
        %v3347 = vpop.f32.mrf.mxu0
        %3348 = vmatprep.mubr.f32.mxu0 0.0
        %3349 = vmatmul.mubr.f32.gmra.mxu0 %v3125
        %v3350 = vpop.f32.mrf.mxu0
        %v3351 = vadd.f32 %v3152, %v3350
        %v3352 = vpop.f32.mrf.mxu0
        %3353 = vmatprep.mubr.f32.mxu0 0.0
        %3354 = vmatmul.mubr.f32.gmra.mxu0 %v3126
        %v3355 = vpop.f32.mrf.mxu0
        %v3356 = vadd.f32 %v3152, %v3355
        %v3357 = vpop.f32.mrf.mxu0
        %3358 = vmatprep.mubr.f32.mxu0 0.0
        %3359 = vmatmul.mubr.f32.gmra.mxu0 %v3127
        %v3360 = vpop.f32.mrf.mxu0
        %v3361 = vadd.f32 %v3152, %v3360
        %v3362 = vpop.f32.mrf.mxu0
        %3363 = vmatprep.mubr.f32.mxu0 0.0
        %3364 = vmatmul.mubr.f32.gmra.mxu0 %v3128
        %v3365 = vpop.f32.mrf.mxu0
        %v3366 = vadd.f32 %v3152, %v3365
        %v3367 = vpop.f32.mrf.mxu0
        %3368 = vmatprep.mubr.f32.mxu0 0.0
        %3369 = vmatmul.mubr.f32.gmra.mxu0 %v3129
        %v3370 = vpop.f32.mrf.mxu0
        %v3371 = vadd.f32 %v3152, %v3370
        %v3372 = vpop.f32.mrf.mxu0
        %3373 = vmatprep.mubr.f32.mxu0 0.0
        %3374 = vmatmul.mubr.f32.gmra.mxu0 %v3130
        %v3375 = vpop.f32.mrf.mxu0
        %v3376 = vadd.f32 %v3152, %v3375
        %v3377 = vpop.f32.mrf.mxu0
        %3378 = vdwg.mxu0
        %v3379 = vmax.f32 %v3221, 0.0
        %v3380 = vmax.f32 %v3226, 0.0
        %v3381 = vmax.f32 %v3231, 0.0
        %v3382 = vmax.f32 %v3236, 0.0
        %v3383 = vmax.f32 %v3241, 0.0
        %v3384 = vmax.f32 %v3246, 0.0
        %v3385 = vmax.f32 %v3251, 0.0
        %v3386 = vmax.f32 %v3256, 0.0
        %v3387 = vmax.f32 %v3261, 0.0
        %v3388 = vmax.f32 %v3266, 0.0
        %v3389 = vmax.f32 %v3271, 0.0
        %v3390 = vmax.f32 %v3276, 0.0
        %v3391 = vmax.f32 %v3281, 0.0
        %v3392 = vmax.f32 %v3286, 0.0
        %v3393 = vmax.f32 %v3291, 0.0
        %v3394 = vmax.f32 %v3296, 0.0
        %v3395 = vmax.f32 %v3301, 0.0
        %v3396 = vmax.f32 %v3306, 0.0
        %v3397 = vmax.f32 %v3311, 0.0
        %v3398 = vmax.f32 %v3316, 0.0
        %v3399 = vmax.f32 %v3321, 0.0
        %v3400 = vmax.f32 %v3326, 0.0
        %v3401 = vmax.f32 %v3331, 0.0
        %v3402 = vmax.f32 %v3336, 0.0
        %v3403 = vmax.f32 %v3341, 0.0
        %v3404 = vmax.f32 %v3346, 0.0
        %v3405 = vmax.f32 %v3351, 0.0
        %v3406 = vmax.f32 %v3356, 0.0
        %v3407 = vmax.f32 %v3361, 0.0
        %v3408 = vmax.f32 %v3366, 0.0
        %v3409 = vmax.f32 %v3371, 0.0
        %v3410 = vmax.f32 %v3376, 0.0
        %vm3411 = vcmp.ne.f32.partialorder %v3221, %v3221
        %vm3412 = vcmp.ne.f32.partialorder %v3226, %v3226
        %vm3413 = vcmp.ne.f32.partialorder %v3231, %v3231
        %vm3414 = vcmp.ne.f32.partialorder %v3236, %v3236
        %vm3415 = vcmp.ne.f32.partialorder %v3241, %v3241
        %vm3416 = vcmp.ne.f32.partialorder %v3246, %v3246
        %vm3417 = vcmp.ne.f32.partialorder %v3251, %v3251
        %vm3418 = vcmp.ne.f32.partialorder %v3256, %v3256
        %vm3419 = vcmp.ne.f32.partialorder %v3261, %v3261
        %vm3420 = vcmp.ne.f32.partialorder %v3266, %v3266
        %vm3421 = vcmp.ne.f32.partialorder %v3271, %v3271
        %vm3422 = vcmp.ne.f32.partialorder %v3276, %v3276
        %vm3423 = vcmp.ne.f32.partialorder %v3281, %v3281
        %vm3424 = vcmp.ne.f32.partialorder %v3286, %v3286
        %vm3425 = vcmp.ne.f32.partialorder %v3291, %v3291
        %vm3426 = vcmp.ne.f32.partialorder %v3296, %v3296
        %vm3427 = vcmp.ne.f32.partialorder %v3301, %v3301
        %vm3428 = vcmp.ne.f32.partialorder %v3306, %v3306
        %vm3429 = vcmp.ne.f32.partialorder %v3311, %v3311
        %vm3430 = vcmp.ne.f32.partialorder %v3316, %v3316
        %vm3431 = vcmp.ne.f32.partialorder %v3321, %v3321
        %vm3432 = vcmp.ne.f32.partialorder %v3326, %v3326
        %vm3433 = vcmp.ne.f32.partialorder %v3331, %v3331
        %vm3434 = vcmp.ne.f32.partialorder %v3336, %v3336
        %vm3435 = vcmp.ne.f32.partialorder %v3341, %v3341
        %vm3436 = vcmp.ne.f32.partialorder %v3346, %v3346
        %vm3437 = vcmp.ne.f32.partialorder %v3351, %v3351
        %vm3438 = vcmp.ne.f32.partialorder %v3356, %v3356
        %vm3439 = vcmp.ne.f32.partialorder %v3361, %v3361
        %vm3440 = vcmp.ne.f32.partialorder %v3366, %v3366
        %vm3441 = vcmp.ne.f32.partialorder %v3371, %v3371
        %vm3442 = vcmp.ne.f32.partialorder %v3376, %v3376
        %v3443 = vadd.f32 %v3221, 0.0
        %v3444 = vadd.f32 %v3226, 0.0
        %v3445 = vadd.f32 %v3231, 0.0
        %v3446 = vadd.f32 %v3236, 0.0
        %v3447 = vadd.f32 %v3241, 0.0
        %v3448 = vadd.f32 %v3246, 0.0
        %v3449 = vadd.f32 %v3251, 0.0
        %v3450 = vadd.f32 %v3256, 0.0
        %v3451 = vadd.f32 %v3261, 0.0
        %v3452 = vadd.f32 %v3266, 0.0
        %v3453 = vadd.f32 %v3271, 0.0
        %v3454 = vadd.f32 %v3276, 0.0
        %v3455 = vadd.f32 %v3281, 0.0
        %v3456 = vadd.f32 %v3286, 0.0
        %v3457 = vadd.f32 %v3291, 0.0
        %v3458 = vadd.f32 %v3296, 0.0
        %v3459 = vadd.f32 %v3301, 0.0
        %v3460 = vadd.f32 %v3306, 0.0
        %v3461 = vadd.f32 %v3311, 0.0
        %v3462 = vadd.f32 %v3316, 0.0
        %v3463 = vadd.f32 %v3321, 0.0
        %v3464 = vadd.f32 %v3326, 0.0
        %v3465 = vadd.f32 %v3331, 0.0
        %v3466 = vadd.f32 %v3336, 0.0
        %v3467 = vadd.f32 %v3341, 0.0
        %v3468 = vadd.f32 %v3346, 0.0
        %v3469 = vadd.f32 %v3351, 0.0
        %v3470 = vadd.f32 %v3356, 0.0
        %v3471 = vadd.f32 %v3361, 0.0
        %v3472 = vadd.f32 %v3366, 0.0
        %v3473 = vadd.f32 %v3371, 0.0
        %v3474 = vadd.f32 %v3376, 0.0
        %v3475 = vand.u32 2147483647, %v3221
        %v3476 = vand.u32 2147483647, %v3226
        %v3477 = vand.u32 2147483647, %v3231
        %v3478 = vand.u32 2147483647, %v3236
        %v3479 = vand.u32 2147483647, %v3241
        %v3480 = vand.u32 2147483647, %v3246
        %v3481 = vand.u32 2147483647, %v3251
        %v3482 = vand.u32 2147483647, %v3256
        %v3483 = vand.u32 2147483647, %v3261
        %v3484 = vand.u32 2147483647, %v3266
        %v3485 = vand.u32 2147483647, %v3271
        %v3486 = vand.u32 2147483647, %v3276
        %v3487 = vand.u32 2147483647, %v3281
        %v3488 = vand.u32 2147483647, %v3286
        %v3489 = vand.u32 2147483647, %v3291
        %v3490 = vand.u32 2147483647, %v3296
        %v3491 = vand.u32 2147483647, %v3301
        %v3492 = vand.u32 2147483647, %v3306
        %v3493 = vand.u32 2147483647, %v3311
        %v3494 = vand.u32 2147483647, %v3316
        %v3495 = vand.u32 2147483647, %v3321
        %v3496 = vand.u32 2147483647, %v3326
        %v3497 = vand.u32 2147483647, %v3331
        %v3498 = vand.u32 2147483647, %v3336
        %v3499 = vand.u32 2147483647, %v3341
        %v3500 = vand.u32 2147483647, %v3346
        %v3501 = vand.u32 2147483647, %v3351
        %v3502 = vand.u32 2147483647, %v3356
        %v3503 = vand.u32 2147483647, %v3361
        %v3504 = vand.u32 2147483647, %v3366
        %v3505 = vand.u32 2147483647, %v3371
        %v3506 = vand.u32 2147483647, %v3376
        %v3507 = vsub.f32 0.0, %v3475
        %v3508 = vsub.f32 0.0, %v3476
        %v3509 = vsub.f32 0.0, %v3477
        %v3510 = vsub.f32 0.0, %v3478
        %v3511 = vsub.f32 0.0, %v3479
        %v3512 = vsub.f32 0.0, %v3480
        %v3513 = vsub.f32 0.0, %v3481
        %v3514 = vsub.f32 0.0, %v3482
        %v3515 = vsub.f32 0.0, %v3483
        %v3516 = vsub.f32 0.0, %v3484
        %v3517 = vsub.f32 0.0, %v3485
        %v3518 = vsub.f32 0.0, %v3486
        %v3519 = vsub.f32 0.0, %v3487
        %v3520 = vsub.f32 0.0, %v3488
        %v3521 = vsub.f32 0.0, %v3489
        %v3522 = vsub.f32 0.0, %v3490
        %v3523 = vsub.f32 0.0, %v3491
        %v3524 = vsub.f32 0.0, %v3492
        %v3525 = vsub.f32 0.0, %v3493
        %v3526 = vsub.f32 0.0, %v3494
        %v3527 = vsub.f32 0.0, %v3495
        %v3528 = vsub.f32 0.0, %v3496
        %v3529 = vsub.f32 0.0, %v3497
        %v3530 = vsub.f32 0.0, %v3498
        %v3531 = vsub.f32 0.0, %v3499
        %v3532 = vsub.f32 0.0, %v3500
        %v3533 = vsub.f32 0.0, %v3501
        %v3534 = vsub.f32 0.0, %v3502
        %v3535 = vsub.f32 0.0, %v3503
        %v3536 = vsub.f32 0.0, %v3504
        %v3537 = vsub.f32 0.0, %v3505
        %v3538 = vsub.f32 0.0, %v3506
        %v3539 = vmul.f32 %v3507, 1.442695
        %v3540 = vpow.pop %v3539
        %v3541 = vmul.f32 %v3508, 1.442695
        %v3542 = vpow.pop %v3541
        %v3543 = vmul.f32 %v3509, 1.442695
        %v3544 = vpow.pop %v3543
        %v3545 = vmul.f32 %v3510, 1.442695
        %v3546 = vpow.pop %v3545
        %v3547 = vmul.f32 %v3511, 1.442695
        %v3548 = vpow.pop %v3547
        %v3549 = vmul.f32 %v3512, 1.442695
        %v3550 = vpow.pop %v3549
        %v3551 = vmul.f32 %v3513, 1.442695
        %v3552 = vpow.pop %v3551
        %v3553 = vmul.f32 %v3514, 1.442695
        %v3554 = vpow.pop %v3553
        %v3555 = vmul.f32 %v3515, 1.442695
        %v3556 = vpow.pop %v3555
        %v3557 = vmul.f32 %v3516, 1.442695
        %v3558 = vpow.pop %v3557
        %v3559 = vmul.f32 %v3517, 1.442695
        %v3560 = vpow.pop %v3559
        %v3561 = vmul.f32 %v3518, 1.442695
        %v3562 = vpow.pop %v3561
        %v3563 = vmul.f32 %v3519, 1.442695
        %v3564 = vpow.pop %v3563
        %v3565 = vmul.f32 %v3520, 1.442695
        %v3566 = vpow.pop %v3565
        %v3567 = vmul.f32 %v3521, 1.442695
        %v3568 = vpow.pop %v3567
        %v3569 = vmul.f32 %v3522, 1.442695
        %v3570 = vpow.pop %v3569
        %v3571 = vmul.f32 %v3523, 1.442695
        %v3572 = vpow.pop %v3571
        %v3573 = vmul.f32 %v3524, 1.442695
        %v3574 = vpow.pop %v3573
        %v3575 = vmul.f32 %v3525, 1.442695
        %v3576 = vpow.pop %v3575
        %v3577 = vmul.f32 %v3526, 1.442695
        %v3578 = vpow.pop %v3577
        %v3579 = vmul.f32 %v3527, 1.442695
        %v3580 = vpow.pop %v3579
        %v3581 = vmul.f32 %v3528, 1.442695
        %v3582 = vpow.pop %v3581
        %v3583 = vmul.f32 %v3529, 1.442695
        %v3584 = vpow.pop %v3583
        %v3585 = vmul.f32 %v3530, 1.442695
        %v3586 = vpow.pop %v3585
        %v3587 = vmul.f32 %v3531, 1.442695
        %v3588 = vpow.pop %v3587
        %v3589 = vmul.f32 %v3532, 1.442695
        %v3590 = vpow.pop %v3589
        %v3591 = vmul.f32 %v3533, 1.442695
        %v3592 = vpow.pop %v3591
        %v3593 = vmul.f32 %v3534, 1.442695
        %v3594 = vpow.pop %v3593
        %v3595 = vmul.f32 %v3535, 1.442695
        %v3596 = vpow.pop %v3595
        %v3597 = vmul.f32 %v3536, 1.442695
        %v3598 = vpow.pop %v3597
        %v3599 = vmul.f32 %v3537, 1.442695
        %v3600 = vpow.pop %v3599
        %v3601 = vmul.f32 %v3538, 1.442695
        %v3602 = vpow.pop %v3601
        %v3603 = vadd.f32 %v3540, 1.0
        %v3604 = vlog2.pop %v3603
        %v3605 = vmul.f32 %v3604, 0.6931472
        %v3606 = vmul.f32 -0.5, %v3540
        %v3607 = vadd.f32 %v3606, 1.0
        %v3608 = vmul.f32 %v3607, %v3540
        %v3609 = vand.u32 2147483647, %v3540
        %vm3610 = vcmp.lt.f32.partialorder %v3609, 0.0004427343
        %v3611 = vsel %vm3610, %v3608, %v3605
        %v3612 = vadd.f32 %v3542, 1.0
        %v3613 = vlog2.pop %v3612
        %v3614 = vmul.f32 %v3613, 0.6931472
        %v3615 = vmul.f32 -0.5, %v3542
        %v3616 = vadd.f32 %v3615, 1.0
        %v3617 = vmul.f32 %v3616, %v3542
        %v3618 = vand.u32 2147483647, %v3542
        %vm3619 = vcmp.lt.f32.partialorder %v3618, 0.0004427343
        %v3620 = vsel %vm3619, %v3617, %v3614
        %v3621 = vadd.f32 %v3544, 1.0
        %v3622 = vlog2.pop %v3621
        %v3623 = vmul.f32 %v3622, 0.6931472
        %v3624 = vmul.f32 -0.5, %v3544
        %v3625 = vadd.f32 %v3624, 1.0
        %v3626 = vmul.f32 %v3625, %v3544
        %v3627 = vand.u32 2147483647, %v3544
        %vm3628 = vcmp.lt.f32.partialorder %v3627, 0.0004427343
        %v3629 = vsel %vm3628, %v3626, %v3623
        %v3630 = vadd.f32 %v3546, 1.0
        %v3631 = vlog2.pop %v3630
        %v3632 = vmul.f32 %v3631, 0.6931472
        %v3633 = vmul.f32 -0.5, %v3546
        %v3634 = vadd.f32 %v3633, 1.0
        %v3635 = vmul.f32 %v3634, %v3546
        %v3636 = vand.u32 2147483647, %v3546
        %vm3637 = vcmp.lt.f32.partialorder %v3636, 0.0004427343
        %v3638 = vsel %vm3637, %v3635, %v3632
        %v3639 = vadd.f32 %v3548, 1.0
        %v3640 = vlog2.pop %v3639
        %v3641 = vmul.f32 %v3640, 0.6931472
        %v3642 = vmul.f32 -0.5, %v3548
        %v3643 = vadd.f32 %v3642, 1.0
        %v3644 = vmul.f32 %v3643, %v3548
        %v3645 = vand.u32 2147483647, %v3548
        %vm3646 = vcmp.lt.f32.partialorder %v3645, 0.0004427343
        %v3647 = vsel %vm3646, %v3644, %v3641
        %v3648 = vadd.f32 %v3550, 1.0
        %v3649 = vlog2.pop %v3648
        %v3650 = vmul.f32 %v3649, 0.6931472
        %v3651 = vmul.f32 -0.5, %v3550
        %v3652 = vadd.f32 %v3651, 1.0
        %v3653 = vmul.f32 %v3652, %v3550
        %v3654 = vand.u32 2147483647, %v3550
        %vm3655 = vcmp.lt.f32.partialorder %v3654, 0.0004427343
        %v3656 = vsel %vm3655, %v3653, %v3650
        %v3657 = vadd.f32 %v3552, 1.0
        %v3658 = vlog2.pop %v3657
        %v3659 = vmul.f32 %v3658, 0.6931472
        %v3660 = vmul.f32 -0.5, %v3552
        %v3661 = vadd.f32 %v3660, 1.0
        %v3662 = vmul.f32 %v3661, %v3552
        %v3663 = vand.u32 2147483647, %v3552
        %vm3664 = vcmp.lt.f32.partialorder %v3663, 0.0004427343
        %v3665 = vsel %vm3664, %v3662, %v3659
        %v3666 = vadd.f32 %v3554, 1.0
        %v3667 = vlog2.pop %v3666
        %v3668 = vmul.f32 %v3667, 0.6931472
        %v3669 = vmul.f32 -0.5, %v3554
        %v3670 = vadd.f32 %v3669, 1.0
        %v3671 = vmul.f32 %v3670, %v3554
        %v3672 = vand.u32 2147483647, %v3554
        %vm3673 = vcmp.lt.f32.partialorder %v3672, 0.0004427343
        %v3674 = vsel %vm3673, %v3671, %v3668
        %v3675 = vadd.f32 %v3556, 1.0
        %v3676 = vlog2.pop %v3675
        %v3677 = vmul.f32 %v3676, 0.6931472
        %v3678 = vmul.f32 -0.5, %v3556
        %v3679 = vadd.f32 %v3678, 1.0
        %v3680 = vmul.f32 %v3679, %v3556
        %v3681 = vand.u32 2147483647, %v3556
        %vm3682 = vcmp.lt.f32.partialorder %v3681, 0.0004427343
        %v3683 = vsel %vm3682, %v3680, %v3677
        %v3684 = vadd.f32 %v3558, 1.0
        %v3685 = vlog2.pop %v3684
        %v3686 = vmul.f32 %v3685, 0.6931472
        %v3687 = vmul.f32 -0.5, %v3558
        %v3688 = vadd.f32 %v3687, 1.0
        %v3689 = vmul.f32 %v3688, %v3558
        %v3690 = vand.u32 2147483647, %v3558
        %vm3691 = vcmp.lt.f32.partialorder %v3690, 0.0004427343
        %v3692 = vsel %vm3691, %v3689, %v3686
        %v3693 = vadd.f32 %v3560, 1.0
        %v3694 = vlog2.pop %v3693
        %v3695 = vmul.f32 %v3694, 0.6931472
        %v3696 = vmul.f32 -0.5, %v3560
        %v3697 = vadd.f32 %v3696, 1.0
        %v3698 = vmul.f32 %v3697, %v3560
        %v3699 = vand.u32 2147483647, %v3560
        %vm3700 = vcmp.lt.f32.partialorder %v3699, 0.0004427343
        %v3701 = vsel %vm3700, %v3698, %v3695
        %v3702 = vadd.f32 %v3562, 1.0
        %v3703 = vlog2.pop %v3702
        %v3704 = vmul.f32 %v3703, 0.6931472
        %v3705 = vmul.f32 -0.5, %v3562
        %v3706 = vadd.f32 %v3705, 1.0
        %v3707 = vmul.f32 %v3706, %v3562
        %v3708 = vand.u32 2147483647, %v3562
        %vm3709 = vcmp.lt.f32.partialorder %v3708, 0.0004427343
        %v3710 = vsel %vm3709, %v3707, %v3704
        %v3711 = vadd.f32 %v3564, 1.0
        %v3712 = vlog2.pop %v3711
        %v3713 = vmul.f32 %v3712, 0.6931472
        %v3714 = vmul.f32 -0.5, %v3564
        %v3715 = vadd.f32 %v3714, 1.0
        %v3716 = vmul.f32 %v3715, %v3564
        %v3717 = vand.u32 2147483647, %v3564
        %vm3718 = vcmp.lt.f32.partialorder %v3717, 0.0004427343
        %v3719 = vsel %vm3718, %v3716, %v3713
        %v3720 = vadd.f32 %v3566, 1.0
        %v3721 = vlog2.pop %v3720
        %v3722 = vmul.f32 %v3721, 0.6931472
        %v3723 = vmul.f32 -0.5, %v3566
        %v3724 = vadd.f32 %v3723, 1.0
        %v3725 = vmul.f32 %v3724, %v3566
        %v3726 = vand.u32 2147483647, %v3566
        %vm3727 = vcmp.lt.f32.partialorder %v3726, 0.0004427343
        %v3728 = vsel %vm3727, %v3725, %v3722
        %v3729 = vadd.f32 %v3568, 1.0
        %v3730 = vlog2.pop %v3729
        %v3731 = vmul.f32 %v3730, 0.6931472
        %v3732 = vmul.f32 -0.5, %v3568
        %v3733 = vadd.f32 %v3732, 1.0
        %v3734 = vmul.f32 %v3733, %v3568
        %v3735 = vand.u32 2147483647, %v3568
        %vm3736 = vcmp.lt.f32.partialorder %v3735, 0.0004427343
        %v3737 = vsel %vm3736, %v3734, %v3731
        %v3738 = vadd.f32 %v3570, 1.0
        %v3739 = vlog2.pop %v3738
        %v3740 = vmul.f32 %v3739, 0.6931472
        %v3741 = vmul.f32 -0.5, %v3570
        %v3742 = vadd.f32 %v3741, 1.0
        %v3743 = vmul.f32 %v3742, %v3570
        %v3744 = vand.u32 2147483647, %v3570
        %vm3745 = vcmp.lt.f32.partialorder %v3744, 0.0004427343
        %v3746 = vsel %vm3745, %v3743, %v3740
        %v3747 = vadd.f32 %v3572, 1.0
        %v3748 = vlog2.pop %v3747
        %v3749 = vmul.f32 %v3748, 0.6931472
        %v3750 = vmul.f32 -0.5, %v3572
        %v3751 = vadd.f32 %v3750, 1.0
        %v3752 = vmul.f32 %v3751, %v3572
        %v3753 = vand.u32 2147483647, %v3572
        %vm3754 = vcmp.lt.f32.partialorder %v3753, 0.0004427343
        %v3755 = vsel %vm3754, %v3752, %v3749
        %v3756 = vadd.f32 %v3574, 1.0
        %v3757 = vlog2.pop %v3756
        %v3758 = vmul.f32 %v3757, 0.6931472
        %v3759 = vmul.f32 -0.5, %v3574
        %v3760 = vadd.f32 %v3759, 1.0
        %v3761 = vmul.f32 %v3760, %v3574
        %v3762 = vand.u32 2147483647, %v3574
        %vm3763 = vcmp.lt.f32.partialorder %v3762, 0.0004427343
        %v3764 = vsel %vm3763, %v3761, %v3758
        %v3765 = vadd.f32 %v3576, 1.0
        %v3766 = vlog2.pop %v3765
        %v3767 = vmul.f32 %v3766, 0.6931472
        %v3768 = vmul.f32 -0.5, %v3576
        %v3769 = vadd.f32 %v3768, 1.0
        %v3770 = vmul.f32 %v3769, %v3576
        %v3771 = vand.u32 2147483647, %v3576
        %vm3772 = vcmp.lt.f32.partialorder %v3771, 0.0004427343
        %v3773 = vsel %vm3772, %v3770, %v3767
        %v3774 = vadd.f32 %v3578, 1.0
        %v3775 = vlog2.pop %v3774
        %v3776 = vmul.f32 %v3775, 0.6931472
        %v3777 = vmul.f32 -0.5, %v3578
        %v3778 = vadd.f32 %v3777, 1.0
        %v3779 = vmul.f32 %v3778, %v3578
        %v3780 = vand.u32 2147483647, %v3578
        %vm3781 = vcmp.lt.f32.partialorder %v3780, 0.0004427343
        %v3782 = vsel %vm3781, %v3779, %v3776
        %v3783 = vadd.f32 %v3580, 1.0
        %v3784 = vlog2.pop %v3783
        %v3785 = vmul.f32 %v3784, 0.6931472
        %v3786 = vmul.f32 -0.5, %v3580
        %v3787 = vadd.f32 %v3786, 1.0
        %v3788 = vmul.f32 %v3787, %v3580
        %v3789 = vand.u32 2147483647, %v3580
        %vm3790 = vcmp.lt.f32.partialorder %v3789, 0.0004427343
        %v3791 = vsel %vm3790, %v3788, %v3785
        %v3792 = vadd.f32 %v3582, 1.0
        %v3793 = vlog2.pop %v3792
        %v3794 = vmul.f32 %v3793, 0.6931472
        %v3795 = vmul.f32 -0.5, %v3582
        %v3796 = vadd.f32 %v3795, 1.0
        %v3797 = vmul.f32 %v3796, %v3582
        %v3798 = vand.u32 2147483647, %v3582
        %vm3799 = vcmp.lt.f32.partialorder %v3798, 0.0004427343
        %v3800 = vsel %vm3799, %v3797, %v3794
        %v3801 = vadd.f32 %v3584, 1.0
        %v3802 = vlog2.pop %v3801
        %v3803 = vmul.f32 %v3802, 0.6931472
        %v3804 = vmul.f32 -0.5, %v3584
        %v3805 = vadd.f32 %v3804, 1.0
        %v3806 = vmul.f32 %v3805, %v3584
        %v3807 = vand.u32 2147483647, %v3584
        %vm3808 = vcmp.lt.f32.partialorder %v3807, 0.0004427343
        %v3809 = vsel %vm3808, %v3806, %v3803
        %v3810 = vadd.f32 %v3586, 1.0
        %v3811 = vlog2.pop %v3810
        %v3812 = vmul.f32 %v3811, 0.6931472
        %v3813 = vmul.f32 -0.5, %v3586
        %v3814 = vadd.f32 %v3813, 1.0
        %v3815 = vmul.f32 %v3814, %v3586
        %v3816 = vand.u32 2147483647, %v3586
        %vm3817 = vcmp.lt.f32.partialorder %v3816, 0.0004427343
        %v3818 = vsel %vm3817, %v3815, %v3812
        %v3819 = vadd.f32 %v3588, 1.0
        %v3820 = vlog2.pop %v3819
        %v3821 = vmul.f32 %v3820, 0.6931472
        %v3822 = vmul.f32 -0.5, %v3588
        %v3823 = vadd.f32 %v3822, 1.0
        %v3824 = vmul.f32 %v3823, %v3588
        %v3825 = vand.u32 2147483647, %v3588
        %vm3826 = vcmp.lt.f32.partialorder %v3825, 0.0004427343
        %v3827 = vsel %vm3826, %v3824, %v3821
        %v3828 = vadd.f32 %v3590, 1.0
        %v3829 = vlog2.pop %v3828
        %v3830 = vmul.f32 %v3829, 0.6931472
        %v3831 = vmul.f32 -0.5, %v3590
        %v3832 = vadd.f32 %v3831, 1.0
        %v3833 = vmul.f32 %v3832, %v3590
        %v3834 = vand.u32 2147483647, %v3590
        %vm3835 = vcmp.lt.f32.partialorder %v3834, 0.0004427343
        %v3836 = vsel %vm3835, %v3833, %v3830
        %v3837 = vadd.f32 %v3592, 1.0
        %v3838 = vlog2.pop %v3837
        %v3839 = vmul.f32 %v3838, 0.6931472
        %v3840 = vmul.f32 -0.5, %v3592
        %v3841 = vadd.f32 %v3840, 1.0
        %v3842 = vmul.f32 %v3841, %v3592
        %v3843 = vand.u32 2147483647, %v3592
        %vm3844 = vcmp.lt.f32.partialorder %v3843, 0.0004427343
        %v3845 = vsel %vm3844, %v3842, %v3839
        %v3846 = vadd.f32 %v3594, 1.0
        %v3847 = vlog2.pop %v3846
        %v3848 = vmul.f32 %v3847, 0.6931472
        %v3849 = vmul.f32 -0.5, %v3594
        %v3850 = vadd.f32 %v3849, 1.0
        %v3851 = vmul.f32 %v3850, %v3594
        %v3852 = vand.u32 2147483647, %v3594
        %vm3853 = vcmp.lt.f32.partialorder %v3852, 0.0004427343
        %v3854 = vsel %vm3853, %v3851, %v3848
        %v3855 = vadd.f32 %v3596, 1.0
        %v3856 = vlog2.pop %v3855
        %v3857 = vmul.f32 %v3856, 0.6931472
        %v3858 = vmul.f32 -0.5, %v3596
        %v3859 = vadd.f32 %v3858, 1.0
        %v3860 = vmul.f32 %v3859, %v3596
        %v3861 = vand.u32 2147483647, %v3596
        %vm3862 = vcmp.lt.f32.partialorder %v3861, 0.0004427343
        %v3863 = vsel %vm3862, %v3860, %v3857
        %v3864 = vadd.f32 %v3598, 1.0
        %v3865 = vlog2.pop %v3864
        %v3866 = vmul.f32 %v3865, 0.6931472
        %v3867 = vmul.f32 -0.5, %v3598
        %v3868 = vadd.f32 %v3867, 1.0
        %v3869 = vmul.f32 %v3868, %v3598
        %v3870 = vand.u32 2147483647, %v3598
        %vm3871 = vcmp.lt.f32.partialorder %v3870, 0.0004427343
        %v3872 = vsel %vm3871, %v3869, %v3866
        %v3873 = vadd.f32 %v3600, 1.0
        %v3874 = vlog2.pop %v3873
        %v3875 = vmul.f32 %v3874, 0.6931472
        %v3876 = vmul.f32 -0.5, %v3600
        %v3877 = vadd.f32 %v3876, 1.0
        %v3878 = vmul.f32 %v3877, %v3600
        %v3879 = vand.u32 2147483647, %v3600
        %vm3880 = vcmp.lt.f32.partialorder %v3879, 0.0004427343
        %v3881 = vsel %vm3880, %v3878, %v3875
        %v3882 = vadd.f32 %v3602, 1.0
        %v3883 = vlog2.pop %v3882
        %v3884 = vmul.f32 %v3883, 0.6931472
        %v3885 = vmul.f32 -0.5, %v3602
        %v3886 = vadd.f32 %v3885, 1.0
        %v3887 = vmul.f32 %v3886, %v3602
        %v3888 = vand.u32 2147483647, %v3602
        %vm3889 = vcmp.lt.f32.partialorder %v3888, 0.0004427343
        %v3890 = vsel %vm3889, %v3887, %v3884
        %v3891 = vadd.f32 %v3379, %v3611
        %v3892 = vadd.f32 %v3380, %v3620
        %v3893 = vadd.f32 %v3381, %v3629
        %v3894 = vadd.f32 %v3382, %v3638
        %v3895 = vadd.f32 %v3383, %v3647
        %v3896 = vadd.f32 %v3384, %v3656
        %v3897 = vadd.f32 %v3385, %v3665
        %v3898 = vadd.f32 %v3386, %v3674
        %v3899 = vadd.f32 %v3387, %v3683
        %v3900 = vadd.f32 %v3388, %v3692
        %v3901 = vadd.f32 %v3389, %v3701
        %v3902 = vadd.f32 %v3390, %v3710
        %v3903 = vadd.f32 %v3391, %v3719
        %v3904 = vadd.f32 %v3392, %v3728
        %v3905 = vadd.f32 %v3393, %v3737
        %v3906 = vadd.f32 %v3394, %v3746
        %v3907 = vadd.f32 %v3395, %v3755
        %v3908 = vadd.f32 %v3396, %v3764
        %v3909 = vadd.f32 %v3397, %v3773
        %v3910 = vadd.f32 %v3398, %v3782
        %v3911 = vadd.f32 %v3399, %v3791
        %v3912 = vadd.f32 %v3400, %v3800
        %v3913 = vadd.f32 %v3401, %v3809
        %v3914 = vadd.f32 %v3402, %v3818
        %v3915 = vadd.f32 %v3403, %v3827
        %v3916 = vadd.f32 %v3404, %v3836
        %v3917 = vadd.f32 %v3405, %v3845
        %v3918 = vadd.f32 %v3406, %v3854
        %v3919 = vadd.f32 %v3407, %v3863
        %v3920 = vadd.f32 %v3408, %v3872
        %v3921 = vadd.f32 %v3409, %v3881
        %v3922 = vadd.f32 %v3410, %v3890
        %v3923 = vsel %vm3411, %v3443, %v3891
        %v3924 = vsel %vm3412, %v3444, %v3892
        %v3925 = vsel %vm3413, %v3445, %v3893
        %v3926 = vsel %vm3414, %v3446, %v3894
        %v3927 = vsel %vm3415, %v3447, %v3895
        %v3928 = vsel %vm3416, %v3448, %v3896
        %v3929 = vsel %vm3417, %v3449, %v3897
        %v3930 = vsel %vm3418, %v3450, %v3898
        %v3931 = vsel %vm3419, %v3451, %v3899
        %v3932 = vsel %vm3420, %v3452, %v3900
        %v3933 = vsel %vm3421, %v3453, %v3901
        %v3934 = vsel %vm3422, %v3454, %v3902
        %v3935 = vsel %vm3423, %v3455, %v3903
        %v3936 = vsel %vm3424, %v3456, %v3904
        %v3937 = vsel %vm3425, %v3457, %v3905
        %v3938 = vsel %vm3426, %v3458, %v3906
        %v3939 = vsel %vm3427, %v3459, %v3907
        %v3940 = vsel %vm3428, %v3460, %v3908
        %v3941 = vsel %vm3429, %v3461, %v3909
        %v3942 = vsel %vm3430, %v3462, %v3910
        %v3943 = vsel %vm3431, %v3463, %v3911
        %v3944 = vsel %vm3432, %v3464, %v3912
        %v3945 = vsel %vm3433, %v3465, %v3913
        %v3946 = vsel %vm3434, %v3466, %v3914
        %v3947 = vsel %vm3435, %v3467, %v3915
        %v3948 = vsel %vm3436, %v3468, %v3916
        %v3949 = vsel %vm3437, %v3469, %v3917
        %v3950 = vsel %vm3438, %v3470, %v3918
        %v3951 = vsel %vm3439, %v3471, %v3919
        %v3952 = vsel %vm3440, %v3472, %v3920
        %v3953 = vsel %vm3441, %v3473, %v3921
        %v3954 = vsel %vm3442, %v3474, %v3922
        %v3955 = vld [vmem:[%s383] sm:$0xff]
        %v3956 = vld [vmem:[%s383 + $0x8] sm:$0xff]
        %v3957 = vld [vmem:[%s383 + $0x10] sm:$0xff]
        %v3958 = vld [vmem:[%s383 + $0x18] sm:$0xff]
        %v3959 = vld [vmem:[%s383 + $0x20] sm:$0xff]
        %v3960 = vld [vmem:[%s383 + $0x28] sm:$0xff]
        %v3961 = vld [vmem:[%s383 + $0x30] sm:$0xff]
        %v3962 = vld [vmem:[%s383 + $0x38] sm:$0xff]
        %v3963 = vld [vmem:[%s383 + $0x40] sm:$0xff]
        %v3964 = vld [vmem:[%s383 + $0x48] sm:$0xff]
        %v3965 = vld [vmem:[%s383 + $0x50] sm:$0xff]
        %v3966 = vld [vmem:[%s383 + $0x58] sm:$0xff]
        %v3967 = vld [vmem:[%s383 + $0x60] sm:$0xff]
        %v3968 = vld [vmem:[%s383 + $0x68] sm:$0xff]
        %v3969 = vld [vmem:[%s383 + $0x70] sm:$0xff]
        %v3970 = vld [vmem:[%s383 + $0x78] sm:$0xff]
        %v3971 = vld [vmem:[%s383 + $0x80] sm:$0xff]
        %v3972 = vld [vmem:[%s383 + $0x88] sm:$0xff]
        %v3973 = vld [vmem:[%s383 + $0x90] sm:$0xff]
        %v3974 = vld [vmem:[%s383 + $0x98] sm:$0xff]
        %v3975 = vld [vmem:[%s383 + $0xa0] sm:$0xff]
        %v3976 = vld [vmem:[%s383 + $0xa8] sm:$0xff]
        %v3977 = vld [vmem:[%s383 + $0xb0] sm:$0xff]
        %v3978 = vld [vmem:[%s383 + $0xb8] sm:$0xff]
        %v3979 = vld [vmem:[%s383 + $0xc0] sm:$0xff]
        %v3980 = vld [vmem:[%s383 + $0xc8] sm:$0xff]
        %v3981 = vld [vmem:[%s383 + $0xd0] sm:$0xff]
        %v3982 = vld [vmem:[%s383 + $0xd8] sm:$0xff]
        %v3983 = vld [vmem:[%s383 + $0xe0] sm:$0xff]
        %v3984 = vld [vmem:[%s383 + $0xe8] sm:$0xff]
        %v3985 = vld [vmem:[%s383 + $0xf0] sm:$0xff]
        %v3986 = vld [vmem:[%s383 + $0xf8] sm:$0xff]
        %v3987 = vmul.f32 %v3955, 0.0125
        %v3988 = vmul.f32 %v3956, 0.0125
        %v3989 = vmul.f32 %v3957, 0.0125
        %v3990 = vmul.f32 %v3958, 0.0125
        %v3991 = vmul.f32 %v3959, 0.0125
        %v3992 = vmul.f32 %v3960, 0.0125
        %v3993 = vmul.f32 %v3961, 0.0125
        %v3994 = vmul.f32 %v3962, 0.0125
        %v3995 = vmul.f32 %v3963, 0.0125
        %v3996 = vmul.f32 %v3964, 0.0125
        %v3997 = vmul.f32 %v3965, 0.0125
        %v3998 = vmul.f32 %v3966, 0.0125
        %v3999 = vmul.f32 %v3967, 0.0125
        %v4000 = vmul.f32 %v3968, 0.0125
        %v4001 = vmul.f32 %v3969, 0.0125
        %v4002 = vmul.f32 %v3970, 0.0125
        %v4003 = vmul.f32 %v3971, 0.0125
        %v4004 = vmul.f32 %v3972, 0.0125
        %v4005 = vmul.f32 %v3973, 0.0125
        %v4006 = vmul.f32 %v3974, 0.0125
        %v4007 = vmul.f32 %v3975, 0.0125
        %v4008 = vmul.f32 %v3976, 0.0125
        %v4009 = vmul.f32 %v3977, 0.0125
        %v4010 = vmul.f32 %v3978, 0.0125
        %v4011 = vmul.f32 %v3979, 0.0125
        %v4012 = vmul.f32 %v3980, 0.0125
        %v4013 = vmul.f32 %v3981, 0.0125
        %v4014 = vmul.f32 %v3982, 0.0125
        %v4015 = vmul.f32 %v3983, 0.0125
        %v4016 = vmul.f32 %v3984, 0.0125
        %v4017 = vmul.f32 %v3985, 0.0125
        %v4018 = vmul.f32 %v3986, 0.0125
        %v4019 = vadd.f32 %v3923, %v3987
        %v4020 = vadd.f32 %v3924, %v3988
        %v4021 = vadd.f32 %v3925, %v3989
        %v4022 = vadd.f32 %v3926, %v3990
        %v4023 = vadd.f32 %v3927, %v3991
        %v4024 = vadd.f32 %v3928, %v3992
        %v4025 = vadd.f32 %v3929, %v3993
        %v4026 = vadd.f32 %v3930, %v3994
        %v4027 = vadd.f32 %v3931, %v3995
        %v4028 = vadd.f32 %v3932, %v3996
        %v4029 = vadd.f32 %v3933, %v3997
        %v4030 = vadd.f32 %v3934, %v3998
        %v4031 = vadd.f32 %v3935, %v3999
        %v4032 = vadd.f32 %v3936, %v4000
        %v4033 = vadd.f32 %v3937, %v4001
        %v4034 = vadd.f32 %v3938, %v4002
        %v4035 = vadd.f32 %v3939, %v4003
        %v4036 = vadd.f32 %v3940, %v4004
        %v4037 = vadd.f32 %v3941, %v4005
        %v4038 = vadd.f32 %v3942, %v4006
        %v4039 = vadd.f32 %v3943, %v4007
        %v4040 = vadd.f32 %v3944, %v4008
        %v4041 = vadd.f32 %v3945, %v4009
        %v4042 = vadd.f32 %v3946, %v4010
        %v4043 = vadd.f32 %v3947, %v4011
        %v4044 = vadd.f32 %v3948, %v4012
        %v4045 = vadd.f32 %v3949, %v4013
        %v4046 = vadd.f32 %v3950, %v4014
        %v4047 = vadd.f32 %v3951, %v4015
        %v4048 = vadd.f32 %v3952, %v4016
        %v4049 = vadd.f32 %v3953, %v4017
        %v4050 = vadd.f32 %v3954, %v4018
        %4051 = vst [vmem:[%s371] sm:$0xff] %v4019
        %4052 = vst [vmem:[%s371 + $0x8] sm:$0xff] %v4020
        %4053 = vst [vmem:[%s371 + $0x10] sm:$0xff] %v4021
        %4054 = vst [vmem:[%s371 + $0x18] sm:$0xff] %v4022
        %4055 = vst [vmem:[%s371 + $0x20] sm:$0xff] %v4023
        %4056 = vst [vmem:[%s371 + $0x28] sm:$0xff] %v4024
        %4057 = vst [vmem:[%s371 + $0x30] sm:$0xff] %v4025
        %4058 = vst [vmem:[%s371 + $0x38] sm:$0xff] %v4026
        %4059 = vst [vmem:[%s371 + $0x40] sm:$0xff] %v4027
        %4060 = vst [vmem:[%s371 + $0x48] sm:$0xff] %v4028
        %4061 = vst [vmem:[%s371 + $0x50] sm:$0xff] %v4029
        %4062 = vst [vmem:[%s371 + $0x58] sm:$0xff] %v4030
        %4063 = vst [vmem:[%s371 + $0x60] sm:$0xff] %v4031
        %4064 = vst [vmem:[%s371 + $0x68] sm:$0xff] %v4032
        %4065 = vst [vmem:[%s371 + $0x70] sm:$0xff] %v4033
        %4066 = vst [vmem:[%s371 + $0x78] sm:$0xff] %v4034
        %4067 = vst [vmem:[%s371 + $0x80] sm:$0xff] %v4035
        %4068 = vst [vmem:[%s371 + $0x88] sm:$0xff] %v4036
        %4069 = vst [vmem:[%s371 + $0x90] sm:$0xff] %v4037
        %4070 = vst [vmem:[%s371 + $0x98] sm:$0xff] %v4038
        %4071 = vst [vmem:[%s371 + $0xa0] sm:$0xff] %v4039
        %4072 = vst [vmem:[%s371 + $0xa8] sm:$0xff] %v4040
        %4073 = vst [vmem:[%s371 + $0xb0] sm:$0xff] %v4041
        %4074 = vst [vmem:[%s371 + $0xb8] sm:$0xff] %v4042
        %4075 = vst [vmem:[%s371 + $0xc0] sm:$0xff] %v4043
        %4076 = vst [vmem:[%s371 + $0xc8] sm:$0xff] %v4044
        %4077 = vst [vmem:[%s371 + $0xd0] sm:$0xff] %v4045
        %4078 = vst [vmem:[%s371 + $0xd8] sm:$0xff] %v4046
        %4079 = vst [vmem:[%s371 + $0xe0] sm:$0xff] %v4047
        %4080 = vst [vmem:[%s371 + $0xe8] sm:$0xff] %v4048
        %4081 = vst [vmem:[%s371 + $0xf0] sm:$0xff] %v4049
        %4082 = vst [vmem:[%s371 + $0xf8] sm:$0xff] %v4050
        %s4083 = sand.u32 %s252, 1
        %s4084 = scalar_lea.sflag [#allocation4], %s4083
        %s4085 = sand.u32 %s252, 1
        %s4086 = smul.addr %s4085, 256
        %s4087 = scalar_lea.vmem [#allocation3], %s4086
        // Predicated region
        $region61: #{tpu_custom_call.1} parent=59 // pred_check
          %p4088 = pneg %p262
        $region62: #{tpu_custom_call.1} parent=59 // pred_check_branch
          %4090 = sbr.rel (%p4088) target = $region64
        $region63: #{tpu_custom_call.1} parent=59 // pred_region
          %s4091 = smul.u32 32, %s24
          %s4093 = ssub.s32 4096, 4096
          %4094 = vsyncadd %s4084, %s4093
          %s4095 = smul.addr %s4091, 128
          %s4096 = scalar_lea.hbm %s10, %s4095
          %s4097 = sshll.u32 %s4087, 4
          %s4098 = int_to_ptr.vmem [resolvable:$true] %s4097
          %4103 = dma.vmem_to_hbm [thread:$0]  %s4098, 4096, %s4096, %s4084, 128, 128, 8
        $region64: #{tpu_custom_call.1} parent=59 // pred_fallthru
          _
      $region60: #{tpu_custom_call.1} parent=5 // pred_fallthru
        _
      %p4104 = scmp.le.s32.totalorder 2, %s19
      // Predicated region
      $region65: #{tpu_custom_call.1} parent=5 // pred_check
        %p4105 = pneg %p4104
      $region66: #{tpu_custom_call.1} parent=5 // pred_check_branch
        %4107 = sbr.rel (%p4105) target = $region68
      $region67: #{tpu_custom_call.1} parent=5 // pred_region
        %s4108 = ssub.s32 %s19, 2
        // Predicated region
        $region69: #{tpu_custom_call.1} parent=67 // pred_check
          %p4109 = pneg %p268
        $region70: #{tpu_custom_call.1} parent=67 // pred_check_branch
          %4111 = sbr.rel (%p4109) target = $region72
        $region71: #{tpu_custom_call.1} parent=67 // pred_region
          %s4112 = sand.u32 %s253, 1
          %s4113 = scalar_lea.sflag [#allocation4], %s4112
          %s4114 = sand.u32 %s253, 1
          %s4115 = smul.addr %s4114, 256
          %s4116 = scalar_lea.vmem [#allocation3], %s4115
          %4117 = dma.done %s4113, 4096
        $region72: #{tpu_custom_call.1} parent=67 // pred_fallthru
          _
      $region68: #{tpu_custom_call.1} parent=5 // pred_fallthru
        _
    $region6: #{tpu_custom_call.1} parent=1 // loop_footer
      %s23 = sadd.s32 1, %s19
    $region7: #{tpu_custom_call.1} parent=1 // loop_footer_branch
      %18 = sbr.rel target = $region3
    $region8: #{tpu_custom_call.1} parent=1 // loop_exit
      _
    %4118 = vsyncpa [#allocation4], 1
    %s4119 = scalar_lea.sflag [#allocation4], 1
    %4120 = vsyncpa %s4119, 1

</llo_original>
